<compile_context>
chip_gen: v7x
topology: tpu7x:2x2x1
jax: 0.10.0
libtpu: 0.0.40
codegen_flags: <defaults>
</compile_context>

<pallas_src>
import numpy as np
import jax
import jax.numpy as jnp
from jax.experimental import pallas as pl
from jax.experimental.pallas import tpu as pltpu

POOL_H = 4  # AdaptiveAvgPool2d((4, 4)) target height
POOL_W = 4  # AdaptiveAvgPool2d((4, 4)) target width (input width is 1 -> replication)


def _pool_windows(in_size: int, out_size: int):
    """Static AdaptiveAvgPool1d windows (PyTorch's floor/ceil formula)."""
    wins = []
    for i in range(out_size):
        s = (i * in_size) // out_size
        e = -((-(i + 1) * in_size) // out_size)  # ceil((i+1)*in/out)
        wins.append((s, e))
    return wins


def _resize_graph_kernel(x_ref, wt_ref, b_ref, o_ref):
    # x_ref : (TB, C, H)   graph features for TB samples (C nodes/channels, H dim)
    # wt_ref: (C, Co)      1x1-conv weight, pre-transposed once in the wrapper
    # b_ref : (1, Co)      1x1-conv bias
    # o_ref : (TB*4, Co)   rows = (sample, pooled-row), cols = out channel (lane-dense)
    tb, c, h = x_ref.shape

    # Adaptive average pool over H (h -> 4). Window bounds are static Python
    # ints, so each window mean is a static-slice lane reduction (VPU/XLU),
    # leaving the MXU free for the single conv matmul below.
    pooled = [jnp.mean(x_ref[:, :, s:e], axis=-1)          # (TB, C) each
              for (s, e) in _pool_windows(h, POOL_H)]
    pooled = jnp.stack(pooled, axis=1).reshape(tb * POOL_H, c)   # (TB*4, C)

    # 1x1 conv over the channel axis: ONE flat lane-dense MXU matmul + VPU bias.
    z = jnp.dot(pooled, wt_ref[...], preferred_element_type=jnp.float32)
    o_ref[...] = z + b_ref[...]


def _tpu_memory_model():
    """(physical VMEM bytes, TensorCores per chip) with conservative fallback."""
    vmem, cores = 64 << 20, 1
    try:
        info = pltpu.get_tpu_info()
        vmem = int(info.vmem_capacity_bytes)
        cores = 0
        for attr in ("num_cores", "core_count", "num_tensorcores"):
            if hasattr(info, attr):
                cores = int(getattr(info, attr))
                break
        if cores <= 0:
            cores = 2 if vmem <= (64 << 20) else 1   # v7x-like -> 2 TCs
    except Exception:
        pass
    return vmem, cores


def _round_up(v, m):
    return -(-v // m) * m


def _vmem_block_bytes(tb, C, H, Co):
    """Padding-aware VMEM estimate for one grid step (sublane->8, lane->128)."""
    x_blk = tb * _round_up(C, 8) * _round_up(H, 128) * 4
    o_blk = _round_up(POOL_H * tb, 8) * _round_up(Co, 128) * 4
    w_res = _round_up(C, 8) * _round_up(Co, 128) * 4
    b_res = 8 * _round_up(Co, 128) * 4
    interm = _round_up(POOL_H * tb, 8) * (_round_up(C, 128) + _round_up(Co, 128)) * 4
    # inputs/outputs are double-buffered by the pipeline; intermediates are not.
    return 2 * (x_blk + o_blk + w_res + b_res) + interm


def _choose_tb(N, C, H, Co, budget, num_cores):
    def valid(tb):  # out block rows (4*tb) must be a multiple of 8, or the full extent
        return tb == N or (tb % 2 == 0)

    def fits(tb):
        return _vmem_block_bytes(tb, C, H, Co) <= budget

    want_steps = 2 if (num_cores >= 2 and N >= 2) else 1
    candidates = [tb for tb in range(N, 0, -1) if valid(tb)]
    for tb in candidates:                                   # prefer exact divisors
        if N % tb == 0 and fits(tb) and pl.cdiv(N, tb) >= want_steps:
            return tb
    for tb in candidates:
        if fits(tb) and pl.cdiv(N, tb) >= want_steps:
            return tb
    for tb in candidates:                                   # drop multi-core preference
        if fits(tb):
            return tb
    return candidates[-1]


def modify_graph_output(x, conv_w, conv_b, *, tb=None):
    """ModifyGraphOutput.forward.

    x: (B, C, H) f32 graph features, conv_w: (Co, C, 1, 1), conv_b: (Co,).
    Returns (B, Co, 4, 4) f32.
    """
    B, C, H = x.shape
    Co = conv_w.shape[0]
    wt = conv_w.reshape(Co, C).T.astype(jnp.float32)     # (C, Co), pre-transposed once
    bias = conv_b.reshape(1, Co).astype(jnp.float32)

    vmem_bytes, num_cores = _tpu_memory_model()
    if tb is None:
        budget = (24 << 20) if vmem_bytes <= (64 << 20) else (40 << 20)
        tb = _choose_tb(B, C, H, Co, budget, num_cores)

    grid = (pl.cdiv(B, tb),)
    cost = pl.CostEstimate(
        flops=2 * B * POOL_H * C * Co + B * C * H,
        transcendentals=0,
        bytes_accessed=4 * (B * C * H + B * POOL_H * Co + C * Co + Co))

    out_flat = pl.pallas_call(
        _resize_graph_kernel,
        out_shape=jax.ShapeDtypeStruct((B * POOL_H, Co), jnp.float32),
        grid=grid,
        in_specs=[
            pl.BlockSpec((tb, C, H), lambda n: (n, 0, 0)),   # x block (lane-dense H)
            pl.BlockSpec((C, Co), lambda n: (0, 0)),          # conv weight (resident)
            pl.BlockSpec((1, Co), lambda n: (0, 0)),          # conv bias   (resident)
        ],
        out_specs=pl.BlockSpec((tb * POOL_H, Co), lambda n: (n, 0)),
        compiler_params=pltpu.CompilerParams(
            dimension_semantics=("parallel",),
            vmem_limit_bytes=min(int(vmem_bytes * 3 // 4), 100 << 20)),
        cost_estimate=cost,
    )(x.astype(jnp.float32), wt, bias)

    # Layout plumbing outside the kernel: (B*4, Co) -> (B, Co, 4); the width axis
    # of AdaptiveAvgPool2d((4,4)) on a width-1 feature map is pure replication.
    y = out_flat.reshape(B, POOL_H, Co).transpose(0, 2, 1)   # (B, Co, 4)
    return jnp.broadcast_to(y[:, :, :, None], (B, Co, POOL_H, POOL_W))


def _adaptive_pool_matrix(in_size, out_size):
    P = np.zeros((out_size, in_size), dtype=np.float32)
    for i, (s, e) in enumerate(_pool_windows(in_size, out_size)):
        P[i, s:e] = 1.0 / float(e - s)
    return jnp.asarray(P)


def _reference(x, conv_w, conv_b):
    """Pure-JAX reference for ModifyGraphOutput.forward."""
    B, C, H = x.shape
    Co = conv_w.shape[0]
    W = conv_w.reshape(Co, C)
    y1 = jnp.einsum("oc,bch->boh", W, x) + conv_b.reshape(1, Co, 1)   # conv1x1 on (B,C,H,1)
    Ph = _adaptive_pool_matrix(H, POOL_H)                              # (4, H)
    pooled = jnp.einsum("ih,boh->boi", Ph, y1)                         # (B, Co, 4)
    return jnp.broadcast_to(pooled[..., None], (B, Co, POOL_H, POOL_W))


if __name__ == "__main__":
    key = jax.random.PRNGKey(0)
    kx, kw, kb = jax.random.split(key, 3)

    # Shapes from the module: num_nodes=200 channels, dim=256, Conv2d(200, 512, k=1);
    # small batch B=4.
    B, C_IN, DIM, C_OUT = 4, 200, 256, 512
    x = jax.random.normal(kx, (B, C_IN, DIM), dtype=jnp.float32)
    conv_w = 0.05 * jax.random.normal(kw, (C_OUT, C_IN, 1, 1), dtype=jnp.float32)
    conv_b = jax.random.normal(kb, (C_OUT,), dtype=jnp.float32)

    y = modify_graph_output(x, conv_w, conv_b)
    y = jax.block_until_ready(y)

    y_ref = _reference(x, conv_w, conv_b)
    assert y.shape == (B, C_OUT, POOL_H, POOL_W), y.shape
    max_err = float(jnp.max(jnp.abs(y - y_ref)))
    assert jnp.allclose(y, y_ref, atol=1e-3, rtol=1e-3), f"mismatch vs reference: {max_err}"

    print("KERNEL_OK")
</pallas_src>

<mosaic_0001>
module attributes {stable_mosaic.version = 11 : i64} {
  func.func @_resize_graph_kernel(%arg0: i32, %arg1: memref<4x200x256xf32, #tpu.memory_space<vmem>>, %arg2: memref<200x512xf32, #tpu.memory_space<vmem>>, %arg3: memref<1x512xf32, #tpu.memory_space<vmem>>, %arg4: memref<16x512xf32, #tpu.memory_space<vmem>>) attributes {dimension_semantics = [#tpu.dimension_semantics<parallel>], iteration_bounds = array<i64: 1>, scalar_prefetch = 0 : i64, scratch_operands = 0 : i64, tpu.core_type = #tpu.core_type<tc>, window_params = [{transform_indices = @transform_0, window_bounds = array<i64: 4, 200, 256>}, {pipeline_mode = #tpu.pipeline_mode<synchronous>, transform_indices = @transform_1, window_bounds = array<i64: 200, 512>}, {pipeline_mode = #tpu.pipeline_mode<synchronous>, transform_indices = @transform_2, window_bounds = array<i64: 1, 512>}, {transform_indices = @transform_3, window_bounds = array<i64: 16, 512>}]} {
    %c0 = arith.constant 0 : index
    %c0_0 = arith.constant 0 : index
    %c0_1 = arith.constant 0 : index
    %0 = vector.load %arg1[%c0, %c0_0, %c0_1] : memref<4x200x256xf32, #tpu.memory_space<vmem>>, vector<4x200x64xf32>
    %cst = arith.constant dense<0.000000e+00> : vector<4x200xf32>
    %1 = vector.multi_reduction <add>, %0, %cst [2] : vector<4x200x64xf32> to vector<4x200xf32>
    %cst_2 = arith.constant 6.400000e+01 : f32
    %2 = vector.broadcast %cst_2 : f32 to vector<4x200xf32>
    %3 = arith.divf %1, %2 : vector<4x200xf32>
    %c0_3 = arith.constant 0 : index
    %c0_4 = arith.constant 0 : index
    %c64 = arith.constant 64 : index
    %4 = vector.load %arg1[%c0_3, %c0_4, %c64] : memref<4x200x256xf32, #tpu.memory_space<vmem>>, vector<4x200x64xf32>
    %cst_5 = arith.constant dense<0.000000e+00> : vector<4x200xf32>
    %5 = vector.multi_reduction <add>, %4, %cst_5 [2] : vector<4x200x64xf32> to vector<4x200xf32>
    %cst_6 = arith.constant 6.400000e+01 : f32
    %6 = vector.broadcast %cst_6 : f32 to vector<4x200xf32>
    %7 = arith.divf %5, %6 : vector<4x200xf32>
    %c0_7 = arith.constant 0 : index
    %c0_8 = arith.constant 0 : index
    %c128 = arith.constant 128 : index
    %8 = vector.load %arg1[%c0_7, %c0_8, %c128] : memref<4x200x256xf32, #tpu.memory_space<vmem>>, vector<4x200x64xf32>
    %cst_9 = arith.constant dense<0.000000e+00> : vector<4x200xf32>
    %9 = vector.multi_reduction <add>, %8, %cst_9 [2] : vector<4x200x64xf32> to vector<4x200xf32>
    %cst_10 = arith.constant 6.400000e+01 : f32
    %10 = vector.broadcast %cst_10 : f32 to vector<4x200xf32>
    %11 = arith.divf %9, %10 : vector<4x200xf32>
    %c0_11 = arith.constant 0 : index
    %c0_12 = arith.constant 0 : index
    %c192 = arith.constant 192 : index
    %12 = vector.load %arg1[%c0_11, %c0_12, %c192] : memref<4x200x256xf32, #tpu.memory_space<vmem>>, vector<4x200x64xf32>
    %cst_13 = arith.constant dense<0.000000e+00> : vector<4x200xf32>
    %13 = vector.multi_reduction <add>, %12, %cst_13 [2] : vector<4x200x64xf32> to vector<4x200xf32>
    %cst_14 = arith.constant 6.400000e+01 : f32
    %14 = vector.broadcast %cst_14 : f32 to vector<4x200xf32>
    %15 = arith.divf %13, %14 : vector<4x200xf32>
    %16 = vector.shape_cast %3 : vector<4x200xf32> to vector<4x1x200xf32>
    %17 = vector.shape_cast %7 : vector<4x200xf32> to vector<4x1x200xf32>
    %18 = vector.shape_cast %11 : vector<4x200xf32> to vector<4x1x200xf32>
    %19 = vector.shape_cast %15 : vector<4x200xf32> to vector<4x1x200xf32>
    %20 = tpu.concatenate %16, %17, %18, %19 in 1 : vector<4x1x200xf32>, vector<4x1x200xf32>, vector<4x1x200xf32>, vector<4x1x200xf32> -> vector<4x4x200xf32>
    %21 = vector.shape_cast %20 : vector<4x4x200xf32> to vector<16x200xf32>
    %c0_15 = arith.constant 0 : index
    %c0_16 = arith.constant 0 : index
    %22 = vector.load %arg2[%c0_15, %c0_16] : memref<200x512xf32, #tpu.memory_space<vmem>>, vector<200x512xf32>
    %cst_17 = arith.constant dense<0.000000e+00> : vector<16x512xf32>
    %23 = tpu.matmul %21, %22, %cst_17 {dimension_numbers = #tpu.dot_dimension_numbers<[1], [0], [0], [1], [0, 0, 1, 1], [], []>} : vector<16x200xf32>, vector<200x512xf32>, vector<16x512xf32> -> vector<16x512xf32>
    %c0_18 = arith.constant 0 : index
    %c0_19 = arith.constant 0 : index
    %24 = vector.load %arg3[%c0_18, %c0_19] : memref<1x512xf32, #tpu.memory_space<vmem>>, vector<1x512xf32>
    %25 = vector.broadcast %24 : vector<1x512xf32> to vector<16x512xf32>
    %26 = arith.addf %23, %25 : vector<16x512xf32>
    %c0_20 = arith.constant 0 : index
    %c0_21 = arith.constant 0 : index
    %27 = vector.load %arg4[%c0_20, %c0_21] : memref<16x512xf32, #tpu.memory_space<vmem>>, vector<16x512xf32>
    tpu.vector_store %arg4[%c0_20, %c0_21], %26 {strides = array<i32>} : memref<16x512xf32, #tpu.memory_space<vmem>>, vector<16x512xf32>,
    return
  }
  func.func @transform_0(%arg0: i32) -> (i32, i32, i32) {
    %c0_i32 = arith.constant 0 : i32
    %c0_i32_0 = arith.constant 0 : i32
    %c0_i32_1 = arith.constant 0 : i32
    return %arg0, %c0_i32, %c0_i32_0 : i32, i32, i32
  }
  func.func @transform_1(%arg0: i32) -> (i32, i32) {
    %c0_i32 = arith.constant 0 : i32
    %c0_i32_0 = arith.constant 0 : i32
    %c0_i32_1 = arith.constant 0 : i32
    return %c0_i32, %c0_i32_0 : i32, i32
  }
  func.func @transform_2(%arg0: i32) -> (i32, i32) {
    %c0_i32 = arith.constant 0 : i32
    %c0_i32_0 = arith.constant 0 : i32
    %c0_i32_1 = arith.constant 0 : i32
    return %c0_i32, %c0_i32_0 : i32, i32
  }
  func.func @transform_3(%arg0: i32) -> (i32, i32) {
    %c0_i32 = arith.constant 0 : i32
    %c0_i32_0 = arith.constant 0 : i32
    return %arg0, %c0_i32 : i32, i32
  }
}

</mosaic_0001>

<llo_original>
// kernel: tpu_custom_call.1
$region0: #{tpu_custom_call.1}
  #allocation0 [shape = 'u32[]', space=smem, size = 0x4, offset = 0x4, fixed_abs, tag = 'smem constant byte address 0x4 - core index']
  #allocation1 [shape = 'u32[144,128]{1,0:T(1,128)}', space=vmem, size = 0x12000, scoped, tag = 'internal scratch']
  %s0 = inlined_call_operand.hbm [shape: f32[4,200,256], index: 0, kind: input, shape index: {}]
  %s1 = inlined_call_operand.hbm [shape: f32[200,512], index: 1, kind: input, shape index: {}]
  %s2 = inlined_call_operand.vmem [shape: f32[1,512], index: 2, kind: input, shape index: {}]
  %s3 = inlined_call_operand.hbm [shape: f32[16,512], index: 3, kind: output, shape index: {}]
  %s4 = sld [smem:[#allocation0]]
  $region30: #{tpu_custom_call.1} parent=0
    _
  %s6 = ssub.s32 1, %s4
  %s7 = scalar_select 0, %s6, %s4
  $region1: #{tpu_custom_call.1} parent=0
    #allocation2 [shape = 'u8[819200]{0}', space=vmem, size = 0xc8000, scoped, tag = 'input window, operand 0, single buffered']
    #allocation3 [shape = 's32[1]{0}', space=sflag, size = 0x4, scoped, tag = 'scoped memory for tpu_custom_call.1']
    #allocation4 [shape = 's32[1]{0}', space=sflag, size = 0x4, scoped, tag = 'scoped memory for tpu_custom_call.1']
    #allocation5 [shape = 'u8[409600]{0}', space=vmem, size = 0x64000, scoped, tag = 'input window, operand 1, single buffered']
    #allocation6 [shape = 's32[1]{0}', space=sflag, size = 0x4, scoped, tag = 'scoped memory for tpu_custom_call.1']
    #allocation7 [shape = 'u8[32768]{0}', space=vmem, size = 0x8000, scoped, tag = 'output window, operand 0, single buffered']
    %8 = vsyncpa [#allocation3], 0
    %9 = vsyncpa [#allocation6], 0
    %10 = vsyncpa [#allocation4], 0
    // Predicated region
    $region2: #{tpu_custom_call.1} parent=1 // pred_check
      _
    $region3: #{tpu_custom_call.1} parent=1 // pred_check_branch
      %12 = sbr.rel (0) target = $region5
    $region4: #{tpu_custom_call.1} parent=1 // pred_region
      %s14 = ssub.s32 25600, 25600
      %15 = vsyncadd [#allocation3], %s14
      %s16 = sshll.u32 [#allocation2], 4
      %s17 = int_to_ptr.vmem [resolvable:$true] %s16
      %22 = dma.hbm_to_vmem [thread:$0]  %s0, 25600, %s17, [#allocation3], 256, 256, 16
    $region5: #{tpu_custom_call.1} parent=1 // pred_fallthru
      _
    // Predicated region
    $region6: #{tpu_custom_call.1} parent=1 // pred_check
      _
    $region7: #{tpu_custom_call.1} parent=1 // pred_check_branch
      %24 = sbr.rel (0) target = $region9
    $region8: #{tpu_custom_call.1} parent=1 // pred_region
      %s26 = ssub.s32 12800, 12800
      %27 = vsyncadd [#allocation6], %s26
      %s28 = sshll.u32 [#allocation5], 4
      %s29 = int_to_ptr.vmem [resolvable:$true] %s28
      %34 = dma.hbm_to_vmem [thread:$0]  %s1, 12800, %s29, [#allocation6], 512, 512, 32
    $region9: #{tpu_custom_call.1} parent=1 // pred_fallthru
      _
    // Predicated region
    $region10: #{tpu_custom_call.1} parent=1 // pred_check
      _
    $region11: #{tpu_custom_call.1} parent=1 // pred_check_branch
      %36 = sbr.rel (0) target = $region13
    $region12: #{tpu_custom_call.1} parent=1 // pred_region
      _
    $region13: #{tpu_custom_call.1} parent=1 // pred_fallthru
      _
    // Predicated region
    $region14: #{tpu_custom_call.1} parent=1 // pred_check
      _
    $region15: #{tpu_custom_call.1} parent=1 // pred_check_branch
      %38 = sbr.rel (0) target = $region17
    $region16: #{tpu_custom_call.1} parent=1 // pred_region
      %39 = dma.done [#allocation3], 25600
    $region17: #{tpu_custom_call.1} parent=1 // pred_fallthru
      _
    // Predicated region
    $region18: #{tpu_custom_call.1} parent=1 // pred_check
      _
    $region19: #{tpu_custom_call.1} parent=1 // pred_check_branch
      %41 = sbr.rel (0) target = $region21
    $region20: #{tpu_custom_call.1} parent=1 // pred_region
      %42 = dma.done [#allocation6], 12800
    $region21: #{tpu_custom_call.1} parent=1 // pred_fallthru
      _
    %v43 = vld [vmem:[#allocation2] sm:$0xff]
    %v44 = vld [vmem:[#allocation2 + $0x10] sm:$0xff]
    %v45 = vld [vmem:[#allocation2 + $0x20] sm:$0xff]
    %v46 = vld [vmem:[#allocation2 + $0x30] sm:$0xff]
    %v47 = vld [vmem:[#allocation2 + $0x40] sm:$0xff]
    %v48 = vld [vmem:[#allocation2 + $0x50] sm:$0xff]
    %v49 = vld [vmem:[#allocation2 + $0x60] sm:$0xff]
    %v50 = vld [vmem:[#allocation2 + $0x70] sm:$0xff]
    %v51 = vld [vmem:[#allocation2 + $0x80] sm:$0xff]
    %v52 = vld [vmem:[#allocation2 + $0x90] sm:$0xff]
    %v53 = vld [vmem:[#allocation2 + $0xa0] sm:$0xff]
    %v54 = vld [vmem:[#allocation2 + $0xb0] sm:$0xff]
    %v55 = vld [vmem:[#allocation2 + $0xc0] sm:$0xff]
    %v56 = vld [vmem:[#allocation2 + $0xd0] sm:$0xff]
    %v57 = vld [vmem:[#allocation2 + $0xe0] sm:$0xff]
    %v58 = vld [vmem:[#allocation2 + $0xf0] sm:$0xff]
    %v59 = vld [vmem:[#allocation2 + $0x100] sm:$0xff]
    %v60 = vld [vmem:[#allocation2 + $0x110] sm:$0xff]
    %v61 = vld [vmem:[#allocation2 + $0x120] sm:$0xff]
    %v62 = vld [vmem:[#allocation2 + $0x130] sm:$0xff]
    %v63 = vld [vmem:[#allocation2 + $0x140] sm:$0xff]
    %v64 = vld [vmem:[#allocation2 + $0x150] sm:$0xff]
    %v65 = vld [vmem:[#allocation2 + $0x160] sm:$0xff]
    %v66 = vld [vmem:[#allocation2 + $0x170] sm:$0xff]
    %v67 = vld [vmem:[#allocation2 + $0x180] sm:$0xff]
    %v68 = vld [vmem:[#allocation2 + $0x190] sm:$0xff]
    %v69 = vld [vmem:[#allocation2 + $0x1a0] sm:$0xff]
    %v70 = vld [vmem:[#allocation2 + $0x1b0] sm:$0xff]
    %v71 = vld [vmem:[#allocation2 + $0x1c0] sm:$0xff]
    %v72 = vld [vmem:[#allocation2 + $0x1d0] sm:$0xff]
    %v73 = vld [vmem:[#allocation2 + $0x1e0] sm:$0xff]
    %v74 = vld [vmem:[#allocation2 + $0x1f0] sm:$0xff]
    %v75 = vld [vmem:[#allocation2 + $0x200] sm:$0xff]
    %v76 = vld [vmem:[#allocation2 + $0x210] sm:$0xff]
    %v77 = vld [vmem:[#allocation2 + $0x220] sm:$0xff]
    %v78 = vld [vmem:[#allocation2 + $0x230] sm:$0xff]
    %v79 = vld [vmem:[#allocation2 + $0x240] sm:$0xff]
    %v80 = vld [vmem:[#allocation2 + $0x250] sm:$0xff]
    %v81 = vld [vmem:[#allocation2 + $0x260] sm:$0xff]
    %v82 = vld [vmem:[#allocation2 + $0x270] sm:$0xff]
    %v83 = vld [vmem:[#allocation2 + $0x280] sm:$0xff]
    %v84 = vld [vmem:[#allocation2 + $0x290] sm:$0xff]
    %v85 = vld [vmem:[#allocation2 + $0x2a0] sm:$0xff]
    %v86 = vld [vmem:[#allocation2 + $0x2b0] sm:$0xff]
    %v87 = vld [vmem:[#allocation2 + $0x2c0] sm:$0xff]
    %v88 = vld [vmem:[#allocation2 + $0x2d0] sm:$0xff]
    %v89 = vld [vmem:[#allocation2 + $0x2e0] sm:$0xff]
    %v90 = vld [vmem:[#allocation2 + $0x2f0] sm:$0xff]
    %v91 = vld [vmem:[#allocation2 + $0x300] sm:$0xff]
    %v92 = vld [vmem:[#allocation2 + $0x310] sm:$0xff]
    %v93 = vld [vmem:[#allocation2 + $0x320] sm:$0xff]
    %v94 = vld [vmem:[#allocation2 + $0x330] sm:$0xff]
    %v95 = vld [vmem:[#allocation2 + $0x340] sm:$0xff]
    %v96 = vld [vmem:[#allocation2 + $0x350] sm:$0xff]
    %v97 = vld [vmem:[#allocation2 + $0x360] sm:$0xff]
    %v98 = vld [vmem:[#allocation2 + $0x370] sm:$0xff]
    %v99 = vld [vmem:[#allocation2 + $0x380] sm:$0xff]
    %v100 = vld [vmem:[#allocation2 + $0x390] sm:$0xff]
    %v101 = vld [vmem:[#allocation2 + $0x3a0] sm:$0xff]
    %v102 = vld [vmem:[#allocation2 + $0x3b0] sm:$0xff]
    %v103 = vld [vmem:[#allocation2 + $0x3c0] sm:$0xff]
    %v104 = vld [vmem:[#allocation2 + $0x3d0] sm:$0xff]
    %v105 = vld [vmem:[#allocation2 + $0x3e0] sm:$0xff]
    %v106 = vld [vmem:[#allocation2 + $0x3f0] sm:$0xff]
    %v107 = vld [vmem:[#allocation2 + $0x400] sm:$0xff]
    %v108 = vld [vmem:[#allocation2 + $0x410] sm:$0xff]
    %v109 = vld [vmem:[#allocation2 + $0x420] sm:$0xff]
    %v110 = vld [vmem:[#allocation2 + $0x430] sm:$0xff]
    %v111 = vld [vmem:[#allocation2 + $0x440] sm:$0xff]
    %v112 = vld [vmem:[#allocation2 + $0x450] sm:$0xff]
    %v113 = vld [vmem:[#allocation2 + $0x460] sm:$0xff]
    %v114 = vld [vmem:[#allocation2 + $0x470] sm:$0xff]
    %v115 = vld [vmem:[#allocation2 + $0x480] sm:$0xff]
    %v116 = vld [vmem:[#allocation2 + $0x490] sm:$0xff]
    %v117 = vld [vmem:[#allocation2 + $0x4a0] sm:$0xff]
    %v118 = vld [vmem:[#allocation2 + $0x4b0] sm:$0xff]
    %v119 = vld [vmem:[#allocation2 + $0x4c0] sm:$0xff]
    %v120 = vld [vmem:[#allocation2 + $0x4d0] sm:$0xff]
    %v121 = vld [vmem:[#allocation2 + $0x4e0] sm:$0xff]
    %v122 = vld [vmem:[#allocation2 + $0x4f0] sm:$0xff]
    %v123 = vld [vmem:[#allocation2 + $0x500] sm:$0xff]
    %v124 = vld [vmem:[#allocation2 + $0x510] sm:$0xff]
    %v125 = vld [vmem:[#allocation2 + $0x520] sm:$0xff]
    %v126 = vld [vmem:[#allocation2 + $0x530] sm:$0xff]
    %v127 = vld [vmem:[#allocation2 + $0x540] sm:$0xff]
    %v128 = vld [vmem:[#allocation2 + $0x550] sm:$0xff]
    %v129 = vld [vmem:[#allocation2 + $0x560] sm:$0xff]
    %v130 = vld [vmem:[#allocation2 + $0x570] sm:$0xff]
    %v131 = vld [vmem:[#allocation2 + $0x580] sm:$0xff]
    %v132 = vld [vmem:[#allocation2 + $0x590] sm:$0xff]
    %v133 = vld [vmem:[#allocation2 + $0x5a0] sm:$0xff]
    %v134 = vld [vmem:[#allocation2 + $0x5b0] sm:$0xff]
    %v135 = vld [vmem:[#allocation2 + $0x5c0] sm:$0xff]
    %v136 = vld [vmem:[#allocation2 + $0x5d0] sm:$0xff]
    %v137 = vld [vmem:[#allocation2 + $0x5e0] sm:$0xff]
    %v138 = vld [vmem:[#allocation2 + $0x5f0] sm:$0xff]
    %v139 = vld [vmem:[#allocation2 + $0x600] sm:$0xff]
    %v140 = vld [vmem:[#allocation2 + $0x610] sm:$0xff]
    %v141 = vld [vmem:[#allocation2 + $0x620] sm:$0xff]
    %v142 = vld [vmem:[#allocation2 + $0x630] sm:$0xff]
    %vm143 = vcmask 523264
    %v144 = vsel %vm143, %v43, 0.0
    %145 = vadd.xlane.f32.xlu0 %v144
    %v146 = vpop.xlane.xlu0 %145
    %v147 = vsel %vm143, %v44, 0.0
    %148 = vadd.xlane.f32.xlu0 %v147
    %v149 = vpop.xlane.xlu0 %148
    %v150 = vsel %vm143, %v45, 0.0
    %151 = vadd.xlane.f32.xlu0 %v150
    %v152 = vpop.xlane.xlu0 %151
    %v153 = vsel %vm143, %v46, 0.0
    %154 = vadd.xlane.f32.xlu0 %v153
    %v155 = vpop.xlane.xlu0 %154
    %v156 = vsel %vm143, %v47, 0.0
    %157 = vadd.xlane.f32.xlu0 %v156
    %v158 = vpop.xlane.xlu0 %157
    %v159 = vsel %vm143, %v48, 0.0
    %160 = vadd.xlane.f32.xlu0 %v159
    %v161 = vpop.xlane.xlu0 %160
    %v162 = vsel %vm143, %v49, 0.0
    %163 = vadd.xlane.f32.xlu0 %v162
    %v164 = vpop.xlane.xlu0 %163
    %v165 = vsel %vm143, %v50, 0.0
    %166 = vadd.xlane.f32.xlu0 %v165
    %v167 = vpop.xlane.xlu0 %166
    %v168 = vsel %vm143, %v51, 0.0
    %169 = vadd.xlane.f32.xlu0 %v168
    %v170 = vpop.xlane.xlu0 %169
    %v171 = vsel %vm143, %v52, 0.0
    %172 = vadd.xlane.f32.xlu0 %v171
    %v173 = vpop.xlane.xlu0 %172
    %v174 = vsel %vm143, %v53, 0.0
    %175 = vadd.xlane.f32.xlu0 %v174
    %v176 = vpop.xlane.xlu0 %175
    %v177 = vsel %vm143, %v54, 0.0
    %178 = vadd.xlane.f32.xlu0 %v177
    %v179 = vpop.xlane.xlu0 %178
    %v180 = vsel %vm143, %v55, 0.0
    %181 = vadd.xlane.f32.xlu0 %v180
    %v182 = vpop.xlane.xlu0 %181
    %v183 = vsel %vm143, %v56, 0.0
    %184 = vadd.xlane.f32.xlu0 %v183
    %v185 = vpop.xlane.xlu0 %184
    %v186 = vsel %vm143, %v57, 0.0
    %187 = vadd.xlane.f32.xlu0 %v186
    %v188 = vpop.xlane.xlu0 %187
    %v189 = vsel %vm143, %v58, 0.0
    %190 = vadd.xlane.f32.xlu0 %v189
    %v191 = vpop.xlane.xlu0 %190
    %v192 = vsel %vm143, %v59, 0.0
    %193 = vadd.xlane.f32.xlu0 %v192
    %v194 = vpop.xlane.xlu0 %193
    %v195 = vsel %vm143, %v60, 0.0
    %196 = vadd.xlane.f32.xlu0 %v195
    %v197 = vpop.xlane.xlu0 %196
    %v198 = vsel %vm143, %v61, 0.0
    %199 = vadd.xlane.f32.xlu0 %v198
    %v200 = vpop.xlane.xlu0 %199
    %v201 = vsel %vm143, %v62, 0.0
    %202 = vadd.xlane.f32.xlu0 %v201
    %v203 = vpop.xlane.xlu0 %202
    %v204 = vsel %vm143, %v63, 0.0
    %205 = vadd.xlane.f32.xlu0 %v204
    %v206 = vpop.xlane.xlu0 %205
    %v207 = vsel %vm143, %v64, 0.0
    %208 = vadd.xlane.f32.xlu0 %v207
    %v209 = vpop.xlane.xlu0 %208
    %v210 = vsel %vm143, %v65, 0.0
    %211 = vadd.xlane.f32.xlu0 %v210
    %v212 = vpop.xlane.xlu0 %211
    %v213 = vsel %vm143, %v66, 0.0
    %214 = vadd.xlane.f32.xlu0 %v213
    %v215 = vpop.xlane.xlu0 %214
    %v216 = vsel %vm143, %v67, 0.0
    %217 = vadd.xlane.f32.xlu0 %v216
    %v218 = vpop.xlane.xlu0 %217
    %v219 = vsel %vm143, %v68, 0.0
    %220 = vadd.xlane.f32.xlu0 %v219
    %v221 = vpop.xlane.xlu0 %220
    %v222 = vsel %vm143, %v69, 0.0
    %223 = vadd.xlane.f32.xlu0 %v222
    %v224 = vpop.xlane.xlu0 %223
    %v225 = vsel %vm143, %v70, 0.0
    %226 = vadd.xlane.f32.xlu0 %v225
    %v227 = vpop.xlane.xlu0 %226
    %v228 = vsel %vm143, %v71, 0.0
    %229 = vadd.xlane.f32.xlu0 %v228
    %v230 = vpop.xlane.xlu0 %229
    %v231 = vsel %vm143, %v72, 0.0
    %232 = vadd.xlane.f32.xlu0 %v231
    %v233 = vpop.xlane.xlu0 %232
    %v234 = vsel %vm143, %v73, 0.0
    %235 = vadd.xlane.f32.xlu0 %v234
    %v236 = vpop.xlane.xlu0 %235
    %v237 = vsel %vm143, %v74, 0.0
    %238 = vadd.xlane.f32.xlu0 %v237
    %v239 = vpop.xlane.xlu0 %238
    %v240 = vsel %vm143, %v75, 0.0
    %241 = vadd.xlane.f32.xlu0 %v240
    %v242 = vpop.xlane.xlu0 %241
    %v243 = vsel %vm143, %v76, 0.0
    %244 = vadd.xlane.f32.xlu0 %v243
    %v245 = vpop.xlane.xlu0 %244
    %v246 = vsel %vm143, %v77, 0.0
    %247 = vadd.xlane.f32.xlu0 %v246
    %v248 = vpop.xlane.xlu0 %247
    %v249 = vsel %vm143, %v78, 0.0
    %250 = vadd.xlane.f32.xlu0 %v249
    %v251 = vpop.xlane.xlu0 %250
    %v252 = vsel %vm143, %v79, 0.0
    %253 = vadd.xlane.f32.xlu0 %v252
    %v254 = vpop.xlane.xlu0 %253
    %v255 = vsel %vm143, %v80, 0.0
    %256 = vadd.xlane.f32.xlu0 %v255
    %v257 = vpop.xlane.xlu0 %256
    %v258 = vsel %vm143, %v81, 0.0
    %259 = vadd.xlane.f32.xlu0 %v258
    %v260 = vpop.xlane.xlu0 %259
    %v261 = vsel %vm143, %v82, 0.0
    %262 = vadd.xlane.f32.xlu0 %v261
    %v263 = vpop.xlane.xlu0 %262
    %v264 = vsel %vm143, %v83, 0.0
    %265 = vadd.xlane.f32.xlu0 %v264
    %v266 = vpop.xlane.xlu0 %265
    %v267 = vsel %vm143, %v84, 0.0
    %268 = vadd.xlane.f32.xlu0 %v267
    %v269 = vpop.xlane.xlu0 %268
    %v270 = vsel %vm143, %v85, 0.0
    %271 = vadd.xlane.f32.xlu0 %v270
    %v272 = vpop.xlane.xlu0 %271
    %v273 = vsel %vm143, %v86, 0.0
    %274 = vadd.xlane.f32.xlu0 %v273
    %v275 = vpop.xlane.xlu0 %274
    %v276 = vsel %vm143, %v87, 0.0
    %277 = vadd.xlane.f32.xlu0 %v276
    %v278 = vpop.xlane.xlu0 %277
    %v279 = vsel %vm143, %v88, 0.0
    %280 = vadd.xlane.f32.xlu0 %v279
    %v281 = vpop.xlane.xlu0 %280
    %v282 = vsel %vm143, %v89, 0.0
    %283 = vadd.xlane.f32.xlu0 %v282
    %v284 = vpop.xlane.xlu0 %283
    %v285 = vsel %vm143, %v90, 0.0
    %286 = vadd.xlane.f32.xlu0 %v285
    %v287 = vpop.xlane.xlu0 %286
    %v288 = vsel %vm143, %v91, 0.0
    %289 = vadd.xlane.f32.xlu0 %v288
    %v290 = vpop.xlane.xlu0 %289
    %v291 = vsel %vm143, %v92, 0.0
    %292 = vadd.xlane.f32.xlu0 %v291
    %v293 = vpop.xlane.xlu0 %292
    %v294 = vsel %vm143, %v93, 0.0
    %295 = vadd.xlane.f32.xlu0 %v294
    %v296 = vpop.xlane.xlu0 %295
    %v297 = vsel %vm143, %v94, 0.0
    %298 = vadd.xlane.f32.xlu0 %v297
    %v299 = vpop.xlane.xlu0 %298
    %v300 = vsel %vm143, %v95, 0.0
    %301 = vadd.xlane.f32.xlu0 %v300
    %v302 = vpop.xlane.xlu0 %301
    %v303 = vsel %vm143, %v96, 0.0
    %304 = vadd.xlane.f32.xlu0 %v303
    %v305 = vpop.xlane.xlu0 %304
    %v306 = vsel %vm143, %v97, 0.0
    %307 = vadd.xlane.f32.xlu0 %v306
    %v308 = vpop.xlane.xlu0 %307
    %v309 = vsel %vm143, %v98, 0.0
    %310 = vadd.xlane.f32.xlu0 %v309
    %v311 = vpop.xlane.xlu0 %310
    %v312 = vsel %vm143, %v99, 0.0
    %313 = vadd.xlane.f32.xlu0 %v312
    %v314 = vpop.xlane.xlu0 %313
    %v315 = vsel %vm143, %v100, 0.0
    %316 = vadd.xlane.f32.xlu0 %v315
    %v317 = vpop.xlane.xlu0 %316
    %v318 = vsel %vm143, %v101, 0.0
    %319 = vadd.xlane.f32.xlu0 %v318
    %v320 = vpop.xlane.xlu0 %319
    %v321 = vsel %vm143, %v102, 0.0
    %322 = vadd.xlane.f32.xlu0 %v321
    %v323 = vpop.xlane.xlu0 %322
    %v324 = vsel %vm143, %v103, 0.0
    %325 = vadd.xlane.f32.xlu0 %v324
    %v326 = vpop.xlane.xlu0 %325
    %v327 = vsel %vm143, %v104, 0.0
    %328 = vadd.xlane.f32.xlu0 %v327
    %v329 = vpop.xlane.xlu0 %328
    %v330 = vsel %vm143, %v105, 0.0
    %331 = vadd.xlane.f32.xlu0 %v330
    %v332 = vpop.xlane.xlu0 %331
    %v333 = vsel %vm143, %v106, 0.0
    %334 = vadd.xlane.f32.xlu0 %v333
    %v335 = vpop.xlane.xlu0 %334
    %v336 = vsel %vm143, %v107, 0.0
    %337 = vadd.xlane.f32.xlu0 %v336
    %v338 = vpop.xlane.xlu0 %337
    %v339 = vsel %vm143, %v108, 0.0
    %340 = vadd.xlane.f32.xlu0 %v339
    %v341 = vpop.xlane.xlu0 %340
    %v342 = vsel %vm143, %v109, 0.0
    %343 = vadd.xlane.f32.xlu0 %v342
    %v344 = vpop.xlane.xlu0 %343
    %v345 = vsel %vm143, %v110, 0.0
    %346 = vadd.xlane.f32.xlu0 %v345
    %v347 = vpop.xlane.xlu0 %346
    %v348 = vsel %vm143, %v111, 0.0
    %349 = vadd.xlane.f32.xlu0 %v348
    %v350 = vpop.xlane.xlu0 %349
    %v351 = vsel %vm143, %v112, 0.0
    %352 = vadd.xlane.f32.xlu0 %v351
    %v353 = vpop.xlane.xlu0 %352
    %v354 = vsel %vm143, %v113, 0.0
    %355 = vadd.xlane.f32.xlu0 %v354
    %v356 = vpop.xlane.xlu0 %355
    %v357 = vsel %vm143, %v114, 0.0
    %358 = vadd.xlane.f32.xlu0 %v357
    %v359 = vpop.xlane.xlu0 %358
    %v360 = vsel %vm143, %v115, 0.0
    %361 = vadd.xlane.f32.xlu0 %v360
    %v362 = vpop.xlane.xlu0 %361
    %v363 = vsel %vm143, %v116, 0.0
    %364 = vadd.xlane.f32.xlu0 %v363
    %v365 = vpop.xlane.xlu0 %364
    %v366 = vsel %vm143, %v117, 0.0
    %367 = vadd.xlane.f32.xlu0 %v366
    %v368 = vpop.xlane.xlu0 %367
    %v369 = vsel %vm143, %v118, 0.0
    %370 = vadd.xlane.f32.xlu0 %v369
    %v371 = vpop.xlane.xlu0 %370
    %v372 = vsel %vm143, %v119, 0.0
    %373 = vadd.xlane.f32.xlu0 %v372
    %v374 = vpop.xlane.xlu0 %373
    %v375 = vsel %vm143, %v120, 0.0
    %376 = vadd.xlane.f32.xlu0 %v375
    %v377 = vpop.xlane.xlu0 %376
    %v378 = vsel %vm143, %v121, 0.0
    %379 = vadd.xlane.f32.xlu0 %v378
    %v380 = vpop.xlane.xlu0 %379
    %v381 = vsel %vm143, %v122, 0.0
    %382 = vadd.xlane.f32.xlu0 %v381
    %v383 = vpop.xlane.xlu0 %382
    %v384 = vsel %vm143, %v123, 0.0
    %385 = vadd.xlane.f32.xlu0 %v384
    %v386 = vpop.xlane.xlu0 %385
    %v387 = vsel %vm143, %v124, 0.0
    %388 = vadd.xlane.f32.xlu0 %v387
    %v389 = vpop.xlane.xlu0 %388
    %v390 = vsel %vm143, %v125, 0.0
    %391 = vadd.xlane.f32.xlu0 %v390
    %v392 = vpop.xlane.xlu0 %391
    %v393 = vsel %vm143, %v126, 0.0
    %394 = vadd.xlane.f32.xlu0 %v393
    %v395 = vpop.xlane.xlu0 %394
    %v396 = vsel %vm143, %v127, 0.0
    %397 = vadd.xlane.f32.xlu0 %v396
    %v398 = vpop.xlane.xlu0 %397
    %v399 = vsel %vm143, %v128, 0.0
    %400 = vadd.xlane.f32.xlu0 %v399
    %v401 = vpop.xlane.xlu0 %400
    %v402 = vsel %vm143, %v129, 0.0
    %403 = vadd.xlane.f32.xlu0 %v402
    %v404 = vpop.xlane.xlu0 %403
    %v405 = vsel %vm143, %v130, 0.0
    %406 = vadd.xlane.f32.xlu0 %v405
    %v407 = vpop.xlane.xlu0 %406
    %v408 = vsel %vm143, %v131, 0.0
    %409 = vadd.xlane.f32.xlu0 %v408
    %v410 = vpop.xlane.xlu0 %409
    %v411 = vsel %vm143, %v132, 0.0
    %412 = vadd.xlane.f32.xlu0 %v411
    %v413 = vpop.xlane.xlu0 %412
    %v414 = vsel %vm143, %v133, 0.0
    %415 = vadd.xlane.f32.xlu0 %v414
    %v416 = vpop.xlane.xlu0 %415
    %v417 = vsel %vm143, %v134, 0.0
    %418 = vadd.xlane.f32.xlu0 %v417
    %v419 = vpop.xlane.xlu0 %418
    %v420 = vsel %vm143, %v135, 0.0
    %421 = vadd.xlane.f32.xlu0 %v420
    %v422 = vpop.xlane.xlu0 %421
    %v423 = vsel %vm143, %v136, 0.0
    %424 = vadd.xlane.f32.xlu0 %v423
    %v425 = vpop.xlane.xlu0 %424
    %v426 = vsel %vm143, %v137, 0.0
    %427 = vadd.xlane.f32.xlu0 %v426
    %v428 = vpop.xlane.xlu0 %427
    %v429 = vsel %vm143, %v138, 0.0
    %430 = vadd.xlane.f32.xlu0 %v429
    %v431 = vpop.xlane.xlu0 %430
    %v432 = vsel %vm143, %v139, 0.0
    %433 = vadd.xlane.f32.xlu0 %v432
    %v434 = vpop.xlane.xlu0 %433
    %v435 = vsel %vm143, %v140, 0.0
    %436 = vadd.xlane.f32.xlu0 %v435
    %v437 = vpop.xlane.xlu0 %436
    %v438 = vsel %vm143, %v141, 0.0
    %439 = vadd.xlane.f32.xlu0 %v438
    %v440 = vpop.xlane.xlu0 %439
    %v441 = vsel %vm143, %v142, 0.0
    %442 = vadd.xlane.f32.xlu0 %v441
    %v443 = vpop.xlane.xlu0 %442
    %v444 = vrcp.pop 64.0
    %v445 = vmul.f32 %v146, %v444
    %v446 = vmul.f32 %v149, %v444
    %v447 = vmul.f32 %v152, %v444
    %v448 = vmul.f32 %v155, %v444
    %v449 = vmul.f32 %v158, %v444
    %v450 = vmul.f32 %v161, %v444
    %v451 = vmul.f32 %v164, %v444
    %v452 = vmul.f32 %v167, %v444
    %v453 = vmul.f32 %v170, %v444
    %v454 = vmul.f32 %v173, %v444
    %v455 = vmul.f32 %v176, %v444
    %v456 = vmul.f32 %v179, %v444
    %v457 = vmul.f32 %v182, %v444
    %v458 = vmul.f32 %v185, %v444
    %v459 = vmul.f32 %v188, %v444
    %v460 = vmul.f32 %v191, %v444
    %v461 = vmul.f32 %v194, %v444
    %v462 = vmul.f32 %v197, %v444
    %v463 = vmul.f32 %v200, %v444
    %v464 = vmul.f32 %v203, %v444
    %v465 = vmul.f32 %v206, %v444
    %v466 = vmul.f32 %v209, %v444
    %v467 = vmul.f32 %v212, %v444
    %v468 = vmul.f32 %v215, %v444
    %v469 = vmul.f32 %v218, %v444
    %v470 = vmul.f32 %v221, %v444
    %v471 = vmul.f32 %v224, %v444
    %v472 = vmul.f32 %v227, %v444
    %v473 = vmul.f32 %v230, %v444
    %v474 = vmul.f32 %v233, %v444
    %v475 = vmul.f32 %v236, %v444
    %v476 = vmul.f32 %v239, %v444
    %v477 = vmul.f32 %v242, %v444
    %v478 = vmul.f32 %v245, %v444
    %v479 = vmul.f32 %v248, %v444
    %v480 = vmul.f32 %v251, %v444
    %v481 = vmul.f32 %v254, %v444
    %v482 = vmul.f32 %v257, %v444
    %v483 = vmul.f32 %v260, %v444
    %v484 = vmul.f32 %v263, %v444
    %v485 = vmul.f32 %v266, %v444
    %v486 = vmul.f32 %v269, %v444
    %v487 = vmul.f32 %v272, %v444
    %v488 = vmul.f32 %v275, %v444
    %v489 = vmul.f32 %v278, %v444
    %v490 = vmul.f32 %v281, %v444
    %v491 = vmul.f32 %v284, %v444
    %v492 = vmul.f32 %v287, %v444
    %v493 = vmul.f32 %v290, %v444
    %v494 = vmul.f32 %v293, %v444
    %v495 = vmul.f32 %v296, %v444
    %v496 = vmul.f32 %v299, %v444
    %v497 = vmul.f32 %v302, %v444
    %v498 = vmul.f32 %v305, %v444
    %v499 = vmul.f32 %v308, %v444
    %v500 = vmul.f32 %v311, %v444
    %v501 = vmul.f32 %v314, %v444
    %v502 = vmul.f32 %v317, %v444
    %v503 = vmul.f32 %v320, %v444
    %v504 = vmul.f32 %v323, %v444
    %v505 = vmul.f32 %v326, %v444
    %v506 = vmul.f32 %v329, %v444
    %v507 = vmul.f32 %v332, %v444
    %v508 = vmul.f32 %v335, %v444
    %v509 = vmul.f32 %v338, %v444
    %v510 = vmul.f32 %v341, %v444
    %v511 = vmul.f32 %v344, %v444
    %v512 = vmul.f32 %v347, %v444
    %v513 = vmul.f32 %v350, %v444
    %v514 = vmul.f32 %v353, %v444
    %v515 = vmul.f32 %v356, %v444
    %v516 = vmul.f32 %v359, %v444
    %v517 = vmul.f32 %v362, %v444
    %v518 = vmul.f32 %v365, %v444
    %v519 = vmul.f32 %v368, %v444
    %v520 = vmul.f32 %v371, %v444
    %v521 = vmul.f32 %v374, %v444
    %v522 = vmul.f32 %v377, %v444
    %v523 = vmul.f32 %v380, %v444
    %v524 = vmul.f32 %v383, %v444
    %v525 = vmul.f32 %v386, %v444
    %v526 = vmul.f32 %v389, %v444
    %v527 = vmul.f32 %v392, %v444
    %v528 = vmul.f32 %v395, %v444
    %v529 = vmul.f32 %v398, %v444
    %v530 = vmul.f32 %v401, %v444
    %v531 = vmul.f32 %v404, %v444
    %v532 = vmul.f32 %v407, %v444
    %v533 = vmul.f32 %v410, %v444
    %v534 = vmul.f32 %v413, %v444
    %v535 = vmul.f32 %v416, %v444
    %v536 = vmul.f32 %v419, %v444
    %v537 = vmul.f32 %v422, %v444
    %v538 = vmul.f32 %v425, %v444
    %v539 = vmul.f32 %v428, %v444
    %v540 = vmul.f32 %v431, %v444
    %v541 = vmul.f32 %v434, %v444
    %v542 = vmul.f32 %v437, %v444
    %v543 = vmul.f32 %v440, %v444
    %v544 = vmul.f32 %v443, %v444
    %645 = vrot.lane.b32.xlu0 %v43, 64
    %v646 = vpop.permute.xlu0 %645
    %647 = vrot.lane.b32.xlu0 %v44, 64
    %v648 = vpop.permute.xlu0 %647
    %649 = vrot.lane.b32.xlu0 %v45, 64
    %v650 = vpop.permute.xlu0 %649
    %651 = vrot.lane.b32.xlu0 %v46, 64
    %v652 = vpop.permute.xlu0 %651
    %653 = vrot.lane.b32.xlu0 %v47, 64
    %v654 = vpop.permute.xlu0 %653
    %655 = vrot.lane.b32.xlu0 %v48, 64
    %v656 = vpop.permute.xlu0 %655
    %657 = vrot.lane.b32.xlu0 %v49, 64
    %v658 = vpop.permute.xlu0 %657
    %659 = vrot.lane.b32.xlu0 %v50, 64
    %v660 = vpop.permute.xlu0 %659
    %661 = vrot.lane.b32.xlu0 %v51, 64
    %v662 = vpop.permute.xlu0 %661
    %663 = vrot.lane.b32.xlu0 %v52, 64
    %v664 = vpop.permute.xlu0 %663
    %665 = vrot.lane.b32.xlu0 %v53, 64
    %v666 = vpop.permute.xlu0 %665
    %667 = vrot.lane.b32.xlu0 %v54, 64
    %v668 = vpop.permute.xlu0 %667
    %669 = vrot.lane.b32.xlu0 %v55, 64
    %v670 = vpop.permute.xlu0 %669
    %671 = vrot.lane.b32.xlu0 %v56, 64
    %v672 = vpop.permute.xlu0 %671
    %673 = vrot.lane.b32.xlu0 %v57, 64
    %v674 = vpop.permute.xlu0 %673
    %675 = vrot.lane.b32.xlu0 %v58, 64
    %v676 = vpop.permute.xlu0 %675
    %677 = vrot.lane.b32.xlu0 %v59, 64
    %v678 = vpop.permute.xlu0 %677
    %679 = vrot.lane.b32.xlu0 %v60, 64
    %v680 = vpop.permute.xlu0 %679
    %681 = vrot.lane.b32.xlu0 %v61, 64
    %v682 = vpop.permute.xlu0 %681
    %683 = vrot.lane.b32.xlu0 %v62, 64
    %v684 = vpop.permute.xlu0 %683
    %685 = vrot.lane.b32.xlu0 %v63, 64
    %v686 = vpop.permute.xlu0 %685
    %687 = vrot.lane.b32.xlu0 %v64, 64
    %v688 = vpop.permute.xlu0 %687
    %689 = vrot.lane.b32.xlu0 %v65, 64
    %v690 = vpop.permute.xlu0 %689
    %691 = vrot.lane.b32.xlu0 %v66, 64
    %v692 = vpop.permute.xlu0 %691
    %693 = vrot.lane.b32.xlu0 %v67, 64
    %v694 = vpop.permute.xlu0 %693
    %695 = vrot.lane.b32.xlu0 %v68, 64
    %v696 = vpop.permute.xlu0 %695
    %697 = vrot.lane.b32.xlu0 %v69, 64
    %v698 = vpop.permute.xlu0 %697
    %699 = vrot.lane.b32.xlu0 %v70, 64
    %v700 = vpop.permute.xlu0 %699
    %701 = vrot.lane.b32.xlu0 %v71, 64
    %v702 = vpop.permute.xlu0 %701
    %703 = vrot.lane.b32.xlu0 %v72, 64
    %v704 = vpop.permute.xlu0 %703
    %705 = vrot.lane.b32.xlu0 %v73, 64
    %v706 = vpop.permute.xlu0 %705
    %707 = vrot.lane.b32.xlu0 %v74, 64
    %v708 = vpop.permute.xlu0 %707
    %709 = vrot.lane.b32.xlu0 %v75, 64
    %v710 = vpop.permute.xlu0 %709
    %711 = vrot.lane.b32.xlu0 %v76, 64
    %v712 = vpop.permute.xlu0 %711
    %713 = vrot.lane.b32.xlu0 %v77, 64
    %v714 = vpop.permute.xlu0 %713
    %715 = vrot.lane.b32.xlu0 %v78, 64
    %v716 = vpop.permute.xlu0 %715
    %717 = vrot.lane.b32.xlu0 %v79, 64
    %v718 = vpop.permute.xlu0 %717
    %719 = vrot.lane.b32.xlu0 %v80, 64
    %v720 = vpop.permute.xlu0 %719
    %721 = vrot.lane.b32.xlu0 %v81, 64
    %v722 = vpop.permute.xlu0 %721
    %723 = vrot.lane.b32.xlu0 %v82, 64
    %v724 = vpop.permute.xlu0 %723
    %725 = vrot.lane.b32.xlu0 %v83, 64
    %v726 = vpop.permute.xlu0 %725
    %727 = vrot.lane.b32.xlu0 %v84, 64
    %v728 = vpop.permute.xlu0 %727
    %729 = vrot.lane.b32.xlu0 %v85, 64
    %v730 = vpop.permute.xlu0 %729
    %731 = vrot.lane.b32.xlu0 %v86, 64
    %v732 = vpop.permute.xlu0 %731
    %733 = vrot.lane.b32.xlu0 %v87, 64
    %v734 = vpop.permute.xlu0 %733
    %735 = vrot.lane.b32.xlu0 %v88, 64
    %v736 = vpop.permute.xlu0 %735
    %737 = vrot.lane.b32.xlu0 %v89, 64
    %v738 = vpop.permute.xlu0 %737
    %739 = vrot.lane.b32.xlu0 %v90, 64
    %v740 = vpop.permute.xlu0 %739
    %741 = vrot.lane.b32.xlu0 %v91, 64
    %v742 = vpop.permute.xlu0 %741
    %743 = vrot.lane.b32.xlu0 %v92, 64
    %v744 = vpop.permute.xlu0 %743
    %745 = vrot.lane.b32.xlu0 %v93, 64
    %v746 = vpop.permute.xlu0 %745
    %747 = vrot.lane.b32.xlu0 %v94, 64
    %v748 = vpop.permute.xlu0 %747
    %749 = vrot.lane.b32.xlu0 %v95, 64
    %v750 = vpop.permute.xlu0 %749
    %751 = vrot.lane.b32.xlu0 %v96, 64
    %v752 = vpop.permute.xlu0 %751
    %753 = vrot.lane.b32.xlu0 %v97, 64
    %v754 = vpop.permute.xlu0 %753
    %755 = vrot.lane.b32.xlu0 %v98, 64
    %v756 = vpop.permute.xlu0 %755
    %757 = vrot.lane.b32.xlu0 %v99, 64
    %v758 = vpop.permute.xlu0 %757
    %759 = vrot.lane.b32.xlu0 %v100, 64
    %v760 = vpop.permute.xlu0 %759
    %761 = vrot.lane.b32.xlu0 %v101, 64
    %v762 = vpop.permute.xlu0 %761
    %763 = vrot.lane.b32.xlu0 %v102, 64
    %v764 = vpop.permute.xlu0 %763
    %765 = vrot.lane.b32.xlu0 %v103, 64
    %v766 = vpop.permute.xlu0 %765
    %767 = vrot.lane.b32.xlu0 %v104, 64
    %v768 = vpop.permute.xlu0 %767
    %769 = vrot.lane.b32.xlu0 %v105, 64
    %v770 = vpop.permute.xlu0 %769
    %771 = vrot.lane.b32.xlu0 %v106, 64
    %v772 = vpop.permute.xlu0 %771
    %773 = vrot.lane.b32.xlu0 %v107, 64
    %v774 = vpop.permute.xlu0 %773
    %775 = vrot.lane.b32.xlu0 %v108, 64
    %v776 = vpop.permute.xlu0 %775
    %777 = vrot.lane.b32.xlu0 %v109, 64
    %v778 = vpop.permute.xlu0 %777
    %779 = vrot.lane.b32.xlu0 %v110, 64
    %v780 = vpop.permute.xlu0 %779
    %781 = vrot.lane.b32.xlu0 %v111, 64
    %v782 = vpop.permute.xlu0 %781
    %783 = vrot.lane.b32.xlu0 %v112, 64
    %v784 = vpop.permute.xlu0 %783
    %785 = vrot.lane.b32.xlu0 %v113, 64
    %v786 = vpop.permute.xlu0 %785
    %787 = vrot.lane.b32.xlu0 %v114, 64
    %v788 = vpop.permute.xlu0 %787
    %789 = vrot.lane.b32.xlu0 %v115, 64
    %v790 = vpop.permute.xlu0 %789
    %791 = vrot.lane.b32.xlu0 %v116, 64
    %v792 = vpop.permute.xlu0 %791
    %793 = vrot.lane.b32.xlu0 %v117, 64
    %v794 = vpop.permute.xlu0 %793
    %795 = vrot.lane.b32.xlu0 %v118, 64
    %v796 = vpop.permute.xlu0 %795
    %797 = vrot.lane.b32.xlu0 %v119, 64
    %v798 = vpop.permute.xlu0 %797
    %799 = vrot.lane.b32.xlu0 %v120, 64
    %v800 = vpop.permute.xlu0 %799
    %801 = vrot.lane.b32.xlu0 %v121, 64
    %v802 = vpop.permute.xlu0 %801
    %803 = vrot.lane.b32.xlu0 %v122, 64
    %v804 = vpop.permute.xlu0 %803
    %805 = vrot.lane.b32.xlu0 %v123, 64
    %v806 = vpop.permute.xlu0 %805
    %807 = vrot.lane.b32.xlu0 %v124, 64
    %v808 = vpop.permute.xlu0 %807
    %809 = vrot.lane.b32.xlu0 %v125, 64
    %v810 = vpop.permute.xlu0 %809
    %811 = vrot.lane.b32.xlu0 %v126, 64
    %v812 = vpop.permute.xlu0 %811
    %813 = vrot.lane.b32.xlu0 %v127, 64
    %v814 = vpop.permute.xlu0 %813
    %815 = vrot.lane.b32.xlu0 %v128, 64
    %v816 = vpop.permute.xlu0 %815
    %817 = vrot.lane.b32.xlu0 %v129, 64
    %v818 = vpop.permute.xlu0 %817
    %819 = vrot.lane.b32.xlu0 %v130, 64
    %v820 = vpop.permute.xlu0 %819
    %821 = vrot.lane.b32.xlu0 %v131, 64
    %v822 = vpop.permute.xlu0 %821
    %823 = vrot.lane.b32.xlu0 %v132, 64
    %v824 = vpop.permute.xlu0 %823
    %825 = vrot.lane.b32.xlu0 %v133, 64
    %v826 = vpop.permute.xlu0 %825
    %827 = vrot.lane.b32.xlu0 %v134, 64
    %v828 = vpop.permute.xlu0 %827
    %829 = vrot.lane.b32.xlu0 %v135, 64
    %v830 = vpop.permute.xlu0 %829
    %831 = vrot.lane.b32.xlu0 %v136, 64
    %v832 = vpop.permute.xlu0 %831
    %833 = vrot.lane.b32.xlu0 %v137, 64
    %v834 = vpop.permute.xlu0 %833
    %835 = vrot.lane.b32.xlu0 %v138, 64
    %v836 = vpop.permute.xlu0 %835
    %837 = vrot.lane.b32.xlu0 %v139, 64
    %v838 = vpop.permute.xlu0 %837
    %839 = vrot.lane.b32.xlu0 %v140, 64
    %v840 = vpop.permute.xlu0 %839
    %841 = vrot.lane.b32.xlu0 %v141, 64
    %v842 = vpop.permute.xlu0 %841
    %843 = vrot.lane.b32.xlu0 %v142, 64
    %v844 = vpop.permute.xlu0 %843
    %v945 = vsel %vm143, %v646, 0.0
    %946 = vadd.xlane.f32.xlu0 %v945
    %v947 = vpop.xlane.xlu0 %946
    %v948 = vsel %vm143, %v648, 0.0
    %949 = vadd.xlane.f32.xlu0 %v948
    %v950 = vpop.xlane.xlu0 %949
    %v951 = vsel %vm143, %v650, 0.0
    %952 = vadd.xlane.f32.xlu0 %v951
    %v953 = vpop.xlane.xlu0 %952
    %v954 = vsel %vm143, %v652, 0.0
    %955 = vadd.xlane.f32.xlu0 %v954
    %v956 = vpop.xlane.xlu0 %955
    %v957 = vsel %vm143, %v654, 0.0
    %958 = vadd.xlane.f32.xlu0 %v957
    %v959 = vpop.xlane.xlu0 %958
    %v960 = vsel %vm143, %v656, 0.0
    %961 = vadd.xlane.f32.xlu0 %v960
    %v962 = vpop.xlane.xlu0 %961
    %v963 = vsel %vm143, %v658, 0.0
    %964 = vadd.xlane.f32.xlu0 %v963
    %v965 = vpop.xlane.xlu0 %964
    %v966 = vsel %vm143, %v660, 0.0
    %967 = vadd.xlane.f32.xlu0 %v966
    %v968 = vpop.xlane.xlu0 %967
    %v969 = vsel %vm143, %v662, 0.0
    %970 = vadd.xlane.f32.xlu0 %v969
    %v971 = vpop.xlane.xlu0 %970
    %v972 = vsel %vm143, %v664, 0.0
    %973 = vadd.xlane.f32.xlu0 %v972
    %v974 = vpop.xlane.xlu0 %973
    %v975 = vsel %vm143, %v666, 0.0
    %976 = vadd.xlane.f32.xlu0 %v975
    %v977 = vpop.xlane.xlu0 %976
    %v978 = vsel %vm143, %v668, 0.0
    %979 = vadd.xlane.f32.xlu0 %v978
    %v980 = vpop.xlane.xlu0 %979
    %v981 = vsel %vm143, %v670, 0.0
    %982 = vadd.xlane.f32.xlu0 %v981
    %v983 = vpop.xlane.xlu0 %982
    %v984 = vsel %vm143, %v672, 0.0
    %985 = vadd.xlane.f32.xlu0 %v984
    %v986 = vpop.xlane.xlu0 %985
    %v987 = vsel %vm143, %v674, 0.0
    %988 = vadd.xlane.f32.xlu0 %v987
    %v989 = vpop.xlane.xlu0 %988
    %v990 = vsel %vm143, %v676, 0.0
    %991 = vadd.xlane.f32.xlu0 %v990
    %v992 = vpop.xlane.xlu0 %991
    %v993 = vsel %vm143, %v678, 0.0
    %994 = vadd.xlane.f32.xlu0 %v993
    %v995 = vpop.xlane.xlu0 %994
    %v996 = vsel %vm143, %v680, 0.0
    %997 = vadd.xlane.f32.xlu0 %v996
    %v998 = vpop.xlane.xlu0 %997
    %v999 = vsel %vm143, %v682, 0.0
    %1000 = vadd.xlane.f32.xlu0 %v999
    %v1001 = vpop.xlane.xlu0 %1000
    %v1002 = vsel %vm143, %v684, 0.0
    %1003 = vadd.xlane.f32.xlu0 %v1002
    %v1004 = vpop.xlane.xlu0 %1003
    %v1005 = vsel %vm143, %v686, 0.0
    %1006 = vadd.xlane.f32.xlu0 %v1005
    %v1007 = vpop.xlane.xlu0 %1006
    %v1008 = vsel %vm143, %v688, 0.0
    %1009 = vadd.xlane.f32.xlu0 %v1008
    %v1010 = vpop.xlane.xlu0 %1009
    %v1011 = vsel %vm143, %v690, 0.0
    %1012 = vadd.xlane.f32.xlu0 %v1011
    %v1013 = vpop.xlane.xlu0 %1012
    %v1014 = vsel %vm143, %v692, 0.0
    %1015 = vadd.xlane.f32.xlu0 %v1014
    %v1016 = vpop.xlane.xlu0 %1015
    %v1017 = vsel %vm143, %v694, 0.0
    %1018 = vadd.xlane.f32.xlu0 %v1017
    %v1019 = vpop.xlane.xlu0 %1018
    %v1020 = vsel %vm143, %v696, 0.0
    %1021 = vadd.xlane.f32.xlu0 %v1020
    %v1022 = vpop.xlane.xlu0 %1021
    %v1023 = vsel %vm143, %v698, 0.0
    %1024 = vadd.xlane.f32.xlu0 %v1023
    %v1025 = vpop.xlane.xlu0 %1024
    %v1026 = vsel %vm143, %v700, 0.0
    %1027 = vadd.xlane.f32.xlu0 %v1026
    %v1028 = vpop.xlane.xlu0 %1027
    %v1029 = vsel %vm143, %v702, 0.0
    %1030 = vadd.xlane.f32.xlu0 %v1029
    %v1031 = vpop.xlane.xlu0 %1030
    %v1032 = vsel %vm143, %v704, 0.0
    %1033 = vadd.xlane.f32.xlu0 %v1032
    %v1034 = vpop.xlane.xlu0 %1033
    %v1035 = vsel %vm143, %v706, 0.0
    %1036 = vadd.xlane.f32.xlu0 %v1035
    %v1037 = vpop.xlane.xlu0 %1036
    %v1038 = vsel %vm143, %v708, 0.0
    %1039 = vadd.xlane.f32.xlu0 %v1038
    %v1040 = vpop.xlane.xlu0 %1039
    %v1041 = vsel %vm143, %v710, 0.0
    %1042 = vadd.xlane.f32.xlu0 %v1041
    %v1043 = vpop.xlane.xlu0 %1042
    %v1044 = vsel %vm143, %v712, 0.0
    %1045 = vadd.xlane.f32.xlu0 %v1044
    %v1046 = vpop.xlane.xlu0 %1045
    %v1047 = vsel %vm143, %v714, 0.0
    %1048 = vadd.xlane.f32.xlu0 %v1047
    %v1049 = vpop.xlane.xlu0 %1048
    %v1050 = vsel %vm143, %v716, 0.0
    %1051 = vadd.xlane.f32.xlu0 %v1050
    %v1052 = vpop.xlane.xlu0 %1051
    %v1053 = vsel %vm143, %v718, 0.0
    %1054 = vadd.xlane.f32.xlu0 %v1053
    %v1055 = vpop.xlane.xlu0 %1054
    %v1056 = vsel %vm143, %v720, 0.0
    %1057 = vadd.xlane.f32.xlu0 %v1056
    %v1058 = vpop.xlane.xlu0 %1057
    %v1059 = vsel %vm143, %v722, 0.0
    %1060 = vadd.xlane.f32.xlu0 %v1059
    %v1061 = vpop.xlane.xlu0 %1060
    %v1062 = vsel %vm143, %v724, 0.0
    %1063 = vadd.xlane.f32.xlu0 %v1062
    %v1064 = vpop.xlane.xlu0 %1063
    %v1065 = vsel %vm143, %v726, 0.0
    %1066 = vadd.xlane.f32.xlu0 %v1065
    %v1067 = vpop.xlane.xlu0 %1066
    %v1068 = vsel %vm143, %v728, 0.0
    %1069 = vadd.xlane.f32.xlu0 %v1068
    %v1070 = vpop.xlane.xlu0 %1069
    %v1071 = vsel %vm143, %v730, 0.0
    %1072 = vadd.xlane.f32.xlu0 %v1071
    %v1073 = vpop.xlane.xlu0 %1072
    %v1074 = vsel %vm143, %v732, 0.0
    %1075 = vadd.xlane.f32.xlu0 %v1074
    %v1076 = vpop.xlane.xlu0 %1075
    %v1077 = vsel %vm143, %v734, 0.0
    %1078 = vadd.xlane.f32.xlu0 %v1077
    %v1079 = vpop.xlane.xlu0 %1078
    %v1080 = vsel %vm143, %v736, 0.0
    %1081 = vadd.xlane.f32.xlu0 %v1080
    %v1082 = vpop.xlane.xlu0 %1081
    %v1083 = vsel %vm143, %v738, 0.0
    %1084 = vadd.xlane.f32.xlu0 %v1083
    %v1085 = vpop.xlane.xlu0 %1084
    %v1086 = vsel %vm143, %v740, 0.0
    %1087 = vadd.xlane.f32.xlu0 %v1086
    %v1088 = vpop.xlane.xlu0 %1087
    %v1089 = vsel %vm143, %v742, 0.0
    %1090 = vadd.xlane.f32.xlu0 %v1089
    %v1091 = vpop.xlane.xlu0 %1090
    %v1092 = vsel %vm143, %v744, 0.0
    %1093 = vadd.xlane.f32.xlu0 %v1092
    %v1094 = vpop.xlane.xlu0 %1093
    %v1095 = vsel %vm143, %v746, 0.0
    %1096 = vadd.xlane.f32.xlu0 %v1095
    %v1097 = vpop.xlane.xlu0 %1096
    %v1098 = vsel %vm143, %v748, 0.0
    %1099 = vadd.xlane.f32.xlu0 %v1098
    %v1100 = vpop.xlane.xlu0 %1099
    %v1101 = vsel %vm143, %v750, 0.0
    %1102 = vadd.xlane.f32.xlu0 %v1101
    %v1103 = vpop.xlane.xlu0 %1102
    %v1104 = vsel %vm143, %v752, 0.0
    %1105 = vadd.xlane.f32.xlu0 %v1104
    %v1106 = vpop.xlane.xlu0 %1105
    %v1107 = vsel %vm143, %v754, 0.0
    %1108 = vadd.xlane.f32.xlu0 %v1107
    %v1109 = vpop.xlane.xlu0 %1108
    %v1110 = vsel %vm143, %v756, 0.0
    %1111 = vadd.xlane.f32.xlu0 %v1110
    %v1112 = vpop.xlane.xlu0 %1111
    %v1113 = vsel %vm143, %v758, 0.0
    %1114 = vadd.xlane.f32.xlu0 %v1113
    %v1115 = vpop.xlane.xlu0 %1114
    %v1116 = vsel %vm143, %v760, 0.0
    %1117 = vadd.xlane.f32.xlu0 %v1116
    %v1118 = vpop.xlane.xlu0 %1117
    %v1119 = vsel %vm143, %v762, 0.0
    %1120 = vadd.xlane.f32.xlu0 %v1119
    %v1121 = vpop.xlane.xlu0 %1120
    %v1122 = vsel %vm143, %v764, 0.0
    %1123 = vadd.xlane.f32.xlu0 %v1122
    %v1124 = vpop.xlane.xlu0 %1123
    %v1125 = vsel %vm143, %v766, 0.0
    %1126 = vadd.xlane.f32.xlu0 %v1125
    %v1127 = vpop.xlane.xlu0 %1126
    %v1128 = vsel %vm143, %v768, 0.0
    %1129 = vadd.xlane.f32.xlu0 %v1128
    %v1130 = vpop.xlane.xlu0 %1129
    %v1131 = vsel %vm143, %v770, 0.0
    %1132 = vadd.xlane.f32.xlu0 %v1131
    %v1133 = vpop.xlane.xlu0 %1132
    %v1134 = vsel %vm143, %v772, 0.0
    %1135 = vadd.xlane.f32.xlu0 %v1134
    %v1136 = vpop.xlane.xlu0 %1135
    %v1137 = vsel %vm143, %v774, 0.0
    %1138 = vadd.xlane.f32.xlu0 %v1137
    %v1139 = vpop.xlane.xlu0 %1138
    %v1140 = vsel %vm143, %v776, 0.0
    %1141 = vadd.xlane.f32.xlu0 %v1140
    %v1142 = vpop.xlane.xlu0 %1141
    %v1143 = vsel %vm143, %v778, 0.0
    %1144 = vadd.xlane.f32.xlu0 %v1143
    %v1145 = vpop.xlane.xlu0 %1144
    %v1146 = vsel %vm143, %v780, 0.0
    %1147 = vadd.xlane.f32.xlu0 %v1146
    %v1148 = vpop.xlane.xlu0 %1147
    %v1149 = vsel %vm143, %v782, 0.0
    %1150 = vadd.xlane.f32.xlu0 %v1149
    %v1151 = vpop.xlane.xlu0 %1150
    %v1152 = vsel %vm143, %v784, 0.0
    %1153 = vadd.xlane.f32.xlu0 %v1152
    %v1154 = vpop.xlane.xlu0 %1153
    %v1155 = vsel %vm143, %v786, 0.0
    %1156 = vadd.xlane.f32.xlu0 %v1155
    %v1157 = vpop.xlane.xlu0 %1156
    %v1158 = vsel %vm143, %v788, 0.0
    %1159 = vadd.xlane.f32.xlu0 %v1158
    %v1160 = vpop.xlane.xlu0 %1159
    %v1161 = vsel %vm143, %v790, 0.0
    %1162 = vadd.xlane.f32.xlu0 %v1161
    %v1163 = vpop.xlane.xlu0 %1162
    %v1164 = vsel %vm143, %v792, 0.0
    %1165 = vadd.xlane.f32.xlu0 %v1164
    %v1166 = vpop.xlane.xlu0 %1165
    %v1167 = vsel %vm143, %v794, 0.0
    %1168 = vadd.xlane.f32.xlu0 %v1167
    %v1169 = vpop.xlane.xlu0 %1168
    %v1170 = vsel %vm143, %v796, 0.0
    %1171 = vadd.xlane.f32.xlu0 %v1170
    %v1172 = vpop.xlane.xlu0 %1171
    %v1173 = vsel %vm143, %v798, 0.0
    %1174 = vadd.xlane.f32.xlu0 %v1173
    %v1175 = vpop.xlane.xlu0 %1174
    %v1176 = vsel %vm143, %v800, 0.0
    %1177 = vadd.xlane.f32.xlu0 %v1176
    %v1178 = vpop.xlane.xlu0 %1177
    %v1179 = vsel %vm143, %v802, 0.0
    %1180 = vadd.xlane.f32.xlu0 %v1179
    %v1181 = vpop.xlane.xlu0 %1180
    %v1182 = vsel %vm143, %v804, 0.0
    %1183 = vadd.xlane.f32.xlu0 %v1182
    %v1184 = vpop.xlane.xlu0 %1183
    %v1185 = vsel %vm143, %v806, 0.0
    %1186 = vadd.xlane.f32.xlu0 %v1185
    %v1187 = vpop.xlane.xlu0 %1186
    %v1188 = vsel %vm143, %v808, 0.0
    %1189 = vadd.xlane.f32.xlu0 %v1188
    %v1190 = vpop.xlane.xlu0 %1189
    %v1191 = vsel %vm143, %v810, 0.0
    %1192 = vadd.xlane.f32.xlu0 %v1191
    %v1193 = vpop.xlane.xlu0 %1192
    %v1194 = vsel %vm143, %v812, 0.0
    %1195 = vadd.xlane.f32.xlu0 %v1194
    %v1196 = vpop.xlane.xlu0 %1195
    %v1197 = vsel %vm143, %v814, 0.0
    %1198 = vadd.xlane.f32.xlu0 %v1197
    %v1199 = vpop.xlane.xlu0 %1198
    %v1200 = vsel %vm143, %v816, 0.0
    %1201 = vadd.xlane.f32.xlu0 %v1200
    %v1202 = vpop.xlane.xlu0 %1201
    %v1203 = vsel %vm143, %v818, 0.0
    %1204 = vadd.xlane.f32.xlu0 %v1203
    %v1205 = vpop.xlane.xlu0 %1204
    %v1206 = vsel %vm143, %v820, 0.0
    %1207 = vadd.xlane.f32.xlu0 %v1206
    %v1208 = vpop.xlane.xlu0 %1207
    %v1209 = vsel %vm143, %v822, 0.0
    %1210 = vadd.xlane.f32.xlu0 %v1209
    %v1211 = vpop.xlane.xlu0 %1210
    %v1212 = vsel %vm143, %v824, 0.0
    %1213 = vadd.xlane.f32.xlu0 %v1212
    %v1214 = vpop.xlane.xlu0 %1213
    %v1215 = vsel %vm143, %v826, 0.0
    %1216 = vadd.xlane.f32.xlu0 %v1215
    %v1217 = vpop.xlane.xlu0 %1216
    %v1218 = vsel %vm143, %v828, 0.0
    %1219 = vadd.xlane.f32.xlu0 %v1218
    %v1220 = vpop.xlane.xlu0 %1219
    %v1221 = vsel %vm143, %v830, 0.0
    %1222 = vadd.xlane.f32.xlu0 %v1221
    %v1223 = vpop.xlane.xlu0 %1222
    %v1224 = vsel %vm143, %v832, 0.0
    %1225 = vadd.xlane.f32.xlu0 %v1224
    %v1226 = vpop.xlane.xlu0 %1225
    %v1227 = vsel %vm143, %v834, 0.0
    %1228 = vadd.xlane.f32.xlu0 %v1227
    %v1229 = vpop.xlane.xlu0 %1228
    %v1230 = vsel %vm143, %v836, 0.0
    %1231 = vadd.xlane.f32.xlu0 %v1230
    %v1232 = vpop.xlane.xlu0 %1231
    %v1233 = vsel %vm143, %v838, 0.0
    %1234 = vadd.xlane.f32.xlu0 %v1233
    %v1235 = vpop.xlane.xlu0 %1234
    %v1236 = vsel %vm143, %v840, 0.0
    %1237 = vadd.xlane.f32.xlu0 %v1236
    %v1238 = vpop.xlane.xlu0 %1237
    %v1239 = vsel %vm143, %v842, 0.0
    %1240 = vadd.xlane.f32.xlu0 %v1239
    %v1241 = vpop.xlane.xlu0 %1240
    %v1242 = vsel %vm143, %v844, 0.0
    %1243 = vadd.xlane.f32.xlu0 %v1242
    %v1244 = vpop.xlane.xlu0 %1243
    %v1245 = vmul.f32 %v947, %v444
    %v1246 = vmul.f32 %v950, %v444
    %v1247 = vmul.f32 %v953, %v444
    %v1248 = vmul.f32 %v956, %v444
    %v1249 = vmul.f32 %v959, %v444
    %v1250 = vmul.f32 %v962, %v444
    %v1251 = vmul.f32 %v965, %v444
    %v1252 = vmul.f32 %v968, %v444
    %v1253 = vmul.f32 %v971, %v444
    %v1254 = vmul.f32 %v974, %v444
    %v1255 = vmul.f32 %v977, %v444
    %v1256 = vmul.f32 %v980, %v444
    %v1257 = vmul.f32 %v983, %v444
    %v1258 = vmul.f32 %v986, %v444
    %v1259 = vmul.f32 %v989, %v444
    %v1260 = vmul.f32 %v992, %v444
    %v1261 = vmul.f32 %v995, %v444
    %v1262 = vmul.f32 %v998, %v444
    %v1263 = vmul.f32 %v1001, %v444
    %v1264 = vmul.f32 %v1004, %v444
    %v1265 = vmul.f32 %v1007, %v444
    %v1266 = vmul.f32 %v1010, %v444
    %v1267 = vmul.f32 %v1013, %v444
    %v1268 = vmul.f32 %v1016, %v444
    %v1269 = vmul.f32 %v1019, %v444
    %v1270 = vmul.f32 %v1022, %v444
    %v1271 = vmul.f32 %v1025, %v444
    %v1272 = vmul.f32 %v1028, %v444
    %v1273 = vmul.f32 %v1031, %v444
    %v1274 = vmul.f32 %v1034, %v444
    %v1275 = vmul.f32 %v1037, %v444
    %v1276 = vmul.f32 %v1040, %v444
    %v1277 = vmul.f32 %v1043, %v444
    %v1278 = vmul.f32 %v1046, %v444
    %v1279 = vmul.f32 %v1049, %v444
    %v1280 = vmul.f32 %v1052, %v444
    %v1281 = vmul.f32 %v1055, %v444
    %v1282 = vmul.f32 %v1058, %v444
    %v1283 = vmul.f32 %v1061, %v444
    %v1284 = vmul.f32 %v1064, %v444
    %v1285 = vmul.f32 %v1067, %v444
    %v1286 = vmul.f32 %v1070, %v444
    %v1287 = vmul.f32 %v1073, %v444
    %v1288 = vmul.f32 %v1076, %v444
    %v1289 = vmul.f32 %v1079, %v444
    %v1290 = vmul.f32 %v1082, %v444
    %v1291 = vmul.f32 %v1085, %v444
    %v1292 = vmul.f32 %v1088, %v444
    %v1293 = vmul.f32 %v1091, %v444
    %v1294 = vmul.f32 %v1094, %v444
    %v1295 = vmul.f32 %v1097, %v444
    %v1296 = vmul.f32 %v1100, %v444
    %v1297 = vmul.f32 %v1103, %v444
    %v1298 = vmul.f32 %v1106, %v444
    %v1299 = vmul.f32 %v1109, %v444
    %v1300 = vmul.f32 %v1112, %v444
    %v1301 = vmul.f32 %v1115, %v444
    %v1302 = vmul.f32 %v1118, %v444
    %v1303 = vmul.f32 %v1121, %v444
    %v1304 = vmul.f32 %v1124, %v444
    %v1305 = vmul.f32 %v1127, %v444
    %v1306 = vmul.f32 %v1130, %v444
    %v1307 = vmul.f32 %v1133, %v444
    %v1308 = vmul.f32 %v1136, %v444
    %v1309 = vmul.f32 %v1139, %v444
    %v1310 = vmul.f32 %v1142, %v444
    %v1311 = vmul.f32 %v1145, %v444
    %v1312 = vmul.f32 %v1148, %v444
    %v1313 = vmul.f32 %v1151, %v444
    %v1314 = vmul.f32 %v1154, %v444
    %v1315 = vmul.f32 %v1157, %v444
    %v1316 = vmul.f32 %v1160, %v444
    %v1317 = vmul.f32 %v1163, %v444
    %v1318 = vmul.f32 %v1166, %v444
    %v1319 = vmul.f32 %v1169, %v444
    %v1320 = vmul.f32 %v1172, %v444
    %v1321 = vmul.f32 %v1175, %v444
    %v1322 = vmul.f32 %v1178, %v444
    %v1323 = vmul.f32 %v1181, %v444
    %v1324 = vmul.f32 %v1184, %v444
    %v1325 = vmul.f32 %v1187, %v444
    %v1326 = vmul.f32 %v1190, %v444
    %v1327 = vmul.f32 %v1193, %v444
    %v1328 = vmul.f32 %v1196, %v444
    %v1329 = vmul.f32 %v1199, %v444
    %v1330 = vmul.f32 %v1202, %v444
    %v1331 = vmul.f32 %v1205, %v444
    %v1332 = vmul.f32 %v1208, %v444
    %v1333 = vmul.f32 %v1211, %v444
    %v1334 = vmul.f32 %v1214, %v444
    %v1335 = vmul.f32 %v1217, %v444
    %v1336 = vmul.f32 %v1220, %v444
    %v1337 = vmul.f32 %v1223, %v444
    %v1338 = vmul.f32 %v1226, %v444
    %v1339 = vmul.f32 %v1229, %v444
    %v1340 = vmul.f32 %v1232, %v444
    %v1341 = vmul.f32 %v1235, %v444
    %v1342 = vmul.f32 %v1238, %v444
    %v1343 = vmul.f32 %v1241, %v444
    %v1344 = vmul.f32 %v1244, %v444
    %v1345 = vld [vmem:[#allocation2 + $0x8] sm:$0xff]
    %v1346 = vld [vmem:[#allocation2 + $0x18] sm:$0xff]
    %v1347 = vld [vmem:[#allocation2 + $0x28] sm:$0xff]
    %v1348 = vld [vmem:[#allocation2 + $0x38] sm:$0xff]
    %v1349 = vld [vmem:[#allocation2 + $0x48] sm:$0xff]
    %v1350 = vld [vmem:[#allocation2 + $0x58] sm:$0xff]
    %v1351 = vld [vmem:[#allocation2 + $0x68] sm:$0xff]
    %v1352 = vld [vmem:[#allocation2 + $0x78] sm:$0xff]
    %v1353 = vld [vmem:[#allocation2 + $0x88] sm:$0xff]
    %v1354 = vld [vmem:[#allocation2 + $0x98] sm:$0xff]
    %v1355 = vld [vmem:[#allocation2 + $0xa8] sm:$0xff]
    %v1356 = vld [vmem:[#allocation2 + $0xb8] sm:$0xff]
    %v1357 = vld [vmem:[#allocation2 + $0xc8] sm:$0xff]
    %v1358 = vld [vmem:[#allocation2 + $0xd8] sm:$0xff]
    %v1359 = vld [vmem:[#allocation2 + $0xe8] sm:$0xff]
    %v1360 = vld [vmem:[#allocation2 + $0xf8] sm:$0xff]
    %v1361 = vld [vmem:[#allocation2 + $0x108] sm:$0xff]
    %v1362 = vld [vmem:[#allocation2 + $0x118] sm:$0xff]
    %v1363 = vld [vmem:[#allocation2 + $0x128] sm:$0xff]
    %v1364 = vld [vmem:[#allocation2 + $0x138] sm:$0xff]
    %v1365 = vld [vmem:[#allocation2 + $0x148] sm:$0xff]
    %v1366 = vld [vmem:[#allocation2 + $0x158] sm:$0xff]
    %v1367 = vld [vmem:[#allocation2 + $0x168] sm:$0xff]
    %v1368 = vld [vmem:[#allocation2 + $0x178] sm:$0xff]
    %v1369 = vld [vmem:[#allocation2 + $0x188] sm:$0xff]
    %v1370 = vld [vmem:[#allocation2 + $0x198] sm:$0xff]
    %v1371 = vld [vmem:[#allocation2 + $0x1a8] sm:$0xff]
    %v1372 = vld [vmem:[#allocation2 + $0x1b8] sm:$0xff]
    %v1373 = vld [vmem:[#allocation2 + $0x1c8] sm:$0xff]
    %v1374 = vld [vmem:[#allocation2 + $0x1d8] sm:$0xff]
    %v1375 = vld [vmem:[#allocation2 + $0x1e8] sm:$0xff]
    %v1376 = vld [vmem:[#allocation2 + $0x1f8] sm:$0xff]
    %v1377 = vld [vmem:[#allocation2 + $0x208] sm:$0xff]
    %v1378 = vld [vmem:[#allocation2 + $0x218] sm:$0xff]
    %v1379 = vld [vmem:[#allocation2 + $0x228] sm:$0xff]
    %v1380 = vld [vmem:[#allocation2 + $0x238] sm:$0xff]
    %v1381 = vld [vmem:[#allocation2 + $0x248] sm:$0xff]
    %v1382 = vld [vmem:[#allocation2 + $0x258] sm:$0xff]
    %v1383 = vld [vmem:[#allocation2 + $0x268] sm:$0xff]
    %v1384 = vld [vmem:[#allocation2 + $0x278] sm:$0xff]
    %v1385 = vld [vmem:[#allocation2 + $0x288] sm:$0xff]
    %v1386 = vld [vmem:[#allocation2 + $0x298] sm:$0xff]
    %v1387 = vld [vmem:[#allocation2 + $0x2a8] sm:$0xff]
    %v1388 = vld [vmem:[#allocation2 + $0x2b8] sm:$0xff]
    %v1389 = vld [vmem:[#allocation2 + $0x2c8] sm:$0xff]
    %v1390 = vld [vmem:[#allocation2 + $0x2d8] sm:$0xff]
    %v1391 = vld [vmem:[#allocation2 + $0x2e8] sm:$0xff]
    %v1392 = vld [vmem:[#allocation2 + $0x2f8] sm:$0xff]
    %v1393 = vld [vmem:[#allocation2 + $0x308] sm:$0xff]
    %v1394 = vld [vmem:[#allocation2 + $0x318] sm:$0xff]
    %v1395 = vld [vmem:[#allocation2 + $0x328] sm:$0xff]
    %v1396 = vld [vmem:[#allocation2 + $0x338] sm:$0xff]
    %v1397 = vld [vmem:[#allocation2 + $0x348] sm:$0xff]
    %v1398 = vld [vmem:[#allocation2 + $0x358] sm:$0xff]
    %v1399 = vld [vmem:[#allocation2 + $0x368] sm:$0xff]
    %v1400 = vld [vmem:[#allocation2 + $0x378] sm:$0xff]
    %v1401 = vld [vmem:[#allocation2 + $0x388] sm:$0xff]
    %v1402 = vld [vmem:[#allocation2 + $0x398] sm:$0xff]
    %v1403 = vld [vmem:[#allocation2 + $0x3a8] sm:$0xff]
    %v1404 = vld [vmem:[#allocation2 + $0x3b8] sm:$0xff]
    %v1405 = vld [vmem:[#allocation2 + $0x3c8] sm:$0xff]
    %v1406 = vld [vmem:[#allocation2 + $0x3d8] sm:$0xff]
    %v1407 = vld [vmem:[#allocation2 + $0x3e8] sm:$0xff]
    %v1408 = vld [vmem:[#allocation2 + $0x3f8] sm:$0xff]
    %v1409 = vld [vmem:[#allocation2 + $0x408] sm:$0xff]
    %v1410 = vld [vmem:[#allocation2 + $0x418] sm:$0xff]
    %v1411 = vld [vmem:[#allocation2 + $0x428] sm:$0xff]
    %v1412 = vld [vmem:[#allocation2 + $0x438] sm:$0xff]
    %v1413 = vld [vmem:[#allocation2 + $0x448] sm:$0xff]
    %v1414 = vld [vmem:[#allocation2 + $0x458] sm:$0xff]
    %v1415 = vld [vmem:[#allocation2 + $0x468] sm:$0xff]
    %v1416 = vld [vmem:[#allocation2 + $0x478] sm:$0xff]
    %v1417 = vld [vmem:[#allocation2 + $0x488] sm:$0xff]
    %v1418 = vld [vmem:[#allocation2 + $0x498] sm:$0xff]
    %v1419 = vld [vmem:[#allocation2 + $0x4a8] sm:$0xff]
    %v1420 = vld [vmem:[#allocation2 + $0x4b8] sm:$0xff]
    %v1421 = vld [vmem:[#allocation2 + $0x4c8] sm:$0xff]
    %v1422 = vld [vmem:[#allocation2 + $0x4d8] sm:$0xff]
    %v1423 = vld [vmem:[#allocation2 + $0x4e8] sm:$0xff]
    %v1424 = vld [vmem:[#allocation2 + $0x4f8] sm:$0xff]
    %v1425 = vld [vmem:[#allocation2 + $0x508] sm:$0xff]
    %v1426 = vld [vmem:[#allocation2 + $0x518] sm:$0xff]
    %v1427 = vld [vmem:[#allocation2 + $0x528] sm:$0xff]
    %v1428 = vld [vmem:[#allocation2 + $0x538] sm:$0xff]
    %v1429 = vld [vmem:[#allocation2 + $0x548] sm:$0xff]
    %v1430 = vld [vmem:[#allocation2 + $0x558] sm:$0xff]
    %v1431 = vld [vmem:[#allocation2 + $0x568] sm:$0xff]
    %v1432 = vld [vmem:[#allocation2 + $0x578] sm:$0xff]
    %v1433 = vld [vmem:[#allocation2 + $0x588] sm:$0xff]
    %v1434 = vld [vmem:[#allocation2 + $0x598] sm:$0xff]
    %v1435 = vld [vmem:[#allocation2 + $0x5a8] sm:$0xff]
    %v1436 = vld [vmem:[#allocation2 + $0x5b8] sm:$0xff]
    %v1437 = vld [vmem:[#allocation2 + $0x5c8] sm:$0xff]
    %v1438 = vld [vmem:[#allocation2 + $0x5d8] sm:$0xff]
    %v1439 = vld [vmem:[#allocation2 + $0x5e8] sm:$0xff]
    %v1440 = vld [vmem:[#allocation2 + $0x5f8] sm:$0xff]
    %v1441 = vld [vmem:[#allocation2 + $0x608] sm:$0xff]
    %v1442 = vld [vmem:[#allocation2 + $0x618] sm:$0xff]
    %v1443 = vld [vmem:[#allocation2 + $0x628] sm:$0xff]
    %v1444 = vld [vmem:[#allocation2 + $0x638] sm:$0xff]
    %v1445 = vsel %vm143, %v1345, 0.0
    %1446 = vadd.xlane.f32.xlu0 %v1445
    %v1447 = vpop.xlane.xlu0 %1446
    %v1448 = vsel %vm143, %v1346, 0.0
    %1449 = vadd.xlane.f32.xlu0 %v1448
    %v1450 = vpop.xlane.xlu0 %1449
    %v1451 = vsel %vm143, %v1347, 0.0
    %1452 = vadd.xlane.f32.xlu0 %v1451
    %v1453 = vpop.xlane.xlu0 %1452
    %v1454 = vsel %vm143, %v1348, 0.0
    %1455 = vadd.xlane.f32.xlu0 %v1454
    %v1456 = vpop.xlane.xlu0 %1455
    %v1457 = vsel %vm143, %v1349, 0.0
    %1458 = vadd.xlane.f32.xlu0 %v1457
    %v1459 = vpop.xlane.xlu0 %1458
    %v1460 = vsel %vm143, %v1350, 0.0
    %1461 = vadd.xlane.f32.xlu0 %v1460
    %v1462 = vpop.xlane.xlu0 %1461
    %v1463 = vsel %vm143, %v1351, 0.0
    %1464 = vadd.xlane.f32.xlu0 %v1463
    %v1465 = vpop.xlane.xlu0 %1464
    %v1466 = vsel %vm143, %v1352, 0.0
    %1467 = vadd.xlane.f32.xlu0 %v1466
    %v1468 = vpop.xlane.xlu0 %1467
    %v1469 = vsel %vm143, %v1353, 0.0
    %1470 = vadd.xlane.f32.xlu0 %v1469
    %v1471 = vpop.xlane.xlu0 %1470
    %v1472 = vsel %vm143, %v1354, 0.0
    %1473 = vadd.xlane.f32.xlu0 %v1472
    %v1474 = vpop.xlane.xlu0 %1473
    %v1475 = vsel %vm143, %v1355, 0.0
    %1476 = vadd.xlane.f32.xlu0 %v1475
    %v1477 = vpop.xlane.xlu0 %1476
    %v1478 = vsel %vm143, %v1356, 0.0
    %1479 = vadd.xlane.f32.xlu0 %v1478
    %v1480 = vpop.xlane.xlu0 %1479
    %v1481 = vsel %vm143, %v1357, 0.0
    %1482 = vadd.xlane.f32.xlu0 %v1481
    %v1483 = vpop.xlane.xlu0 %1482
    %v1484 = vsel %vm143, %v1358, 0.0
    %1485 = vadd.xlane.f32.xlu0 %v1484
    %v1486 = vpop.xlane.xlu0 %1485
    %v1487 = vsel %vm143, %v1359, 0.0
    %1488 = vadd.xlane.f32.xlu0 %v1487
    %v1489 = vpop.xlane.xlu0 %1488
    %v1490 = vsel %vm143, %v1360, 0.0
    %1491 = vadd.xlane.f32.xlu0 %v1490
    %v1492 = vpop.xlane.xlu0 %1491
    %v1493 = vsel %vm143, %v1361, 0.0
    %1494 = vadd.xlane.f32.xlu0 %v1493
    %v1495 = vpop.xlane.xlu0 %1494
    %v1496 = vsel %vm143, %v1362, 0.0
    %1497 = vadd.xlane.f32.xlu0 %v1496
    %v1498 = vpop.xlane.xlu0 %1497
    %v1499 = vsel %vm143, %v1363, 0.0
    %1500 = vadd.xlane.f32.xlu0 %v1499
    %v1501 = vpop.xlane.xlu0 %1500
    %v1502 = vsel %vm143, %v1364, 0.0
    %1503 = vadd.xlane.f32.xlu0 %v1502
    %v1504 = vpop.xlane.xlu0 %1503
    %v1505 = vsel %vm143, %v1365, 0.0
    %1506 = vadd.xlane.f32.xlu0 %v1505
    %v1507 = vpop.xlane.xlu0 %1506
    %v1508 = vsel %vm143, %v1366, 0.0
    %1509 = vadd.xlane.f32.xlu0 %v1508
    %v1510 = vpop.xlane.xlu0 %1509
    %v1511 = vsel %vm143, %v1367, 0.0
    %1512 = vadd.xlane.f32.xlu0 %v1511
    %v1513 = vpop.xlane.xlu0 %1512
    %v1514 = vsel %vm143, %v1368, 0.0
    %1515 = vadd.xlane.f32.xlu0 %v1514
    %v1516 = vpop.xlane.xlu0 %1515
    %v1517 = vsel %vm143, %v1369, 0.0
    %1518 = vadd.xlane.f32.xlu0 %v1517
    %v1519 = vpop.xlane.xlu0 %1518
    %v1520 = vsel %vm143, %v1370, 0.0
    %1521 = vadd.xlane.f32.xlu0 %v1520
    %v1522 = vpop.xlane.xlu0 %1521
    %v1523 = vsel %vm143, %v1371, 0.0
    %1524 = vadd.xlane.f32.xlu0 %v1523
    %v1525 = vpop.xlane.xlu0 %1524
    %v1526 = vsel %vm143, %v1372, 0.0
    %1527 = vadd.xlane.f32.xlu0 %v1526
    %v1528 = vpop.xlane.xlu0 %1527
    %v1529 = vsel %vm143, %v1373, 0.0
    %1530 = vadd.xlane.f32.xlu0 %v1529
    %v1531 = vpop.xlane.xlu0 %1530
    %v1532 = vsel %vm143, %v1374, 0.0
    %1533 = vadd.xlane.f32.xlu0 %v1532
    %v1534 = vpop.xlane.xlu0 %1533
    %v1535 = vsel %vm143, %v1375, 0.0
    %1536 = vadd.xlane.f32.xlu0 %v1535
    %v1537 = vpop.xlane.xlu0 %1536
    %v1538 = vsel %vm143, %v1376, 0.0
    %1539 = vadd.xlane.f32.xlu0 %v1538
    %v1540 = vpop.xlane.xlu0 %1539
    %v1541 = vsel %vm143, %v1377, 0.0
    %1542 = vadd.xlane.f32.xlu0 %v1541
    %v1543 = vpop.xlane.xlu0 %1542
    %v1544 = vsel %vm143, %v1378, 0.0
    %1545 = vadd.xlane.f32.xlu0 %v1544
    %v1546 = vpop.xlane.xlu0 %1545
    %v1547 = vsel %vm143, %v1379, 0.0
    %1548 = vadd.xlane.f32.xlu0 %v1547
    %v1549 = vpop.xlane.xlu0 %1548
    %v1550 = vsel %vm143, %v1380, 0.0
    %1551 = vadd.xlane.f32.xlu0 %v1550
    %v1552 = vpop.xlane.xlu0 %1551
    %v1553 = vsel %vm143, %v1381, 0.0
    %1554 = vadd.xlane.f32.xlu0 %v1553
    %v1555 = vpop.xlane.xlu0 %1554
    %v1556 = vsel %vm143, %v1382, 0.0
    %1557 = vadd.xlane.f32.xlu0 %v1556
    %v1558 = vpop.xlane.xlu0 %1557
    %v1559 = vsel %vm143, %v1383, 0.0
    %1560 = vadd.xlane.f32.xlu0 %v1559
    %v1561 = vpop.xlane.xlu0 %1560
    %v1562 = vsel %vm143, %v1384, 0.0
    %1563 = vadd.xlane.f32.xlu0 %v1562
    %v1564 = vpop.xlane.xlu0 %1563
    %v1565 = vsel %vm143, %v1385, 0.0
    %1566 = vadd.xlane.f32.xlu0 %v1565
    %v1567 = vpop.xlane.xlu0 %1566
    %v1568 = vsel %vm143, %v1386, 0.0
    %1569 = vadd.xlane.f32.xlu0 %v1568
    %v1570 = vpop.xlane.xlu0 %1569
    %v1571 = vsel %vm143, %v1387, 0.0
    %1572 = vadd.xlane.f32.xlu0 %v1571
    %v1573 = vpop.xlane.xlu0 %1572
    %v1574 = vsel %vm143, %v1388, 0.0
    %1575 = vadd.xlane.f32.xlu0 %v1574
    %v1576 = vpop.xlane.xlu0 %1575
    %v1577 = vsel %vm143, %v1389, 0.0
    %1578 = vadd.xlane.f32.xlu0 %v1577
    %v1579 = vpop.xlane.xlu0 %1578
    %v1580 = vsel %vm143, %v1390, 0.0
    %1581 = vadd.xlane.f32.xlu0 %v1580
    %v1582 = vpop.xlane.xlu0 %1581
    %v1583 = vsel %vm143, %v1391, 0.0
    %1584 = vadd.xlane.f32.xlu0 %v1583
    %v1585 = vpop.xlane.xlu0 %1584
    %v1586 = vsel %vm143, %v1392, 0.0
    %1587 = vadd.xlane.f32.xlu0 %v1586
    %v1588 = vpop.xlane.xlu0 %1587
    %v1589 = vsel %vm143, %v1393, 0.0
    %1590 = vadd.xlane.f32.xlu0 %v1589
    %v1591 = vpop.xlane.xlu0 %1590
    %v1592 = vsel %vm143, %v1394, 0.0
    %1593 = vadd.xlane.f32.xlu0 %v1592
    %v1594 = vpop.xlane.xlu0 %1593
    %v1595 = vsel %vm143, %v1395, 0.0
    %1596 = vadd.xlane.f32.xlu0 %v1595
    %v1597 = vpop.xlane.xlu0 %1596
    %v1598 = vsel %vm143, %v1396, 0.0
    %1599 = vadd.xlane.f32.xlu0 %v1598
    %v1600 = vpop.xlane.xlu0 %1599
    %v1601 = vsel %vm143, %v1397, 0.0
    %1602 = vadd.xlane.f32.xlu0 %v1601
    %v1603 = vpop.xlane.xlu0 %1602
    %v1604 = vsel %vm143, %v1398, 0.0
    %1605 = vadd.xlane.f32.xlu0 %v1604
    %v1606 = vpop.xlane.xlu0 %1605
    %v1607 = vsel %vm143, %v1399, 0.0
    %1608 = vadd.xlane.f32.xlu0 %v1607
    %v1609 = vpop.xlane.xlu0 %1608
    %v1610 = vsel %vm143, %v1400, 0.0
    %1611 = vadd.xlane.f32.xlu0 %v1610
    %v1612 = vpop.xlane.xlu0 %1611
    %v1613 = vsel %vm143, %v1401, 0.0
    %1614 = vadd.xlane.f32.xlu0 %v1613
    %v1615 = vpop.xlane.xlu0 %1614
    %v1616 = vsel %vm143, %v1402, 0.0
    %1617 = vadd.xlane.f32.xlu0 %v1616
    %v1618 = vpop.xlane.xlu0 %1617
    %v1619 = vsel %vm143, %v1403, 0.0
    %1620 = vadd.xlane.f32.xlu0 %v1619
    %v1621 = vpop.xlane.xlu0 %1620
    %v1622 = vsel %vm143, %v1404, 0.0
    %1623 = vadd.xlane.f32.xlu0 %v1622
    %v1624 = vpop.xlane.xlu0 %1623
    %v1625 = vsel %vm143, %v1405, 0.0
    %1626 = vadd.xlane.f32.xlu0 %v1625
    %v1627 = vpop.xlane.xlu0 %1626
    %v1628 = vsel %vm143, %v1406, 0.0
    %1629 = vadd.xlane.f32.xlu0 %v1628
    %v1630 = vpop.xlane.xlu0 %1629
    %v1631 = vsel %vm143, %v1407, 0.0
    %1632 = vadd.xlane.f32.xlu0 %v1631
    %v1633 = vpop.xlane.xlu0 %1632
    %v1634 = vsel %vm143, %v1408, 0.0
    %1635 = vadd.xlane.f32.xlu0 %v1634
    %v1636 = vpop.xlane.xlu0 %1635
    %v1637 = vsel %vm143, %v1409, 0.0
    %1638 = vadd.xlane.f32.xlu0 %v1637
    %v1639 = vpop.xlane.xlu0 %1638
    %v1640 = vsel %vm143, %v1410, 0.0
    %1641 = vadd.xlane.f32.xlu0 %v1640
    %v1642 = vpop.xlane.xlu0 %1641
    %v1643 = vsel %vm143, %v1411, 0.0
    %1644 = vadd.xlane.f32.xlu0 %v1643
    %v1645 = vpop.xlane.xlu0 %1644
    %v1646 = vsel %vm143, %v1412, 0.0
    %1647 = vadd.xlane.f32.xlu0 %v1646
    %v1648 = vpop.xlane.xlu0 %1647
    %v1649 = vsel %vm143, %v1413, 0.0
    %1650 = vadd.xlane.f32.xlu0 %v1649
    %v1651 = vpop.xlane.xlu0 %1650
    %v1652 = vsel %vm143, %v1414, 0.0
    %1653 = vadd.xlane.f32.xlu0 %v1652
    %v1654 = vpop.xlane.xlu0 %1653
    %v1655 = vsel %vm143, %v1415, 0.0
    %1656 = vadd.xlane.f32.xlu0 %v1655
    %v1657 = vpop.xlane.xlu0 %1656
    %v1658 = vsel %vm143, %v1416, 0.0
    %1659 = vadd.xlane.f32.xlu0 %v1658
    %v1660 = vpop.xlane.xlu0 %1659
    %v1661 = vsel %vm143, %v1417, 0.0
    %1662 = vadd.xlane.f32.xlu0 %v1661
    %v1663 = vpop.xlane.xlu0 %1662
    %v1664 = vsel %vm143, %v1418, 0.0
    %1665 = vadd.xlane.f32.xlu0 %v1664
    %v1666 = vpop.xlane.xlu0 %1665
    %v1667 = vsel %vm143, %v1419, 0.0
    %1668 = vadd.xlane.f32.xlu0 %v1667
    %v1669 = vpop.xlane.xlu0 %1668
    %v1670 = vsel %vm143, %v1420, 0.0
    %1671 = vadd.xlane.f32.xlu0 %v1670
    %v1672 = vpop.xlane.xlu0 %1671
    %v1673 = vsel %vm143, %v1421, 0.0
    %1674 = vadd.xlane.f32.xlu0 %v1673
    %v1675 = vpop.xlane.xlu0 %1674
    %v1676 = vsel %vm143, %v1422, 0.0
    %1677 = vadd.xlane.f32.xlu0 %v1676
    %v1678 = vpop.xlane.xlu0 %1677
    %v1679 = vsel %vm143, %v1423, 0.0
    %1680 = vadd.xlane.f32.xlu0 %v1679
    %v1681 = vpop.xlane.xlu0 %1680
    %v1682 = vsel %vm143, %v1424, 0.0
    %1683 = vadd.xlane.f32.xlu0 %v1682
    %v1684 = vpop.xlane.xlu0 %1683
    %v1685 = vsel %vm143, %v1425, 0.0
    %1686 = vadd.xlane.f32.xlu0 %v1685
    %v1687 = vpop.xlane.xlu0 %1686
    %v1688 = vsel %vm143, %v1426, 0.0
    %1689 = vadd.xlane.f32.xlu0 %v1688
    %v1690 = vpop.xlane.xlu0 %1689
    %v1691 = vsel %vm143, %v1427, 0.0
    %1692 = vadd.xlane.f32.xlu0 %v1691
    %v1693 = vpop.xlane.xlu0 %1692
    %v1694 = vsel %vm143, %v1428, 0.0
    %1695 = vadd.xlane.f32.xlu0 %v1694
    %v1696 = vpop.xlane.xlu0 %1695
    %v1697 = vsel %vm143, %v1429, 0.0
    %1698 = vadd.xlane.f32.xlu0 %v1697
    %v1699 = vpop.xlane.xlu0 %1698
    %v1700 = vsel %vm143, %v1430, 0.0
    %1701 = vadd.xlane.f32.xlu0 %v1700
    %v1702 = vpop.xlane.xlu0 %1701
    %v1703 = vsel %vm143, %v1431, 0.0
    %1704 = vadd.xlane.f32.xlu0 %v1703
    %v1705 = vpop.xlane.xlu0 %1704
    %v1706 = vsel %vm143, %v1432, 0.0
    %1707 = vadd.xlane.f32.xlu0 %v1706
    %v1708 = vpop.xlane.xlu0 %1707
    %v1709 = vsel %vm143, %v1433, 0.0
    %1710 = vadd.xlane.f32.xlu0 %v1709
    %v1711 = vpop.xlane.xlu0 %1710
    %v1712 = vsel %vm143, %v1434, 0.0
    %1713 = vadd.xlane.f32.xlu0 %v1712
    %v1714 = vpop.xlane.xlu0 %1713
    %v1715 = vsel %vm143, %v1435, 0.0
    %1716 = vadd.xlane.f32.xlu0 %v1715
    %v1717 = vpop.xlane.xlu0 %1716
    %v1718 = vsel %vm143, %v1436, 0.0
    %1719 = vadd.xlane.f32.xlu0 %v1718
    %v1720 = vpop.xlane.xlu0 %1719
    %v1721 = vsel %vm143, %v1437, 0.0
    %1722 = vadd.xlane.f32.xlu0 %v1721
    %v1723 = vpop.xlane.xlu0 %1722
    %v1724 = vsel %vm143, %v1438, 0.0
    %1725 = vadd.xlane.f32.xlu0 %v1724
    %v1726 = vpop.xlane.xlu0 %1725
    %v1727 = vsel %vm143, %v1439, 0.0
    %1728 = vadd.xlane.f32.xlu0 %v1727
    %v1729 = vpop.xlane.xlu0 %1728
    %v1730 = vsel %vm143, %v1440, 0.0
    %1731 = vadd.xlane.f32.xlu0 %v1730
    %v1732 = vpop.xlane.xlu0 %1731
    %v1733 = vsel %vm143, %v1441, 0.0
    %1734 = vadd.xlane.f32.xlu0 %v1733
    %v1735 = vpop.xlane.xlu0 %1734
    %v1736 = vsel %vm143, %v1442, 0.0
    %1737 = vadd.xlane.f32.xlu0 %v1736
    %v1738 = vpop.xlane.xlu0 %1737
    %v1739 = vsel %vm143, %v1443, 0.0
    %1740 = vadd.xlane.f32.xlu0 %v1739
    %v1741 = vpop.xlane.xlu0 %1740
    %v1742 = vsel %vm143, %v1444, 0.0
    %1743 = vadd.xlane.f32.xlu0 %v1742
    %v1744 = vpop.xlane.xlu0 %1743
    %v1745 = vmul.f32 %v1447, %v444
    %v1746 = vmul.f32 %v1450, %v444
    %v1747 = vmul.f32 %v1453, %v444
    %v1748 = vmul.f32 %v1456, %v444
    %v1749 = vmul.f32 %v1459, %v444
    %v1750 = vmul.f32 %v1462, %v444
    %v1751 = vmul.f32 %v1465, %v444
    %v1752 = vmul.f32 %v1468, %v444
    %v1753 = vmul.f32 %v1471, %v444
    %v1754 = vmul.f32 %v1474, %v444
    %v1755 = vmul.f32 %v1477, %v444
    %v1756 = vmul.f32 %v1480, %v444
    %v1757 = vmul.f32 %v1483, %v444
    %v1758 = vmul.f32 %v1486, %v444
    %v1759 = vmul.f32 %v1489, %v444
    %v1760 = vmul.f32 %v1492, %v444
    %v1761 = vmul.f32 %v1495, %v444
    %v1762 = vmul.f32 %v1498, %v444
    %v1763 = vmul.f32 %v1501, %v444
    %v1764 = vmul.f32 %v1504, %v444
    %v1765 = vmul.f32 %v1507, %v444
    %v1766 = vmul.f32 %v1510, %v444
    %v1767 = vmul.f32 %v1513, %v444
    %v1768 = vmul.f32 %v1516, %v444
    %v1769 = vmul.f32 %v1519, %v444
    %v1770 = vmul.f32 %v1522, %v444
    %v1771 = vmul.f32 %v1525, %v444
    %v1772 = vmul.f32 %v1528, %v444
    %v1773 = vmul.f32 %v1531, %v444
    %v1774 = vmul.f32 %v1534, %v444
    %v1775 = vmul.f32 %v1537, %v444
    %v1776 = vmul.f32 %v1540, %v444
    %v1777 = vmul.f32 %v1543, %v444
    %v1778 = vmul.f32 %v1546, %v444
    %v1779 = vmul.f32 %v1549, %v444
    %v1780 = vmul.f32 %v1552, %v444
    %v1781 = vmul.f32 %v1555, %v444
    %v1782 = vmul.f32 %v1558, %v444
    %v1783 = vmul.f32 %v1561, %v444
    %v1784 = vmul.f32 %v1564, %v444
    %v1785 = vmul.f32 %v1567, %v444
    %v1786 = vmul.f32 %v1570, %v444
    %v1787 = vmul.f32 %v1573, %v444
    %v1788 = vmul.f32 %v1576, %v444
    %v1789 = vmul.f32 %v1579, %v444
    %v1790 = vmul.f32 %v1582, %v444
    %v1791 = vmul.f32 %v1585, %v444
    %v1792 = vmul.f32 %v1588, %v444
    %v1793 = vmul.f32 %v1591, %v444
    %v1794 = vmul.f32 %v1594, %v444
    %v1795 = vmul.f32 %v1597, %v444
    %v1796 = vmul.f32 %v1600, %v444
    %v1797 = vmul.f32 %v1603, %v444
    %v1798 = vmul.f32 %v1606, %v444
    %v1799 = vmul.f32 %v1609, %v444
    %v1800 = vmul.f32 %v1612, %v444
    %v1801 = vmul.f32 %v1615, %v444
    %v1802 = vmul.f32 %v1618, %v444
    %v1803 = vmul.f32 %v1621, %v444
    %v1804 = vmul.f32 %v1624, %v444
    %v1805 = vmul.f32 %v1627, %v444
    %v1806 = vmul.f32 %v1630, %v444
    %v1807 = vmul.f32 %v1633, %v444
    %v1808 = vmul.f32 %v1636, %v444
    %v1809 = vmul.f32 %v1639, %v444
    %v1810 = vmul.f32 %v1642, %v444
    %v1811 = vmul.f32 %v1645, %v444
    %v1812 = vmul.f32 %v1648, %v444
    %v1813 = vmul.f32 %v1651, %v444
    %v1814 = vmul.f32 %v1654, %v444
    %v1815 = vmul.f32 %v1657, %v444
    %v1816 = vmul.f32 %v1660, %v444
    %v1817 = vmul.f32 %v1663, %v444
    %v1818 = vmul.f32 %v1666, %v444
    %v1819 = vmul.f32 %v1669, %v444
    %v1820 = vmul.f32 %v1672, %v444
    %v1821 = vmul.f32 %v1675, %v444
    %v1822 = vmul.f32 %v1678, %v444
    %v1823 = vmul.f32 %v1681, %v444
    %v1824 = vmul.f32 %v1684, %v444
    %v1825 = vmul.f32 %v1687, %v444
    %v1826 = vmul.f32 %v1690, %v444
    %v1827 = vmul.f32 %v1693, %v444
    %v1828 = vmul.f32 %v1696, %v444
    %v1829 = vmul.f32 %v1699, %v444
    %v1830 = vmul.f32 %v1702, %v444
    %v1831 = vmul.f32 %v1705, %v444
    %v1832 = vmul.f32 %v1708, %v444
    %v1833 = vmul.f32 %v1711, %v444
    %v1834 = vmul.f32 %v1714, %v444
    %v1835 = vmul.f32 %v1717, %v444
    %v1836 = vmul.f32 %v1720, %v444
    %v1837 = vmul.f32 %v1723, %v444
    %v1838 = vmul.f32 %v1726, %v444
    %v1839 = vmul.f32 %v1729, %v444
    %v1840 = vmul.f32 %v1732, %v444
    %v1841 = vmul.f32 %v1735, %v444
    %v1842 = vmul.f32 %v1738, %v444
    %v1843 = vmul.f32 %v1741, %v444
    %v1844 = vmul.f32 %v1744, %v444
    %1945 = vrot.lane.b32.xlu0 %v1345, 64
    %v1946 = vpop.permute.xlu0 %1945
    %1947 = vrot.lane.b32.xlu0 %v1346, 64
    %v1948 = vpop.permute.xlu0 %1947
    %1949 = vrot.lane.b32.xlu0 %v1347, 64
    %v1950 = vpop.permute.xlu0 %1949
    %1951 = vrot.lane.b32.xlu0 %v1348, 64
    %v1952 = vpop.permute.xlu0 %1951
    %1953 = vrot.lane.b32.xlu0 %v1349, 64
    %v1954 = vpop.permute.xlu0 %1953
    %1955 = vrot.lane.b32.xlu0 %v1350, 64
    %v1956 = vpop.permute.xlu0 %1955
    %1957 = vrot.lane.b32.xlu0 %v1351, 64
    %v1958 = vpop.permute.xlu0 %1957
    %1959 = vrot.lane.b32.xlu0 %v1352, 64
    %v1960 = vpop.permute.xlu0 %1959
    %1961 = vrot.lane.b32.xlu0 %v1353, 64
    %v1962 = vpop.permute.xlu0 %1961
    %1963 = vrot.lane.b32.xlu0 %v1354, 64
    %v1964 = vpop.permute.xlu0 %1963
    %1965 = vrot.lane.b32.xlu0 %v1355, 64
    %v1966 = vpop.permute.xlu0 %1965
    %1967 = vrot.lane.b32.xlu0 %v1356, 64
    %v1968 = vpop.permute.xlu0 %1967
    %1969 = vrot.lane.b32.xlu0 %v1357, 64
    %v1970 = vpop.permute.xlu0 %1969
    %1971 = vrot.lane.b32.xlu0 %v1358, 64
    %v1972 = vpop.permute.xlu0 %1971
    %1973 = vrot.lane.b32.xlu0 %v1359, 64
    %v1974 = vpop.permute.xlu0 %1973
    %1975 = vrot.lane.b32.xlu0 %v1360, 64
    %v1976 = vpop.permute.xlu0 %1975
    %1977 = vrot.lane.b32.xlu0 %v1361, 64
    %v1978 = vpop.permute.xlu0 %1977
    %1979 = vrot.lane.b32.xlu0 %v1362, 64
    %v1980 = vpop.permute.xlu0 %1979
    %1981 = vrot.lane.b32.xlu0 %v1363, 64
    %v1982 = vpop.permute.xlu0 %1981
    %1983 = vrot.lane.b32.xlu0 %v1364, 64
    %v1984 = vpop.permute.xlu0 %1983
    %1985 = vrot.lane.b32.xlu0 %v1365, 64
    %v1986 = vpop.permute.xlu0 %1985
    %1987 = vrot.lane.b32.xlu0 %v1366, 64
    %v1988 = vpop.permute.xlu0 %1987
    %1989 = vrot.lane.b32.xlu0 %v1367, 64
    %v1990 = vpop.permute.xlu0 %1989
    %1991 = vrot.lane.b32.xlu0 %v1368, 64
    %v1992 = vpop.permute.xlu0 %1991
    %1993 = vrot.lane.b32.xlu0 %v1369, 64
    %v1994 = vpop.permute.xlu0 %1993
    %1995 = vrot.lane.b32.xlu0 %v1370, 64
    %v1996 = vpop.permute.xlu0 %1995
    %1997 = vrot.lane.b32.xlu0 %v1371, 64
    %v1998 = vpop.permute.xlu0 %1997
    %1999 = vrot.lane.b32.xlu0 %v1372, 64
    %v2000 = vpop.permute.xlu0 %1999
    %2001 = vrot.lane.b32.xlu0 %v1373, 64
    %v2002 = vpop.permute.xlu0 %2001
    %2003 = vrot.lane.b32.xlu0 %v1374, 64
    %v2004 = vpop.permute.xlu0 %2003
    %2005 = vrot.lane.b32.xlu0 %v1375, 64
    %v2006 = vpop.permute.xlu0 %2005
    %2007 = vrot.lane.b32.xlu0 %v1376, 64
    %v2008 = vpop.permute.xlu0 %2007
    %2009 = vrot.lane.b32.xlu0 %v1377, 64
    %v2010 = vpop.permute.xlu0 %2009
    %2011 = vrot.lane.b32.xlu0 %v1378, 64
    %v2012 = vpop.permute.xlu0 %2011
    %2013 = vrot.lane.b32.xlu0 %v1379, 64
    %v2014 = vpop.permute.xlu0 %2013
    %2015 = vrot.lane.b32.xlu0 %v1380, 64
    %v2016 = vpop.permute.xlu0 %2015
    %2017 = vrot.lane.b32.xlu0 %v1381, 64
    %v2018 = vpop.permute.xlu0 %2017
    %2019 = vrot.lane.b32.xlu0 %v1382, 64
    %v2020 = vpop.permute.xlu0 %2019
    %2021 = vrot.lane.b32.xlu0 %v1383, 64
    %v2022 = vpop.permute.xlu0 %2021
    %2023 = vrot.lane.b32.xlu0 %v1384, 64
    %v2024 = vpop.permute.xlu0 %2023
    %2025 = vrot.lane.b32.xlu0 %v1385, 64
    %v2026 = vpop.permute.xlu0 %2025
    %2027 = vrot.lane.b32.xlu0 %v1386, 64
    %v2028 = vpop.permute.xlu0 %2027
    %2029 = vrot.lane.b32.xlu0 %v1387, 64
    %v2030 = vpop.permute.xlu0 %2029
    %2031 = vrot.lane.b32.xlu0 %v1388, 64
    %v2032 = vpop.permute.xlu0 %2031
    %2033 = vrot.lane.b32.xlu0 %v1389, 64
    %v2034 = vpop.permute.xlu0 %2033
    %2035 = vrot.lane.b32.xlu0 %v1390, 64
    %v2036 = vpop.permute.xlu0 %2035
    %2037 = vrot.lane.b32.xlu0 %v1391, 64
    %v2038 = vpop.permute.xlu0 %2037
    %2039 = vrot.lane.b32.xlu0 %v1392, 64
    %v2040 = vpop.permute.xlu0 %2039
    %2041 = vrot.lane.b32.xlu0 %v1393, 64
    %v2042 = vpop.permute.xlu0 %2041
    %2043 = vrot.lane.b32.xlu0 %v1394, 64
    %v2044 = vpop.permute.xlu0 %2043
    %2045 = vrot.lane.b32.xlu0 %v1395, 64
    %v2046 = vpop.permute.xlu0 %2045
    %2047 = vrot.lane.b32.xlu0 %v1396, 64
    %v2048 = vpop.permute.xlu0 %2047
    %2049 = vrot.lane.b32.xlu0 %v1397, 64
    %v2050 = vpop.permute.xlu0 %2049
    %2051 = vrot.lane.b32.xlu0 %v1398, 64
    %v2052 = vpop.permute.xlu0 %2051
    %2053 = vrot.lane.b32.xlu0 %v1399, 64
    %v2054 = vpop.permute.xlu0 %2053
    %2055 = vrot.lane.b32.xlu0 %v1400, 64
    %v2056 = vpop.permute.xlu0 %2055
    %2057 = vrot.lane.b32.xlu0 %v1401, 64
    %v2058 = vpop.permute.xlu0 %2057
    %2059 = vrot.lane.b32.xlu0 %v1402, 64
    %v2060 = vpop.permute.xlu0 %2059
    %2061 = vrot.lane.b32.xlu0 %v1403, 64
    %v2062 = vpop.permute.xlu0 %2061
    %2063 = vrot.lane.b32.xlu0 %v1404, 64
    %v2064 = vpop.permute.xlu0 %2063
    %2065 = vrot.lane.b32.xlu0 %v1405, 64
    %v2066 = vpop.permute.xlu0 %2065
    %2067 = vrot.lane.b32.xlu0 %v1406, 64
    %v2068 = vpop.permute.xlu0 %2067
    %2069 = vrot.lane.b32.xlu0 %v1407, 64
    %v2070 = vpop.permute.xlu0 %2069
    %2071 = vrot.lane.b32.xlu0 %v1408, 64
    %v2072 = vpop.permute.xlu0 %2071
    %2073 = vrot.lane.b32.xlu0 %v1409, 64
    %v2074 = vpop.permute.xlu0 %2073
    %2075 = vrot.lane.b32.xlu0 %v1410, 64
    %v2076 = vpop.permute.xlu0 %2075
    %2077 = vrot.lane.b32.xlu0 %v1411, 64
    %v2078 = vpop.permute.xlu0 %2077
    %2079 = vrot.lane.b32.xlu0 %v1412, 64
    %v2080 = vpop.permute.xlu0 %2079
    %2081 = vrot.lane.b32.xlu0 %v1413, 64
    %v2082 = vpop.permute.xlu0 %2081
    %2083 = vrot.lane.b32.xlu0 %v1414, 64
    %v2084 = vpop.permute.xlu0 %2083
    %2085 = vrot.lane.b32.xlu0 %v1415, 64
    %v2086 = vpop.permute.xlu0 %2085
    %2087 = vrot.lane.b32.xlu0 %v1416, 64
    %v2088 = vpop.permute.xlu0 %2087
    %2089 = vrot.lane.b32.xlu0 %v1417, 64
    %v2090 = vpop.permute.xlu0 %2089
    %2091 = vrot.lane.b32.xlu0 %v1418, 64
    %v2092 = vpop.permute.xlu0 %2091
    %2093 = vrot.lane.b32.xlu0 %v1419, 64
    %v2094 = vpop.permute.xlu0 %2093
    %2095 = vrot.lane.b32.xlu0 %v1420, 64
    %v2096 = vpop.permute.xlu0 %2095
    %2097 = vrot.lane.b32.xlu0 %v1421, 64
    %v2098 = vpop.permute.xlu0 %2097
    %2099 = vrot.lane.b32.xlu0 %v1422, 64
    %v2100 = vpop.permute.xlu0 %2099
    %2101 = vrot.lane.b32.xlu0 %v1423, 64
    %v2102 = vpop.permute.xlu0 %2101
    %2103 = vrot.lane.b32.xlu0 %v1424, 64
    %v2104 = vpop.permute.xlu0 %2103
    %2105 = vrot.lane.b32.xlu0 %v1425, 64
    %v2106 = vpop.permute.xlu0 %2105
    %2107 = vrot.lane.b32.xlu0 %v1426, 64
    %v2108 = vpop.permute.xlu0 %2107
    %2109 = vrot.lane.b32.xlu0 %v1427, 64
    %v2110 = vpop.permute.xlu0 %2109
    %2111 = vrot.lane.b32.xlu0 %v1428, 64
    %v2112 = vpop.permute.xlu0 %2111
    %2113 = vrot.lane.b32.xlu0 %v1429, 64
    %v2114 = vpop.permute.xlu0 %2113
    %2115 = vrot.lane.b32.xlu0 %v1430, 64
    %v2116 = vpop.permute.xlu0 %2115
    %2117 = vrot.lane.b32.xlu0 %v1431, 64
    %v2118 = vpop.permute.xlu0 %2117
    %2119 = vrot.lane.b32.xlu0 %v1432, 64
    %v2120 = vpop.permute.xlu0 %2119
    %2121 = vrot.lane.b32.xlu0 %v1433, 64
    %v2122 = vpop.permute.xlu0 %2121
    %2123 = vrot.lane.b32.xlu0 %v1434, 64
    %v2124 = vpop.permute.xlu0 %2123
    %2125 = vrot.lane.b32.xlu0 %v1435, 64
    %v2126 = vpop.permute.xlu0 %2125
    %2127 = vrot.lane.b32.xlu0 %v1436, 64
    %v2128 = vpop.permute.xlu0 %2127
    %2129 = vrot.lane.b32.xlu0 %v1437, 64
    %v2130 = vpop.permute.xlu0 %2129
    %2131 = vrot.lane.b32.xlu0 %v1438, 64
    %v2132 = vpop.permute.xlu0 %2131
    %2133 = vrot.lane.b32.xlu0 %v1439, 64
    %v2134 = vpop.permute.xlu0 %2133
    %2135 = vrot.lane.b32.xlu0 %v1440, 64
    %v2136 = vpop.permute.xlu0 %2135
    %2137 = vrot.lane.b32.xlu0 %v1441, 64
    %v2138 = vpop.permute.xlu0 %2137
    %2139 = vrot.lane.b32.xlu0 %v1442, 64
    %v2140 = vpop.permute.xlu0 %2139
    %2141 = vrot.lane.b32.xlu0 %v1443, 64
    %v2142 = vpop.permute.xlu0 %2141
    %2143 = vrot.lane.b32.xlu0 %v1444, 64
    %v2144 = vpop.permute.xlu0 %2143
    %v2245 = vsel %vm143, %v1946, 0.0
    %2246 = vadd.xlane.f32.xlu0 %v2245
    %v2247 = vpop.xlane.xlu0 %2246
    %v2248 = vsel %vm143, %v1948, 0.0
    %2249 = vadd.xlane.f32.xlu0 %v2248
    %v2250 = vpop.xlane.xlu0 %2249
    %v2251 = vsel %vm143, %v1950, 0.0
    %2252 = vadd.xlane.f32.xlu0 %v2251
    %v2253 = vpop.xlane.xlu0 %2252
    %v2254 = vsel %vm143, %v1952, 0.0
    %2255 = vadd.xlane.f32.xlu0 %v2254
    %v2256 = vpop.xlane.xlu0 %2255
    %v2257 = vsel %vm143, %v1954, 0.0
    %2258 = vadd.xlane.f32.xlu0 %v2257
    %v2259 = vpop.xlane.xlu0 %2258
    %v2260 = vsel %vm143, %v1956, 0.0
    %2261 = vadd.xlane.f32.xlu0 %v2260
    %v2262 = vpop.xlane.xlu0 %2261
    %v2263 = vsel %vm143, %v1958, 0.0
    %2264 = vadd.xlane.f32.xlu0 %v2263
    %v2265 = vpop.xlane.xlu0 %2264
    %v2266 = vsel %vm143, %v1960, 0.0
    %2267 = vadd.xlane.f32.xlu0 %v2266
    %v2268 = vpop.xlane.xlu0 %2267
    %v2269 = vsel %vm143, %v1962, 0.0
    %2270 = vadd.xlane.f32.xlu0 %v2269
    %v2271 = vpop.xlane.xlu0 %2270
    %v2272 = vsel %vm143, %v1964, 0.0
    %2273 = vadd.xlane.f32.xlu0 %v2272
    %v2274 = vpop.xlane.xlu0 %2273
    %v2275 = vsel %vm143, %v1966, 0.0
    %2276 = vadd.xlane.f32.xlu0 %v2275
    %v2277 = vpop.xlane.xlu0 %2276
    %v2278 = vsel %vm143, %v1968, 0.0
    %2279 = vadd.xlane.f32.xlu0 %v2278
    %v2280 = vpop.xlane.xlu0 %2279
    %v2281 = vsel %vm143, %v1970, 0.0
    %2282 = vadd.xlane.f32.xlu0 %v2281
    %v2283 = vpop.xlane.xlu0 %2282
    %v2284 = vsel %vm143, %v1972, 0.0
    %2285 = vadd.xlane.f32.xlu0 %v2284
    %v2286 = vpop.xlane.xlu0 %2285
    %v2287 = vsel %vm143, %v1974, 0.0
    %2288 = vadd.xlane.f32.xlu0 %v2287
    %v2289 = vpop.xlane.xlu0 %2288
    %v2290 = vsel %vm143, %v1976, 0.0
    %2291 = vadd.xlane.f32.xlu0 %v2290
    %v2292 = vpop.xlane.xlu0 %2291
    %v2293 = vsel %vm143, %v1978, 0.0
    %2294 = vadd.xlane.f32.xlu0 %v2293
    %v2295 = vpop.xlane.xlu0 %2294
    %v2296 = vsel %vm143, %v1980, 0.0
    %2297 = vadd.xlane.f32.xlu0 %v2296
    %v2298 = vpop.xlane.xlu0 %2297
    %v2299 = vsel %vm143, %v1982, 0.0
    %2300 = vadd.xlane.f32.xlu0 %v2299
    %v2301 = vpop.xlane.xlu0 %2300
    %v2302 = vsel %vm143, %v1984, 0.0
    %2303 = vadd.xlane.f32.xlu0 %v2302
    %v2304 = vpop.xlane.xlu0 %2303
    %v2305 = vsel %vm143, %v1986, 0.0
    %2306 = vadd.xlane.f32.xlu0 %v2305
    %v2307 = vpop.xlane.xlu0 %2306
    %v2308 = vsel %vm143, %v1988, 0.0
    %2309 = vadd.xlane.f32.xlu0 %v2308
    %v2310 = vpop.xlane.xlu0 %2309
    %v2311 = vsel %vm143, %v1990, 0.0
    %2312 = vadd.xlane.f32.xlu0 %v2311
    %v2313 = vpop.xlane.xlu0 %2312
    %v2314 = vsel %vm143, %v1992, 0.0
    %2315 = vadd.xlane.f32.xlu0 %v2314
    %v2316 = vpop.xlane.xlu0 %2315
    %v2317 = vsel %vm143, %v1994, 0.0
    %2318 = vadd.xlane.f32.xlu0 %v2317
    %v2319 = vpop.xlane.xlu0 %2318
    %v2320 = vsel %vm143, %v1996, 0.0
    %2321 = vadd.xlane.f32.xlu0 %v2320
    %v2322 = vpop.xlane.xlu0 %2321
    %v2323 = vsel %vm143, %v1998, 0.0
    %2324 = vadd.xlane.f32.xlu0 %v2323
    %v2325 = vpop.xlane.xlu0 %2324
    %v2326 = vsel %vm143, %v2000, 0.0
    %2327 = vadd.xlane.f32.xlu0 %v2326
    %v2328 = vpop.xlane.xlu0 %2327
    %v2329 = vsel %vm143, %v2002, 0.0
    %2330 = vadd.xlane.f32.xlu0 %v2329
    %v2331 = vpop.xlane.xlu0 %2330
    %v2332 = vsel %vm143, %v2004, 0.0
    %2333 = vadd.xlane.f32.xlu0 %v2332
    %v2334 = vpop.xlane.xlu0 %2333
    %v2335 = vsel %vm143, %v2006, 0.0
    %2336 = vadd.xlane.f32.xlu0 %v2335
    %v2337 = vpop.xlane.xlu0 %2336
    %v2338 = vsel %vm143, %v2008, 0.0
    %2339 = vadd.xlane.f32.xlu0 %v2338
    %v2340 = vpop.xlane.xlu0 %2339
    %v2341 = vsel %vm143, %v2010, 0.0
    %2342 = vadd.xlane.f32.xlu0 %v2341
    %v2343 = vpop.xlane.xlu0 %2342
    %v2344 = vsel %vm143, %v2012, 0.0
    %2345 = vadd.xlane.f32.xlu0 %v2344
    %v2346 = vpop.xlane.xlu0 %2345
    %v2347 = vsel %vm143, %v2014, 0.0
    %2348 = vadd.xlane.f32.xlu0 %v2347
    %v2349 = vpop.xlane.xlu0 %2348
    %v2350 = vsel %vm143, %v2016, 0.0
    %2351 = vadd.xlane.f32.xlu0 %v2350
    %v2352 = vpop.xlane.xlu0 %2351
    %v2353 = vsel %vm143, %v2018, 0.0
    %2354 = vadd.xlane.f32.xlu0 %v2353
    %v2355 = vpop.xlane.xlu0 %2354
    %v2356 = vsel %vm143, %v2020, 0.0
    %2357 = vadd.xlane.f32.xlu0 %v2356
    %v2358 = vpop.xlane.xlu0 %2357
    %v2359 = vsel %vm143, %v2022, 0.0
    %2360 = vadd.xlane.f32.xlu0 %v2359
    %v2361 = vpop.xlane.xlu0 %2360
    %v2362 = vsel %vm143, %v2024, 0.0
    %2363 = vadd.xlane.f32.xlu0 %v2362
    %v2364 = vpop.xlane.xlu0 %2363
    %v2365 = vsel %vm143, %v2026, 0.0
    %2366 = vadd.xlane.f32.xlu0 %v2365
    %v2367 = vpop.xlane.xlu0 %2366
    %v2368 = vsel %vm143, %v2028, 0.0
    %2369 = vadd.xlane.f32.xlu0 %v2368
    %v2370 = vpop.xlane.xlu0 %2369
    %v2371 = vsel %vm143, %v2030, 0.0
    %2372 = vadd.xlane.f32.xlu0 %v2371
    %v2373 = vpop.xlane.xlu0 %2372
    %v2374 = vsel %vm143, %v2032, 0.0
    %2375 = vadd.xlane.f32.xlu0 %v2374
    %v2376 = vpop.xlane.xlu0 %2375
    %v2377 = vsel %vm143, %v2034, 0.0
    %2378 = vadd.xlane.f32.xlu0 %v2377
    %v2379 = vpop.xlane.xlu0 %2378
    %v2380 = vsel %vm143, %v2036, 0.0
    %2381 = vadd.xlane.f32.xlu0 %v2380
    %v2382 = vpop.xlane.xlu0 %2381
    %v2383 = vsel %vm143, %v2038, 0.0
    %2384 = vadd.xlane.f32.xlu0 %v2383
    %v2385 = vpop.xlane.xlu0 %2384
    %v2386 = vsel %vm143, %v2040, 0.0
    %2387 = vadd.xlane.f32.xlu0 %v2386
    %v2388 = vpop.xlane.xlu0 %2387
    %v2389 = vsel %vm143, %v2042, 0.0
    %2390 = vadd.xlane.f32.xlu0 %v2389
    %v2391 = vpop.xlane.xlu0 %2390
    %v2392 = vsel %vm143, %v2044, 0.0
    %2393 = vadd.xlane.f32.xlu0 %v2392
    %v2394 = vpop.xlane.xlu0 %2393
    %v2395 = vsel %vm143, %v2046, 0.0
    %2396 = vadd.xlane.f32.xlu0 %v2395
    %v2397 = vpop.xlane.xlu0 %2396
    %v2398 = vsel %vm143, %v2048, 0.0
    %2399 = vadd.xlane.f32.xlu0 %v2398
    %v2400 = vpop.xlane.xlu0 %2399
    %v2401 = vsel %vm143, %v2050, 0.0
    %2402 = vadd.xlane.f32.xlu0 %v2401
    %v2403 = vpop.xlane.xlu0 %2402
    %v2404 = vsel %vm143, %v2052, 0.0
    %2405 = vadd.xlane.f32.xlu0 %v2404
    %v2406 = vpop.xlane.xlu0 %2405
    %v2407 = vsel %vm143, %v2054, 0.0
    %2408 = vadd.xlane.f32.xlu0 %v2407
    %v2409 = vpop.xlane.xlu0 %2408
    %v2410 = vsel %vm143, %v2056, 0.0
    %2411 = vadd.xlane.f32.xlu0 %v2410
    %v2412 = vpop.xlane.xlu0 %2411
    %v2413 = vsel %vm143, %v2058, 0.0
    %2414 = vadd.xlane.f32.xlu0 %v2413
    %v2415 = vpop.xlane.xlu0 %2414
    %v2416 = vsel %vm143, %v2060, 0.0
    %2417 = vadd.xlane.f32.xlu0 %v2416
    %v2418 = vpop.xlane.xlu0 %2417
    %v2419 = vsel %vm143, %v2062, 0.0
    %2420 = vadd.xlane.f32.xlu0 %v2419
    %v2421 = vpop.xlane.xlu0 %2420
    %v2422 = vsel %vm143, %v2064, 0.0
    %2423 = vadd.xlane.f32.xlu0 %v2422
    %v2424 = vpop.xlane.xlu0 %2423
    %v2425 = vsel %vm143, %v2066, 0.0
    %2426 = vadd.xlane.f32.xlu0 %v2425
    %v2427 = vpop.xlane.xlu0 %2426
    %v2428 = vsel %vm143, %v2068, 0.0
    %2429 = vadd.xlane.f32.xlu0 %v2428
    %v2430 = vpop.xlane.xlu0 %2429
    %v2431 = vsel %vm143, %v2070, 0.0
    %2432 = vadd.xlane.f32.xlu0 %v2431
    %v2433 = vpop.xlane.xlu0 %2432
    %v2434 = vsel %vm143, %v2072, 0.0
    %2435 = vadd.xlane.f32.xlu0 %v2434
    %v2436 = vpop.xlane.xlu0 %2435
    %v2437 = vsel %vm143, %v2074, 0.0
    %2438 = vadd.xlane.f32.xlu0 %v2437
    %v2439 = vpop.xlane.xlu0 %2438
    %v2440 = vsel %vm143, %v2076, 0.0
    %2441 = vadd.xlane.f32.xlu0 %v2440
    %v2442 = vpop.xlane.xlu0 %2441
    %v2443 = vsel %vm143, %v2078, 0.0
    %2444 = vadd.xlane.f32.xlu0 %v2443
    %v2445 = vpop.xlane.xlu0 %2444
    %v2446 = vsel %vm143, %v2080, 0.0
    %2447 = vadd.xlane.f32.xlu0 %v2446
    %v2448 = vpop.xlane.xlu0 %2447
    %v2449 = vsel %vm143, %v2082, 0.0
    %2450 = vadd.xlane.f32.xlu0 %v2449
    %v2451 = vpop.xlane.xlu0 %2450
    %v2452 = vsel %vm143, %v2084, 0.0
    %2453 = vadd.xlane.f32.xlu0 %v2452
    %v2454 = vpop.xlane.xlu0 %2453
    %v2455 = vsel %vm143, %v2086, 0.0
    %2456 = vadd.xlane.f32.xlu0 %v2455
    %v2457 = vpop.xlane.xlu0 %2456
    %v2458 = vsel %vm143, %v2088, 0.0
    %2459 = vadd.xlane.f32.xlu0 %v2458
    %v2460 = vpop.xlane.xlu0 %2459
    %v2461 = vsel %vm143, %v2090, 0.0
    %2462 = vadd.xlane.f32.xlu0 %v2461
    %v2463 = vpop.xlane.xlu0 %2462
    %v2464 = vsel %vm143, %v2092, 0.0
    %2465 = vadd.xlane.f32.xlu0 %v2464
    %v2466 = vpop.xlane.xlu0 %2465
    %v2467 = vsel %vm143, %v2094, 0.0
    %2468 = vadd.xlane.f32.xlu0 %v2467
    %v2469 = vpop.xlane.xlu0 %2468
    %v2470 = vsel %vm143, %v2096, 0.0
    %2471 = vadd.xlane.f32.xlu0 %v2470
    %v2472 = vpop.xlane.xlu0 %2471
    %v2473 = vsel %vm143, %v2098, 0.0
    %2474 = vadd.xlane.f32.xlu0 %v2473
    %v2475 = vpop.xlane.xlu0 %2474
    %v2476 = vsel %vm143, %v2100, 0.0
    %2477 = vadd.xlane.f32.xlu0 %v2476
    %v2478 = vpop.xlane.xlu0 %2477
    %v2479 = vsel %vm143, %v2102, 0.0
    %2480 = vadd.xlane.f32.xlu0 %v2479
    %v2481 = vpop.xlane.xlu0 %2480
    %v2482 = vsel %vm143, %v2104, 0.0
    %2483 = vadd.xlane.f32.xlu0 %v2482
    %v2484 = vpop.xlane.xlu0 %2483
    %v2485 = vsel %vm143, %v2106, 0.0
    %2486 = vadd.xlane.f32.xlu0 %v2485
    %v2487 = vpop.xlane.xlu0 %2486
    %v2488 = vsel %vm143, %v2108, 0.0
    %2489 = vadd.xlane.f32.xlu0 %v2488
    %v2490 = vpop.xlane.xlu0 %2489
    %v2491 = vsel %vm143, %v2110, 0.0
    %2492 = vadd.xlane.f32.xlu0 %v2491
    %v2493 = vpop.xlane.xlu0 %2492
    %v2494 = vsel %vm143, %v2112, 0.0
    %2495 = vadd.xlane.f32.xlu0 %v2494
    %v2496 = vpop.xlane.xlu0 %2495
    %v2497 = vsel %vm143, %v2114, 0.0
    %2498 = vadd.xlane.f32.xlu0 %v2497
    %v2499 = vpop.xlane.xlu0 %2498
    %v2500 = vsel %vm143, %v2116, 0.0
    %2501 = vadd.xlane.f32.xlu0 %v2500
    %v2502 = vpop.xlane.xlu0 %2501
    %v2503 = vsel %vm143, %v2118, 0.0
    %2504 = vadd.xlane.f32.xlu0 %v2503
    %v2505 = vpop.xlane.xlu0 %2504
    %v2506 = vsel %vm143, %v2120, 0.0
    %2507 = vadd.xlane.f32.xlu0 %v2506
    %v2508 = vpop.xlane.xlu0 %2507
    %v2509 = vsel %vm143, %v2122, 0.0
    %2510 = vadd.xlane.f32.xlu0 %v2509
    %v2511 = vpop.xlane.xlu0 %2510
    %v2512 = vsel %vm143, %v2124, 0.0
    %2513 = vadd.xlane.f32.xlu0 %v2512
    %v2514 = vpop.xlane.xlu0 %2513
    %v2515 = vsel %vm143, %v2126, 0.0
    %2516 = vadd.xlane.f32.xlu0 %v2515
    %v2517 = vpop.xlane.xlu0 %2516
    %v2518 = vsel %vm143, %v2128, 0.0
    %2519 = vadd.xlane.f32.xlu0 %v2518
    %v2520 = vpop.xlane.xlu0 %2519
    %v2521 = vsel %vm143, %v2130, 0.0
    %2522 = vadd.xlane.f32.xlu0 %v2521
    %v2523 = vpop.xlane.xlu0 %2522
    %v2524 = vsel %vm143, %v2132, 0.0
    %2525 = vadd.xlane.f32.xlu0 %v2524
    %v2526 = vpop.xlane.xlu0 %2525
    %v2527 = vsel %vm143, %v2134, 0.0
    %2528 = vadd.xlane.f32.xlu0 %v2527
    %v2529 = vpop.xlane.xlu0 %2528
    %v2530 = vsel %vm143, %v2136, 0.0
    %2531 = vadd.xlane.f32.xlu0 %v2530
    %v2532 = vpop.xlane.xlu0 %2531
    %v2533 = vsel %vm143, %v2138, 0.0
    %2534 = vadd.xlane.f32.xlu0 %v2533
    %v2535 = vpop.xlane.xlu0 %2534
    %v2536 = vsel %vm143, %v2140, 0.0
    %2537 = vadd.xlane.f32.xlu0 %v2536
    %v2538 = vpop.xlane.xlu0 %2537
    %v2539 = vsel %vm143, %v2142, 0.0
    %2540 = vadd.xlane.f32.xlu0 %v2539
    %v2541 = vpop.xlane.xlu0 %2540
    %v2542 = vsel %vm143, %v2144, 0.0
    %2543 = vadd.xlane.f32.xlu0 %v2542
    %v2544 = vpop.xlane.xlu0 %2543
    %v2545 = vmul.f32 %v2247, %v444
    %v2546 = vmul.f32 %v2250, %v444
    %v2547 = vmul.f32 %v2253, %v444
    %v2548 = vmul.f32 %v2256, %v444
    %v2549 = vmul.f32 %v2259, %v444
    %v2550 = vmul.f32 %v2262, %v444
    %v2551 = vmul.f32 %v2265, %v444
    %v2552 = vmul.f32 %v2268, %v444
    %v2553 = vmul.f32 %v2271, %v444
    %v2554 = vmul.f32 %v2274, %v444
    %v2555 = vmul.f32 %v2277, %v444
    %v2556 = vmul.f32 %v2280, %v444
    %v2557 = vmul.f32 %v2283, %v444
    %v2558 = vmul.f32 %v2286, %v444
    %v2559 = vmul.f32 %v2289, %v444
    %v2560 = vmul.f32 %v2292, %v444
    %v2561 = vmul.f32 %v2295, %v444
    %v2562 = vmul.f32 %v2298, %v444
    %v2563 = vmul.f32 %v2301, %v444
    %v2564 = vmul.f32 %v2304, %v444
    %v2565 = vmul.f32 %v2307, %v444
    %v2566 = vmul.f32 %v2310, %v444
    %v2567 = vmul.f32 %v2313, %v444
    %v2568 = vmul.f32 %v2316, %v444
    %v2569 = vmul.f32 %v2319, %v444
    %v2570 = vmul.f32 %v2322, %v444
    %v2571 = vmul.f32 %v2325, %v444
    %v2572 = vmul.f32 %v2328, %v444
    %v2573 = vmul.f32 %v2331, %v444
    %v2574 = vmul.f32 %v2334, %v444
    %v2575 = vmul.f32 %v2337, %v444
    %v2576 = vmul.f32 %v2340, %v444
    %v2577 = vmul.f32 %v2343, %v444
    %v2578 = vmul.f32 %v2346, %v444
    %v2579 = vmul.f32 %v2349, %v444
    %v2580 = vmul.f32 %v2352, %v444
    %v2581 = vmul.f32 %v2355, %v444
    %v2582 = vmul.f32 %v2358, %v444
    %v2583 = vmul.f32 %v2361, %v444
    %v2584 = vmul.f32 %v2364, %v444
    %v2585 = vmul.f32 %v2367, %v444
    %v2586 = vmul.f32 %v2370, %v444
    %v2587 = vmul.f32 %v2373, %v444
    %v2588 = vmul.f32 %v2376, %v444
    %v2589 = vmul.f32 %v2379, %v444
    %v2590 = vmul.f32 %v2382, %v444
    %v2591 = vmul.f32 %v2385, %v444
    %v2592 = vmul.f32 %v2388, %v444
    %v2593 = vmul.f32 %v2391, %v444
    %v2594 = vmul.f32 %v2394, %v444
    %v2595 = vmul.f32 %v2397, %v444
    %v2596 = vmul.f32 %v2400, %v444
    %v2597 = vmul.f32 %v2403, %v444
    %v2598 = vmul.f32 %v2406, %v444
    %v2599 = vmul.f32 %v2409, %v444
    %v2600 = vmul.f32 %v2412, %v444
    %v2601 = vmul.f32 %v2415, %v444
    %v2602 = vmul.f32 %v2418, %v444
    %v2603 = vmul.f32 %v2421, %v444
    %v2604 = vmul.f32 %v2424, %v444
    %v2605 = vmul.f32 %v2427, %v444
    %v2606 = vmul.f32 %v2430, %v444
    %v2607 = vmul.f32 %v2433, %v444
    %v2608 = vmul.f32 %v2436, %v444
    %v2609 = vmul.f32 %v2439, %v444
    %v2610 = vmul.f32 %v2442, %v444
    %v2611 = vmul.f32 %v2445, %v444
    %v2612 = vmul.f32 %v2448, %v444
    %v2613 = vmul.f32 %v2451, %v444
    %v2614 = vmul.f32 %v2454, %v444
    %v2615 = vmul.f32 %v2457, %v444
    %v2616 = vmul.f32 %v2460, %v444
    %v2617 = vmul.f32 %v2463, %v444
    %v2618 = vmul.f32 %v2466, %v444
    %v2619 = vmul.f32 %v2469, %v444
    %v2620 = vmul.f32 %v2472, %v444
    %v2621 = vmul.f32 %v2475, %v444
    %v2622 = vmul.f32 %v2478, %v444
    %v2623 = vmul.f32 %v2481, %v444
    %v2624 = vmul.f32 %v2484, %v444
    %v2625 = vmul.f32 %v2487, %v444
    %v2626 = vmul.f32 %v2490, %v444
    %v2627 = vmul.f32 %v2493, %v444
    %v2628 = vmul.f32 %v2496, %v444
    %v2629 = vmul.f32 %v2499, %v444
    %v2630 = vmul.f32 %v2502, %v444
    %v2631 = vmul.f32 %v2505, %v444
    %v2632 = vmul.f32 %v2508, %v444
    %v2633 = vmul.f32 %v2511, %v444
    %v2634 = vmul.f32 %v2514, %v444
    %v2635 = vmul.f32 %v2517, %v444
    %v2636 = vmul.f32 %v2520, %v444
    %v2637 = vmul.f32 %v2523, %v444
    %v2638 = vmul.f32 %v2526, %v444
    %v2639 = vmul.f32 %v2529, %v444
    %v2640 = vmul.f32 %v2532, %v444
    %v2641 = vmul.f32 %v2535, %v444
    %v2642 = vmul.f32 %v2538, %v444
    %v2643 = vmul.f32 %v2541, %v444
    %v2644 = vmul.f32 %v2544, %v444
    %v2745 = vlaneseq
    %v2746 = vand.u32 %v2745, 127
    %v2747 = vlaneseq
    %v2748 = vshrl.u32 %v2747, 7
    %v2749 = vsub.s32 %v2746, %v2748
    %v2750 = vrot.slane %v445, %v2749
    %v2751 = vadd.s32 %v2746, 4294967288
    %v2752 = vlaneseq
    %v2753 = vshrl.u32 %v2752, 7
    %v2754 = vsub.s32 %v2751, %v2753
    %v2755 = vrot.slane %v446, %v2754
    %vm2756 = vcmask 130112
    %v2757 = vsel %vm2756, %v2755, %v2750
    %v2758 = vadd.s32 %v2746, 4294967280
    %v2759 = vlaneseq
    %v2760 = vshrl.u32 %v2759, 7
    %v2761 = vsub.s32 %v2758, %v2760
    %v2762 = vrot.slane %v447, %v2761
    %vm2763 = vcmask 195712
    %v2764 = vsel %vm2763, %v2762, %v2757
    %v2765 = vadd.s32 %v2746, 4294967272
    %v2766 = vlaneseq
    %v2767 = vshrl.u32 %v2766, 7
    %v2768 = vsub.s32 %v2765, %v2767
    %v2769 = vrot.slane %v448, %v2768
    %vm2770 = vcmask 261312
    %v2771 = vsel %vm2770, %v2769, %v2764
    %v2772 = vadd.s32 %v2746, 4294967264
    %v2773 = vlaneseq
    %v2774 = vshrl.u32 %v2773, 7
    %v2775 = vsub.s32 %v2772, %v2774
    %v2776 = vrot.slane %v449, %v2775
    %vm2777 = vcmask 326912
    %v2778 = vsel %vm2777, %v2776, %v2771
    %v2779 = vadd.s32 %v2746, 4294967256
    %v2780 = vlaneseq
    %v2781 = vshrl.u32 %v2780, 7
    %v2782 = vsub.s32 %v2779, %v2781
    %v2783 = vrot.slane %v450, %v2782
    %vm2784 = vcmask 392512
    %v2785 = vsel %vm2784, %v2783, %v2778
    %v2786 = vadd.s32 %v2746, 4294967248
    %v2787 = vlaneseq
    %v2788 = vshrl.u32 %v2787, 7
    %v2789 = vsub.s32 %v2786, %v2788
    %v2790 = vrot.slane %v451, %v2789
    %vm2791 = vcmask 458112
    %v2792 = vsel %vm2791, %v2790, %v2785
    %v2793 = vadd.s32 %v2746, 4294967240
    %v2794 = vlaneseq
    %v2795 = vshrl.u32 %v2794, 7
    %v2796 = vsub.s32 %v2793, %v2795
    %v2797 = vrot.slane %v452, %v2796
    %vm2798 = vcmask 523712
    %v2799 = vsel %vm2798, %v2797, %v2792
    %v2800 = vadd.s32 %v2746, 4294967232
    %v2801 = vlaneseq
    %v2802 = vshrl.u32 %v2801, 7
    %v2803 = vsub.s32 %v2800, %v2802
    %v2804 = vrot.slane %v453, %v2803
    %vm2805 = vcmask 589312
    %v2806 = vsel %vm2805, %v2804, %v2799
    %v2807 = vadd.s32 %v2746, 4294967224
    %v2808 = vlaneseq
    %v2809 = vshrl.u32 %v2808, 7
    %v2810 = vsub.s32 %v2807, %v2809
    %v2811 = vrot.slane %v454, %v2810
    %vm2812 = vcmask 654912
    %v2813 = vsel %vm2812, %v2811, %v2806
    %v2814 = vadd.s32 %v2746, 4294967216
    %v2815 = vlaneseq
    %v2816 = vshrl.u32 %v2815, 7
    %v2817 = vsub.s32 %v2814, %v2816
    %v2818 = vrot.slane %v455, %v2817
    %vm2819 = vcmask 720512
    %v2820 = vsel %vm2819, %v2818, %v2813
    %v2821 = vadd.s32 %v2746, 4294967208
    %v2822 = vlaneseq
    %v2823 = vshrl.u32 %v2822, 7
    %v2824 = vsub.s32 %v2821, %v2823
    %v2825 = vrot.slane %v456, %v2824
    %vm2826 = vcmask 786112
    %v2827 = vsel %vm2826, %v2825, %v2820
    %v2828 = vadd.s32 %v2746, 4294967200
    %v2829 = vlaneseq
    %v2830 = vshrl.u32 %v2829, 7
    %v2831 = vsub.s32 %v2828, %v2830
    %v2832 = vrot.slane %v457, %v2831
    %vm2833 = vcmask 851712
    %v2834 = vsel %vm2833, %v2832, %v2827
    %v2835 = vadd.s32 %v2746, 4294967192
    %v2836 = vlaneseq
    %v2837 = vshrl.u32 %v2836, 7
    %v2838 = vsub.s32 %v2835, %v2837
    %v2839 = vrot.slane %v458, %v2838
    %vm2840 = vcmask 917312
    %v2841 = vsel %vm2840, %v2839, %v2834
    %v2842 = vadd.s32 %v2746, 4294967184
    %v2843 = vlaneseq
    %v2844 = vshrl.u32 %v2843, 7
    %v2845 = vsub.s32 %v2842, %v2844
    %v2846 = vrot.slane %v459, %v2845
    %vm2847 = vcmask 982912
    %v2848 = vsel %vm2847, %v2846, %v2841
    %v2849 = vadd.s32 %v2746, 4294967176
    %v2850 = vlaneseq
    %v2851 = vshrl.u32 %v2850, 7
    %v2852 = vsub.s32 %v2849, %v2851
    %v2853 = vrot.slane %v460, %v2852
    %vm2854 = vcmask 1048512
    %v2855 = vsel %vm2854, %v2853, %v2848
    %v2856 = vlaneseq
    %v2857 = vshrl.u32 %v2856, 7
    %v2858 = vsub.s32 %v2746, %v2857
    %v2859 = vrot.slane %v461, %v2858
    %v2860 = vlaneseq
    %v2861 = vshrl.u32 %v2860, 7
    %v2862 = vsub.s32 %v2751, %v2861
    %v2863 = vrot.slane %v462, %v2862
    %v2864 = vsel %vm2756, %v2863, %v2859
    %v2865 = vlaneseq
    %v2866 = vshrl.u32 %v2865, 7
    %v2867 = vsub.s32 %v2758, %v2866
    %v2868 = vrot.slane %v463, %v2867
    %v2869 = vsel %vm2763, %v2868, %v2864
    %v2870 = vlaneseq
    %v2871 = vshrl.u32 %v2870, 7
    %v2872 = vsub.s32 %v2765, %v2871
    %v2873 = vrot.slane %v464, %v2872
    %v2874 = vsel %vm2770, %v2873, %v2869
    %v2875 = vlaneseq
    %v2876 = vshrl.u32 %v2875, 7
    %v2877 = vsub.s32 %v2772, %v2876
    %v2878 = vrot.slane %v465, %v2877
    %v2879 = vsel %vm2777, %v2878, %v2874
    %v2880 = vlaneseq
    %v2881 = vshrl.u32 %v2880, 7
    %v2882 = vsub.s32 %v2779, %v2881
    %v2883 = vrot.slane %v466, %v2882
    %v2884 = vsel %vm2784, %v2883, %v2879
    %v2885 = vlaneseq
    %v2886 = vshrl.u32 %v2885, 7
    %v2887 = vsub.s32 %v2786, %v2886
    %v2888 = vrot.slane %v467, %v2887
    %v2889 = vsel %vm2791, %v2888, %v2884
    %v2890 = vlaneseq
    %v2891 = vshrl.u32 %v2890, 7
    %v2892 = vsub.s32 %v2793, %v2891
    %v2893 = vrot.slane %v468, %v2892
    %v2894 = vsel %vm2798, %v2893, %v2889
    %v2895 = vlaneseq
    %v2896 = vshrl.u32 %v2895, 7
    %v2897 = vsub.s32 %v2800, %v2896
    %v2898 = vrot.slane %v469, %v2897
    %v2899 = vsel %vm2805, %v2898, %v2894
    %v2900 = vlaneseq
    %v2901 = vshrl.u32 %v2900, 7
    %v2902 = vsub.s32 %v2746, %v2901
    %v2903 = vrot.slane %v470, %v2902
    %v2904 = vlaneseq
    %v2905 = vshrl.u32 %v2904, 7
    %v2906 = vsub.s32 %v2751, %v2905
    %v2907 = vrot.slane %v471, %v2906
    %v2908 = vsel %vm2756, %v2907, %v2903
    %v2909 = vlaneseq
    %v2910 = vshrl.u32 %v2909, 7
    %v2911 = vsub.s32 %v2758, %v2910
    %v2912 = vrot.slane %v472, %v2911
    %v2913 = vsel %vm2763, %v2912, %v2908
    %v2914 = vlaneseq
    %v2915 = vshrl.u32 %v2914, 7
    %v2916 = vsub.s32 %v2765, %v2915
    %v2917 = vrot.slane %v473, %v2916
    %v2918 = vsel %vm2770, %v2917, %v2913
    %v2919 = vlaneseq
    %v2920 = vshrl.u32 %v2919, 7
    %v2921 = vsub.s32 %v2772, %v2920
    %v2922 = vrot.slane %v474, %v2921
    %v2923 = vsel %vm2777, %v2922, %v2918
    %v2924 = vlaneseq
    %v2925 = vshrl.u32 %v2924, 7
    %v2926 = vsub.s32 %v2779, %v2925
    %v2927 = vrot.slane %v475, %v2926
    %v2928 = vsel %vm2784, %v2927, %v2923
    %v2929 = vlaneseq
    %v2930 = vshrl.u32 %v2929, 7
    %v2931 = vsub.s32 %v2786, %v2930
    %v2932 = vrot.slane %v476, %v2931
    %v2933 = vsel %vm2791, %v2932, %v2928
    %v2934 = vlaneseq
    %v2935 = vshrl.u32 %v2934, 7
    %v2936 = vsub.s32 %v2793, %v2935
    %v2937 = vrot.slane %v477, %v2936
    %v2938 = vsel %vm2798, %v2937, %v2933
    %v2939 = vlaneseq
    %v2940 = vshrl.u32 %v2939, 7
    %v2941 = vsub.s32 %v2800, %v2940
    %v2942 = vrot.slane %v478, %v2941
    %v2943 = vsel %vm2805, %v2942, %v2938
    %v2944 = vlaneseq
    %v2945 = vshrl.u32 %v2944, 7
    %v2946 = vsub.s32 %v2807, %v2945
    %v2947 = vrot.slane %v479, %v2946
    %v2948 = vsel %vm2812, %v2947, %v2943
    %v2949 = vlaneseq
    %v2950 = vshrl.u32 %v2949, 7
    %v2951 = vsub.s32 %v2814, %v2950
    %v2952 = vrot.slane %v480, %v2951
    %v2953 = vsel %vm2819, %v2952, %v2948
    %v2954 = vlaneseq
    %v2955 = vshrl.u32 %v2954, 7
    %v2956 = vsub.s32 %v2821, %v2955
    %v2957 = vrot.slane %v481, %v2956
    %v2958 = vsel %vm2826, %v2957, %v2953
    %v2959 = vlaneseq
    %v2960 = vshrl.u32 %v2959, 7
    %v2961 = vsub.s32 %v2828, %v2960
    %v2962 = vrot.slane %v482, %v2961
    %v2963 = vsel %vm2833, %v2962, %v2958
    %v2964 = vlaneseq
    %v2965 = vshrl.u32 %v2964, 7
    %v2966 = vsub.s32 %v2835, %v2965
    %v2967 = vrot.slane %v483, %v2966
    %v2968 = vsel %vm2840, %v2967, %v2963
    %v2969 = vlaneseq
    %v2970 = vshrl.u32 %v2969, 7
    %v2971 = vsub.s32 %v2842, %v2970
    %v2972 = vrot.slane %v484, %v2971
    %v2973 = vsel %vm2847, %v2972, %v2968
    %v2974 = vlaneseq
    %v2975 = vshrl.u32 %v2974, 7
    %v2976 = vsub.s32 %v2849, %v2975
    %v2977 = vrot.slane %v485, %v2976
    %v2978 = vsel %vm2854, %v2977, %v2973
    %v2979 = vlaneseq
    %v2980 = vshrl.u32 %v2979, 7
    %v2981 = vsub.s32 %v2746, %v2980
    %v2982 = vrot.slane %v486, %v2981
    %v2983 = vlaneseq
    %v2984 = vshrl.u32 %v2983, 7
    %v2985 = vsub.s32 %v2751, %v2984
    %v2986 = vrot.slane %v487, %v2985
    %v2987 = vsel %vm2756, %v2986, %v2982
    %v2988 = vlaneseq
    %v2989 = vshrl.u32 %v2988, 7
    %v2990 = vsub.s32 %v2758, %v2989
    %v2991 = vrot.slane %v488, %v2990
    %v2992 = vsel %vm2763, %v2991, %v2987
    %v2993 = vlaneseq
    %v2994 = vshrl.u32 %v2993, 7
    %v2995 = vsub.s32 %v2765, %v2994
    %v2996 = vrot.slane %v489, %v2995
    %v2997 = vsel %vm2770, %v2996, %v2992
    %v2998 = vlaneseq
    %v2999 = vshrl.u32 %v2998, 7
    %v3000 = vsub.s32 %v2772, %v2999
    %v3001 = vrot.slane %v490, %v3000
    %v3002 = vsel %vm2777, %v3001, %v2997
    %v3003 = vlaneseq
    %v3004 = vshrl.u32 %v3003, 7
    %v3005 = vsub.s32 %v2779, %v3004
    %v3006 = vrot.slane %v491, %v3005
    %v3007 = vsel %vm2784, %v3006, %v3002
    %v3008 = vlaneseq
    %v3009 = vshrl.u32 %v3008, 7
    %v3010 = vsub.s32 %v2786, %v3009
    %v3011 = vrot.slane %v492, %v3010
    %v3012 = vsel %vm2791, %v3011, %v3007
    %v3013 = vlaneseq
    %v3014 = vshrl.u32 %v3013, 7
    %v3015 = vsub.s32 %v2793, %v3014
    %v3016 = vrot.slane %v493, %v3015
    %v3017 = vsel %vm2798, %v3016, %v3012
    %v3018 = vlaneseq
    %v3019 = vshrl.u32 %v3018, 7
    %v3020 = vsub.s32 %v2800, %v3019
    %v3021 = vrot.slane %v494, %v3020
    %v3022 = vsel %vm2805, %v3021, %v3017
    %v3023 = vlaneseq
    %v3024 = vshrl.u32 %v3023, 7
    %v3025 = vsub.s32 %v2746, %v3024
    %v3026 = vrot.slane %v495, %v3025
    %v3027 = vlaneseq
    %v3028 = vshrl.u32 %v3027, 7
    %v3029 = vsub.s32 %v2751, %v3028
    %v3030 = vrot.slane %v496, %v3029
    %v3031 = vsel %vm2756, %v3030, %v3026
    %v3032 = vlaneseq
    %v3033 = vshrl.u32 %v3032, 7
    %v3034 = vsub.s32 %v2758, %v3033
    %v3035 = vrot.slane %v497, %v3034
    %v3036 = vsel %vm2763, %v3035, %v3031
    %v3037 = vlaneseq
    %v3038 = vshrl.u32 %v3037, 7
    %v3039 = vsub.s32 %v2765, %v3038
    %v3040 = vrot.slane %v498, %v3039
    %v3041 = vsel %vm2770, %v3040, %v3036
    %v3042 = vlaneseq
    %v3043 = vshrl.u32 %v3042, 7
    %v3044 = vsub.s32 %v2772, %v3043
    %v3045 = vrot.slane %v499, %v3044
    %v3046 = vsel %vm2777, %v3045, %v3041
    %v3047 = vlaneseq
    %v3048 = vshrl.u32 %v3047, 7
    %v3049 = vsub.s32 %v2779, %v3048
    %v3050 = vrot.slane %v500, %v3049
    %v3051 = vsel %vm2784, %v3050, %v3046
    %v3052 = vlaneseq
    %v3053 = vshrl.u32 %v3052, 7
    %v3054 = vsub.s32 %v2786, %v3053
    %v3055 = vrot.slane %v501, %v3054
    %v3056 = vsel %vm2791, %v3055, %v3051
    %v3057 = vlaneseq
    %v3058 = vshrl.u32 %v3057, 7
    %v3059 = vsub.s32 %v2793, %v3058
    %v3060 = vrot.slane %v502, %v3059
    %v3061 = vsel %vm2798, %v3060, %v3056
    %v3062 = vlaneseq
    %v3063 = vshrl.u32 %v3062, 7
    %v3064 = vsub.s32 %v2800, %v3063
    %v3065 = vrot.slane %v503, %v3064
    %v3066 = vsel %vm2805, %v3065, %v3061
    %v3067 = vlaneseq
    %v3068 = vshrl.u32 %v3067, 7
    %v3069 = vsub.s32 %v2807, %v3068
    %v3070 = vrot.slane %v504, %v3069
    %v3071 = vsel %vm2812, %v3070, %v3066
    %v3072 = vlaneseq
    %v3073 = vshrl.u32 %v3072, 7
    %v3074 = vsub.s32 %v2814, %v3073
    %v3075 = vrot.slane %v505, %v3074
    %v3076 = vsel %vm2819, %v3075, %v3071
    %v3077 = vlaneseq
    %v3078 = vshrl.u32 %v3077, 7
    %v3079 = vsub.s32 %v2821, %v3078
    %v3080 = vrot.slane %v506, %v3079
    %v3081 = vsel %vm2826, %v3080, %v3076
    %v3082 = vlaneseq
    %v3083 = vshrl.u32 %v3082, 7
    %v3084 = vsub.s32 %v2828, %v3083
    %v3085 = vrot.slane %v507, %v3084
    %v3086 = vsel %vm2833, %v3085, %v3081
    %v3087 = vlaneseq
    %v3088 = vshrl.u32 %v3087, 7
    %v3089 = vsub.s32 %v2835, %v3088
    %v3090 = vrot.slane %v508, %v3089
    %v3091 = vsel %vm2840, %v3090, %v3086
    %v3092 = vlaneseq
    %v3093 = vshrl.u32 %v3092, 7
    %v3094 = vsub.s32 %v2842, %v3093
    %v3095 = vrot.slane %v509, %v3094
    %v3096 = vsel %vm2847, %v3095, %v3091
    %v3097 = vlaneseq
    %v3098 = vshrl.u32 %v3097, 7
    %v3099 = vsub.s32 %v2849, %v3098
    %v3100 = vrot.slane %v510, %v3099
    %v3101 = vsel %vm2854, %v3100, %v3096
    %v3102 = vlaneseq
    %v3103 = vshrl.u32 %v3102, 7
    %v3104 = vsub.s32 %v2746, %v3103
    %v3105 = vrot.slane %v511, %v3104
    %v3106 = vlaneseq
    %v3107 = vshrl.u32 %v3106, 7
    %v3108 = vsub.s32 %v2751, %v3107
    %v3109 = vrot.slane %v512, %v3108
    %v3110 = vsel %vm2756, %v3109, %v3105
    %v3111 = vlaneseq
    %v3112 = vshrl.u32 %v3111, 7
    %v3113 = vsub.s32 %v2758, %v3112
    %v3114 = vrot.slane %v513, %v3113
    %v3115 = vsel %vm2763, %v3114, %v3110
    %v3116 = vlaneseq
    %v3117 = vshrl.u32 %v3116, 7
    %v3118 = vsub.s32 %v2765, %v3117
    %v3119 = vrot.slane %v514, %v3118
    %v3120 = vsel %vm2770, %v3119, %v3115
    %v3121 = vlaneseq
    %v3122 = vshrl.u32 %v3121, 7
    %v3123 = vsub.s32 %v2772, %v3122
    %v3124 = vrot.slane %v515, %v3123
    %v3125 = vsel %vm2777, %v3124, %v3120
    %v3126 = vlaneseq
    %v3127 = vshrl.u32 %v3126, 7
    %v3128 = vsub.s32 %v2779, %v3127
    %v3129 = vrot.slane %v516, %v3128
    %v3130 = vsel %vm2784, %v3129, %v3125
    %v3131 = vlaneseq
    %v3132 = vshrl.u32 %v3131, 7
    %v3133 = vsub.s32 %v2786, %v3132
    %v3134 = vrot.slane %v517, %v3133
    %v3135 = vsel %vm2791, %v3134, %v3130
    %v3136 = vlaneseq
    %v3137 = vshrl.u32 %v3136, 7
    %v3138 = vsub.s32 %v2793, %v3137
    %v3139 = vrot.slane %v518, %v3138
    %v3140 = vsel %vm2798, %v3139, %v3135
    %v3141 = vlaneseq
    %v3142 = vshrl.u32 %v3141, 7
    %v3143 = vsub.s32 %v2800, %v3142
    %v3144 = vrot.slane %v519, %v3143
    %v3145 = vsel %vm2805, %v3144, %v3140
    %v3146 = vlaneseq
    %v3147 = vshrl.u32 %v3146, 7
    %v3148 = vsub.s32 %v2746, %v3147
    %v3149 = vrot.slane %v520, %v3148
    %v3150 = vlaneseq
    %v3151 = vshrl.u32 %v3150, 7
    %v3152 = vsub.s32 %v2751, %v3151
    %v3153 = vrot.slane %v521, %v3152
    %v3154 = vsel %vm2756, %v3153, %v3149
    %v3155 = vlaneseq
    %v3156 = vshrl.u32 %v3155, 7
    %v3157 = vsub.s32 %v2758, %v3156
    %v3158 = vrot.slane %v522, %v3157
    %v3159 = vsel %vm2763, %v3158, %v3154
    %v3160 = vlaneseq
    %v3161 = vshrl.u32 %v3160, 7
    %v3162 = vsub.s32 %v2765, %v3161
    %v3163 = vrot.slane %v523, %v3162
    %v3164 = vsel %vm2770, %v3163, %v3159
    %v3165 = vlaneseq
    %v3166 = vshrl.u32 %v3165, 7
    %v3167 = vsub.s32 %v2772, %v3166
    %v3168 = vrot.slane %v524, %v3167
    %v3169 = vsel %vm2777, %v3168, %v3164
    %v3170 = vlaneseq
    %v3171 = vshrl.u32 %v3170, 7
    %v3172 = vsub.s32 %v2779, %v3171
    %v3173 = vrot.slane %v525, %v3172
    %v3174 = vsel %vm2784, %v3173, %v3169
    %v3175 = vlaneseq
    %v3176 = vshrl.u32 %v3175, 7
    %v3177 = vsub.s32 %v2786, %v3176
    %v3178 = vrot.slane %v526, %v3177
    %v3179 = vsel %vm2791, %v3178, %v3174
    %v3180 = vlaneseq
    %v3181 = vshrl.u32 %v3180, 7
    %v3182 = vsub.s32 %v2793, %v3181
    %v3183 = vrot.slane %v527, %v3182
    %v3184 = vsel %vm2798, %v3183, %v3179
    %v3185 = vlaneseq
    %v3186 = vshrl.u32 %v3185, 7
    %v3187 = vsub.s32 %v2800, %v3186
    %v3188 = vrot.slane %v528, %v3187
    %v3189 = vsel %vm2805, %v3188, %v3184
    %v3190 = vlaneseq
    %v3191 = vshrl.u32 %v3190, 7
    %v3192 = vsub.s32 %v2807, %v3191
    %v3193 = vrot.slane %v529, %v3192
    %v3194 = vsel %vm2812, %v3193, %v3189
    %v3195 = vlaneseq
    %v3196 = vshrl.u32 %v3195, 7
    %v3197 = vsub.s32 %v2814, %v3196
    %v3198 = vrot.slane %v530, %v3197
    %v3199 = vsel %vm2819, %v3198, %v3194
    %v3200 = vlaneseq
    %v3201 = vshrl.u32 %v3200, 7
    %v3202 = vsub.s32 %v2821, %v3201
    %v3203 = vrot.slane %v531, %v3202
    %v3204 = vsel %vm2826, %v3203, %v3199
    %v3205 = vlaneseq
    %v3206 = vshrl.u32 %v3205, 7
    %v3207 = vsub.s32 %v2828, %v3206
    %v3208 = vrot.slane %v532, %v3207
    %v3209 = vsel %vm2833, %v3208, %v3204
    %v3210 = vlaneseq
    %v3211 = vshrl.u32 %v3210, 7
    %v3212 = vsub.s32 %v2835, %v3211
    %v3213 = vrot.slane %v533, %v3212
    %v3214 = vsel %vm2840, %v3213, %v3209
    %v3215 = vlaneseq
    %v3216 = vshrl.u32 %v3215, 7
    %v3217 = vsub.s32 %v2842, %v3216
    %v3218 = vrot.slane %v534, %v3217
    %v3219 = vsel %vm2847, %v3218, %v3214
    %v3220 = vlaneseq
    %v3221 = vshrl.u32 %v3220, 7
    %v3222 = vsub.s32 %v2849, %v3221
    %v3223 = vrot.slane %v535, %v3222
    %v3224 = vsel %vm2854, %v3223, %v3219
    %v3225 = vlaneseq
    %v3226 = vshrl.u32 %v3225, 7
    %v3227 = vsub.s32 %v2746, %v3226
    %v3228 = vrot.slane %v536, %v3227
    %v3229 = vlaneseq
    %v3230 = vshrl.u32 %v3229, 7
    %v3231 = vsub.s32 %v2751, %v3230
    %v3232 = vrot.slane %v537, %v3231
    %v3233 = vsel %vm2756, %v3232, %v3228
    %v3234 = vlaneseq
    %v3235 = vshrl.u32 %v3234, 7
    %v3236 = vsub.s32 %v2758, %v3235
    %v3237 = vrot.slane %v538, %v3236
    %v3238 = vsel %vm2763, %v3237, %v3233
    %v3239 = vlaneseq
    %v3240 = vshrl.u32 %v3239, 7
    %v3241 = vsub.s32 %v2765, %v3240
    %v3242 = vrot.slane %v539, %v3241
    %v3243 = vsel %vm2770, %v3242, %v3238
    %v3244 = vlaneseq
    %v3245 = vshrl.u32 %v3244, 7
    %v3246 = vsub.s32 %v2772, %v3245
    %v3247 = vrot.slane %v540, %v3246
    %v3248 = vsel %vm2777, %v3247, %v3243
    %v3249 = vlaneseq
    %v3250 = vshrl.u32 %v3249, 7
    %v3251 = vsub.s32 %v2779, %v3250
    %v3252 = vrot.slane %v541, %v3251
    %v3253 = vsel %vm2784, %v3252, %v3248
    %v3254 = vlaneseq
    %v3255 = vshrl.u32 %v3254, 7
    %v3256 = vsub.s32 %v2786, %v3255
    %v3257 = vrot.slane %v542, %v3256
    %v3258 = vsel %vm2791, %v3257, %v3253
    %v3259 = vlaneseq
    %v3260 = vshrl.u32 %v3259, 7
    %v3261 = vsub.s32 %v2793, %v3260
    %v3262 = vrot.slane %v543, %v3261
    %v3263 = vsel %vm2798, %v3262, %v3258
    %v3264 = vlaneseq
    %v3265 = vshrl.u32 %v3264, 7
    %v3266 = vsub.s32 %v2800, %v3265
    %v3267 = vrot.slane %v544, %v3266
    %v3268 = vsel %vm2805, %v3267, %v3263
    %v3377 = vlaneseq
    %v3378 = vshrl.u32 %v3377, 7
    %v3379 = vsub.s32 %v2746, %v3378
    %v3380 = vrot.slane %v1245, %v3379
    %v3381 = vlaneseq
    %v3382 = vshrl.u32 %v3381, 7
    %v3383 = vsub.s32 %v2751, %v3382
    %v3384 = vrot.slane %v1246, %v3383
    %v3385 = vsel %vm2756, %v3384, %v3380
    %v3386 = vlaneseq
    %v3387 = vshrl.u32 %v3386, 7
    %v3388 = vsub.s32 %v2758, %v3387
    %v3389 = vrot.slane %v1247, %v3388
    %v3390 = vsel %vm2763, %v3389, %v3385
    %v3391 = vlaneseq
    %v3392 = vshrl.u32 %v3391, 7
    %v3393 = vsub.s32 %v2765, %v3392
    %v3394 = vrot.slane %v1248, %v3393
    %v3395 = vsel %vm2770, %v3394, %v3390
    %v3396 = vlaneseq
    %v3397 = vshrl.u32 %v3396, 7
    %v3398 = vsub.s32 %v2772, %v3397
    %v3399 = vrot.slane %v1249, %v3398
    %v3400 = vsel %vm2777, %v3399, %v3395
    %v3401 = vlaneseq
    %v3402 = vshrl.u32 %v3401, 7
    %v3403 = vsub.s32 %v2779, %v3402
    %v3404 = vrot.slane %v1250, %v3403
    %v3405 = vsel %vm2784, %v3404, %v3400
    %v3406 = vlaneseq
    %v3407 = vshrl.u32 %v3406, 7
    %v3408 = vsub.s32 %v2786, %v3407
    %v3409 = vrot.slane %v1251, %v3408
    %v3410 = vsel %vm2791, %v3409, %v3405
    %v3411 = vlaneseq
    %v3412 = vshrl.u32 %v3411, 7
    %v3413 = vsub.s32 %v2793, %v3412
    %v3414 = vrot.slane %v1252, %v3413
    %v3415 = vsel %vm2798, %v3414, %v3410
    %v3416 = vlaneseq
    %v3417 = vshrl.u32 %v3416, 7
    %v3418 = vsub.s32 %v2800, %v3417
    %v3419 = vrot.slane %v1253, %v3418
    %v3420 = vsel %vm2805, %v3419, %v3415
    %v3421 = vlaneseq
    %v3422 = vshrl.u32 %v3421, 7
    %v3423 = vsub.s32 %v2807, %v3422
    %v3424 = vrot.slane %v1254, %v3423
    %v3425 = vsel %vm2812, %v3424, %v3420
    %v3426 = vlaneseq
    %v3427 = vshrl.u32 %v3426, 7
    %v3428 = vsub.s32 %v2814, %v3427
    %v3429 = vrot.slane %v1255, %v3428
    %v3430 = vsel %vm2819, %v3429, %v3425
    %v3431 = vlaneseq
    %v3432 = vshrl.u32 %v3431, 7
    %v3433 = vsub.s32 %v2821, %v3432
    %v3434 = vrot.slane %v1256, %v3433
    %v3435 = vsel %vm2826, %v3434, %v3430
    %v3436 = vlaneseq
    %v3437 = vshrl.u32 %v3436, 7
    %v3438 = vsub.s32 %v2828, %v3437
    %v3439 = vrot.slane %v1257, %v3438
    %v3440 = vsel %vm2833, %v3439, %v3435
    %v3441 = vlaneseq
    %v3442 = vshrl.u32 %v3441, 7
    %v3443 = vsub.s32 %v2835, %v3442
    %v3444 = vrot.slane %v1258, %v3443
    %v3445 = vsel %vm2840, %v3444, %v3440
    %v3446 = vlaneseq
    %v3447 = vshrl.u32 %v3446, 7
    %v3448 = vsub.s32 %v2842, %v3447
    %v3449 = vrot.slane %v1259, %v3448
    %v3450 = vsel %vm2847, %v3449, %v3445
    %v3451 = vlaneseq
    %v3452 = vshrl.u32 %v3451, 7
    %v3453 = vsub.s32 %v2849, %v3452
    %v3454 = vrot.slane %v1260, %v3453
    %v3455 = vsel %vm2854, %v3454, %v3450
    %v3456 = vlaneseq
    %v3457 = vshrl.u32 %v3456, 7
    %v3458 = vsub.s32 %v2746, %v3457
    %v3459 = vrot.slane %v1261, %v3458
    %v3460 = vlaneseq
    %v3461 = vshrl.u32 %v3460, 7
    %v3462 = vsub.s32 %v2751, %v3461
    %v3463 = vrot.slane %v1262, %v3462
    %v3464 = vsel %vm2756, %v3463, %v3459
    %v3465 = vlaneseq
    %v3466 = vshrl.u32 %v3465, 7
    %v3467 = vsub.s32 %v2758, %v3466
    %v3468 = vrot.slane %v1263, %v3467
    %v3469 = vsel %vm2763, %v3468, %v3464
    %v3470 = vlaneseq
    %v3471 = vshrl.u32 %v3470, 7
    %v3472 = vsub.s32 %v2765, %v3471
    %v3473 = vrot.slane %v1264, %v3472
    %v3474 = vsel %vm2770, %v3473, %v3469
    %v3475 = vlaneseq
    %v3476 = vshrl.u32 %v3475, 7
    %v3477 = vsub.s32 %v2772, %v3476
    %v3478 = vrot.slane %v1265, %v3477
    %v3479 = vsel %vm2777, %v3478, %v3474
    %v3480 = vlaneseq
    %v3481 = vshrl.u32 %v3480, 7
    %v3482 = vsub.s32 %v2779, %v3481
    %v3483 = vrot.slane %v1266, %v3482
    %v3484 = vsel %vm2784, %v3483, %v3479
    %v3485 = vlaneseq
    %v3486 = vshrl.u32 %v3485, 7
    %v3487 = vsub.s32 %v2786, %v3486
    %v3488 = vrot.slane %v1267, %v3487
    %v3489 = vsel %vm2791, %v3488, %v3484
    %v3490 = vlaneseq
    %v3491 = vshrl.u32 %v3490, 7
    %v3492 = vsub.s32 %v2793, %v3491
    %v3493 = vrot.slane %v1268, %v3492
    %v3494 = vsel %vm2798, %v3493, %v3489
    %v3495 = vlaneseq
    %v3496 = vshrl.u32 %v3495, 7
    %v3497 = vsub.s32 %v2800, %v3496
    %v3498 = vrot.slane %v1269, %v3497
    %v3499 = vsel %vm2805, %v3498, %v3494
    %v3500 = vlaneseq
    %v3501 = vshrl.u32 %v3500, 7
    %v3502 = vsub.s32 %v2746, %v3501
    %v3503 = vrot.slane %v1270, %v3502
    %v3504 = vlaneseq
    %v3505 = vshrl.u32 %v3504, 7
    %v3506 = vsub.s32 %v2751, %v3505
    %v3507 = vrot.slane %v1271, %v3506
    %v3508 = vsel %vm2756, %v3507, %v3503
    %v3509 = vlaneseq
    %v3510 = vshrl.u32 %v3509, 7
    %v3511 = vsub.s32 %v2758, %v3510
    %v3512 = vrot.slane %v1272, %v3511
    %v3513 = vsel %vm2763, %v3512, %v3508
    %v3514 = vlaneseq
    %v3515 = vshrl.u32 %v3514, 7
    %v3516 = vsub.s32 %v2765, %v3515
    %v3517 = vrot.slane %v1273, %v3516
    %v3518 = vsel %vm2770, %v3517, %v3513
    %v3519 = vlaneseq
    %v3520 = vshrl.u32 %v3519, 7
    %v3521 = vsub.s32 %v2772, %v3520
    %v3522 = vrot.slane %v1274, %v3521
    %v3523 = vsel %vm2777, %v3522, %v3518
    %v3524 = vlaneseq
    %v3525 = vshrl.u32 %v3524, 7
    %v3526 = vsub.s32 %v2779, %v3525
    %v3527 = vrot.slane %v1275, %v3526
    %v3528 = vsel %vm2784, %v3527, %v3523
    %v3529 = vlaneseq
    %v3530 = vshrl.u32 %v3529, 7
    %v3531 = vsub.s32 %v2786, %v3530
    %v3532 = vrot.slane %v1276, %v3531
    %v3533 = vsel %vm2791, %v3532, %v3528
    %v3534 = vlaneseq
    %v3535 = vshrl.u32 %v3534, 7
    %v3536 = vsub.s32 %v2793, %v3535
    %v3537 = vrot.slane %v1277, %v3536
    %v3538 = vsel %vm2798, %v3537, %v3533
    %v3539 = vlaneseq
    %v3540 = vshrl.u32 %v3539, 7
    %v3541 = vsub.s32 %v2800, %v3540
    %v3542 = vrot.slane %v1278, %v3541
    %v3543 = vsel %vm2805, %v3542, %v3538
    %v3544 = vlaneseq
    %v3545 = vshrl.u32 %v3544, 7
    %v3546 = vsub.s32 %v2807, %v3545
    %v3547 = vrot.slane %v1279, %v3546
    %v3548 = vsel %vm2812, %v3547, %v3543
    %v3549 = vlaneseq
    %v3550 = vshrl.u32 %v3549, 7
    %v3551 = vsub.s32 %v2814, %v3550
    %v3552 = vrot.slane %v1280, %v3551
    %v3553 = vsel %vm2819, %v3552, %v3548
    %v3554 = vlaneseq
    %v3555 = vshrl.u32 %v3554, 7
    %v3556 = vsub.s32 %v2821, %v3555
    %v3557 = vrot.slane %v1281, %v3556
    %v3558 = vsel %vm2826, %v3557, %v3553
    %v3559 = vlaneseq
    %v3560 = vshrl.u32 %v3559, 7
    %v3561 = vsub.s32 %v2828, %v3560
    %v3562 = vrot.slane %v1282, %v3561
    %v3563 = vsel %vm2833, %v3562, %v3558
    %v3564 = vlaneseq
    %v3565 = vshrl.u32 %v3564, 7
    %v3566 = vsub.s32 %v2835, %v3565
    %v3567 = vrot.slane %v1283, %v3566
    %v3568 = vsel %vm2840, %v3567, %v3563
    %v3569 = vlaneseq
    %v3570 = vshrl.u32 %v3569, 7
    %v3571 = vsub.s32 %v2842, %v3570
    %v3572 = vrot.slane %v1284, %v3571
    %v3573 = vsel %vm2847, %v3572, %v3568
    %v3574 = vlaneseq
    %v3575 = vshrl.u32 %v3574, 7
    %v3576 = vsub.s32 %v2849, %v3575
    %v3577 = vrot.slane %v1285, %v3576
    %v3578 = vsel %vm2854, %v3577, %v3573
    %v3579 = vlaneseq
    %v3580 = vshrl.u32 %v3579, 7
    %v3581 = vsub.s32 %v2746, %v3580
    %v3582 = vrot.slane %v1286, %v3581
    %v3583 = vlaneseq
    %v3584 = vshrl.u32 %v3583, 7
    %v3585 = vsub.s32 %v2751, %v3584
    %v3586 = vrot.slane %v1287, %v3585
    %v3587 = vsel %vm2756, %v3586, %v3582
    %v3588 = vlaneseq
    %v3589 = vshrl.u32 %v3588, 7
    %v3590 = vsub.s32 %v2758, %v3589
    %v3591 = vrot.slane %v1288, %v3590
    %v3592 = vsel %vm2763, %v3591, %v3587
    %v3593 = vlaneseq
    %v3594 = vshrl.u32 %v3593, 7
    %v3595 = vsub.s32 %v2765, %v3594
    %v3596 = vrot.slane %v1289, %v3595
    %v3597 = vsel %vm2770, %v3596, %v3592
    %v3598 = vlaneseq
    %v3599 = vshrl.u32 %v3598, 7
    %v3600 = vsub.s32 %v2772, %v3599
    %v3601 = vrot.slane %v1290, %v3600
    %v3602 = vsel %vm2777, %v3601, %v3597
    %v3603 = vlaneseq
    %v3604 = vshrl.u32 %v3603, 7
    %v3605 = vsub.s32 %v2779, %v3604
    %v3606 = vrot.slane %v1291, %v3605
    %v3607 = vsel %vm2784, %v3606, %v3602
    %v3608 = vlaneseq
    %v3609 = vshrl.u32 %v3608, 7
    %v3610 = vsub.s32 %v2786, %v3609
    %v3611 = vrot.slane %v1292, %v3610
    %v3612 = vsel %vm2791, %v3611, %v3607
    %v3613 = vlaneseq
    %v3614 = vshrl.u32 %v3613, 7
    %v3615 = vsub.s32 %v2793, %v3614
    %v3616 = vrot.slane %v1293, %v3615
    %v3617 = vsel %vm2798, %v3616, %v3612
    %v3618 = vlaneseq
    %v3619 = vshrl.u32 %v3618, 7
    %v3620 = vsub.s32 %v2800, %v3619
    %v3621 = vrot.slane %v1294, %v3620
    %v3622 = vsel %vm2805, %v3621, %v3617
    %v3623 = vlaneseq
    %v3624 = vshrl.u32 %v3623, 7
    %v3625 = vsub.s32 %v2746, %v3624
    %v3626 = vrot.slane %v1295, %v3625
    %v3627 = vlaneseq
    %v3628 = vshrl.u32 %v3627, 7
    %v3629 = vsub.s32 %v2751, %v3628
    %v3630 = vrot.slane %v1296, %v3629
    %v3631 = vsel %vm2756, %v3630, %v3626
    %v3632 = vlaneseq
    %v3633 = vshrl.u32 %v3632, 7
    %v3634 = vsub.s32 %v2758, %v3633
    %v3635 = vrot.slane %v1297, %v3634
    %v3636 = vsel %vm2763, %v3635, %v3631
    %v3637 = vlaneseq
    %v3638 = vshrl.u32 %v3637, 7
    %v3639 = vsub.s32 %v2765, %v3638
    %v3640 = vrot.slane %v1298, %v3639
    %v3641 = vsel %vm2770, %v3640, %v3636
    %v3642 = vlaneseq
    %v3643 = vshrl.u32 %v3642, 7
    %v3644 = vsub.s32 %v2772, %v3643
    %v3645 = vrot.slane %v1299, %v3644
    %v3646 = vsel %vm2777, %v3645, %v3641
    %v3647 = vlaneseq
    %v3648 = vshrl.u32 %v3647, 7
    %v3649 = vsub.s32 %v2779, %v3648
    %v3650 = vrot.slane %v1300, %v3649
    %v3651 = vsel %vm2784, %v3650, %v3646
    %v3652 = vlaneseq
    %v3653 = vshrl.u32 %v3652, 7
    %v3654 = vsub.s32 %v2786, %v3653
    %v3655 = vrot.slane %v1301, %v3654
    %v3656 = vsel %vm2791, %v3655, %v3651
    %v3657 = vlaneseq
    %v3658 = vshrl.u32 %v3657, 7
    %v3659 = vsub.s32 %v2793, %v3658
    %v3660 = vrot.slane %v1302, %v3659
    %v3661 = vsel %vm2798, %v3660, %v3656
    %v3662 = vlaneseq
    %v3663 = vshrl.u32 %v3662, 7
    %v3664 = vsub.s32 %v2800, %v3663
    %v3665 = vrot.slane %v1303, %v3664
    %v3666 = vsel %vm2805, %v3665, %v3661
    %v3667 = vlaneseq
    %v3668 = vshrl.u32 %v3667, 7
    %v3669 = vsub.s32 %v2807, %v3668
    %v3670 = vrot.slane %v1304, %v3669
    %v3671 = vsel %vm2812, %v3670, %v3666
    %v3672 = vlaneseq
    %v3673 = vshrl.u32 %v3672, 7
    %v3674 = vsub.s32 %v2814, %v3673
    %v3675 = vrot.slane %v1305, %v3674
    %v3676 = vsel %vm2819, %v3675, %v3671
    %v3677 = vlaneseq
    %v3678 = vshrl.u32 %v3677, 7
    %v3679 = vsub.s32 %v2821, %v3678
    %v3680 = vrot.slane %v1306, %v3679
    %v3681 = vsel %vm2826, %v3680, %v3676
    %v3682 = vlaneseq
    %v3683 = vshrl.u32 %v3682, 7
    %v3684 = vsub.s32 %v2828, %v3683
    %v3685 = vrot.slane %v1307, %v3684
    %v3686 = vsel %vm2833, %v3685, %v3681
    %v3687 = vlaneseq
    %v3688 = vshrl.u32 %v3687, 7
    %v3689 = vsub.s32 %v2835, %v3688
    %v3690 = vrot.slane %v1308, %v3689
    %v3691 = vsel %vm2840, %v3690, %v3686
    %v3692 = vlaneseq
    %v3693 = vshrl.u32 %v3692, 7
    %v3694 = vsub.s32 %v2842, %v3693
    %v3695 = vrot.slane %v1309, %v3694
    %v3696 = vsel %vm2847, %v3695, %v3691
    %v3697 = vlaneseq
    %v3698 = vshrl.u32 %v3697, 7
    %v3699 = vsub.s32 %v2849, %v3698
    %v3700 = vrot.slane %v1310, %v3699
    %v3701 = vsel %vm2854, %v3700, %v3696
    %v3702 = vlaneseq
    %v3703 = vshrl.u32 %v3702, 7
    %v3704 = vsub.s32 %v2746, %v3703
    %v3705 = vrot.slane %v1311, %v3704
    %v3706 = vlaneseq
    %v3707 = vshrl.u32 %v3706, 7
    %v3708 = vsub.s32 %v2751, %v3707
    %v3709 = vrot.slane %v1312, %v3708
    %v3710 = vsel %vm2756, %v3709, %v3705
    %v3711 = vlaneseq
    %v3712 = vshrl.u32 %v3711, 7
    %v3713 = vsub.s32 %v2758, %v3712
    %v3714 = vrot.slane %v1313, %v3713
    %v3715 = vsel %vm2763, %v3714, %v3710
    %v3716 = vlaneseq
    %v3717 = vshrl.u32 %v3716, 7
    %v3718 = vsub.s32 %v2765, %v3717
    %v3719 = vrot.slane %v1314, %v3718
    %v3720 = vsel %vm2770, %v3719, %v3715
    %v3721 = vlaneseq
    %v3722 = vshrl.u32 %v3721, 7
    %v3723 = vsub.s32 %v2772, %v3722
    %v3724 = vrot.slane %v1315, %v3723
    %v3725 = vsel %vm2777, %v3724, %v3720
    %v3726 = vlaneseq
    %v3727 = vshrl.u32 %v3726, 7
    %v3728 = vsub.s32 %v2779, %v3727
    %v3729 = vrot.slane %v1316, %v3728
    %v3730 = vsel %vm2784, %v3729, %v3725
    %v3731 = vlaneseq
    %v3732 = vshrl.u32 %v3731, 7
    %v3733 = vsub.s32 %v2786, %v3732
    %v3734 = vrot.slane %v1317, %v3733
    %v3735 = vsel %vm2791, %v3734, %v3730
    %v3736 = vlaneseq
    %v3737 = vshrl.u32 %v3736, 7
    %v3738 = vsub.s32 %v2793, %v3737
    %v3739 = vrot.slane %v1318, %v3738
    %v3740 = vsel %vm2798, %v3739, %v3735
    %v3741 = vlaneseq
    %v3742 = vshrl.u32 %v3741, 7
    %v3743 = vsub.s32 %v2800, %v3742
    %v3744 = vrot.slane %v1319, %v3743
    %v3745 = vsel %vm2805, %v3744, %v3740
    %v3746 = vlaneseq
    %v3747 = vshrl.u32 %v3746, 7
    %v3748 = vsub.s32 %v2746, %v3747
    %v3749 = vrot.slane %v1320, %v3748
    %v3750 = vlaneseq
    %v3751 = vshrl.u32 %v3750, 7
    %v3752 = vsub.s32 %v2751, %v3751
    %v3753 = vrot.slane %v1321, %v3752
    %v3754 = vsel %vm2756, %v3753, %v3749
    %v3755 = vlaneseq
    %v3756 = vshrl.u32 %v3755, 7
    %v3757 = vsub.s32 %v2758, %v3756
    %v3758 = vrot.slane %v1322, %v3757
    %v3759 = vsel %vm2763, %v3758, %v3754
    %v3760 = vlaneseq
    %v3761 = vshrl.u32 %v3760, 7
    %v3762 = vsub.s32 %v2765, %v3761
    %v3763 = vrot.slane %v1323, %v3762
    %v3764 = vsel %vm2770, %v3763, %v3759
    %v3765 = vlaneseq
    %v3766 = vshrl.u32 %v3765, 7
    %v3767 = vsub.s32 %v2772, %v3766
    %v3768 = vrot.slane %v1324, %v3767
    %v3769 = vsel %vm2777, %v3768, %v3764
    %v3770 = vlaneseq
    %v3771 = vshrl.u32 %v3770, 7
    %v3772 = vsub.s32 %v2779, %v3771
    %v3773 = vrot.slane %v1325, %v3772
    %v3774 = vsel %vm2784, %v3773, %v3769
    %v3775 = vlaneseq
    %v3776 = vshrl.u32 %v3775, 7
    %v3777 = vsub.s32 %v2786, %v3776
    %v3778 = vrot.slane %v1326, %v3777
    %v3779 = vsel %vm2791, %v3778, %v3774
    %v3780 = vlaneseq
    %v3781 = vshrl.u32 %v3780, 7
    %v3782 = vsub.s32 %v2793, %v3781
    %v3783 = vrot.slane %v1327, %v3782
    %v3784 = vsel %vm2798, %v3783, %v3779
    %v3785 = vlaneseq
    %v3786 = vshrl.u32 %v3785, 7
    %v3787 = vsub.s32 %v2800, %v3786
    %v3788 = vrot.slane %v1328, %v3787
    %v3789 = vsel %vm2805, %v3788, %v3784
    %v3790 = vlaneseq
    %v3791 = vshrl.u32 %v3790, 7
    %v3792 = vsub.s32 %v2807, %v3791
    %v3793 = vrot.slane %v1329, %v3792
    %v3794 = vsel %vm2812, %v3793, %v3789
    %v3795 = vlaneseq
    %v3796 = vshrl.u32 %v3795, 7
    %v3797 = vsub.s32 %v2814, %v3796
    %v3798 = vrot.slane %v1330, %v3797
    %v3799 = vsel %vm2819, %v3798, %v3794
    %v3800 = vlaneseq
    %v3801 = vshrl.u32 %v3800, 7
    %v3802 = vsub.s32 %v2821, %v3801
    %v3803 = vrot.slane %v1331, %v3802
    %v3804 = vsel %vm2826, %v3803, %v3799
    %v3805 = vlaneseq
    %v3806 = vshrl.u32 %v3805, 7
    %v3807 = vsub.s32 %v2828, %v3806
    %v3808 = vrot.slane %v1332, %v3807
    %v3809 = vsel %vm2833, %v3808, %v3804
    %v3810 = vlaneseq
    %v3811 = vshrl.u32 %v3810, 7
    %v3812 = vsub.s32 %v2835, %v3811
    %v3813 = vrot.slane %v1333, %v3812
    %v3814 = vsel %vm2840, %v3813, %v3809
    %v3815 = vlaneseq
    %v3816 = vshrl.u32 %v3815, 7
    %v3817 = vsub.s32 %v2842, %v3816
    %v3818 = vrot.slane %v1334, %v3817
    %v3819 = vsel %vm2847, %v3818, %v3814
    %v3820 = vlaneseq
    %v3821 = vshrl.u32 %v3820, 7
    %v3822 = vsub.s32 %v2849, %v3821
    %v3823 = vrot.slane %v1335, %v3822
    %v3824 = vsel %vm2854, %v3823, %v3819
    %v3825 = vlaneseq
    %v3826 = vshrl.u32 %v3825, 7
    %v3827 = vsub.s32 %v2746, %v3826
    %v3828 = vrot.slane %v1336, %v3827
    %v3829 = vlaneseq
    %v3830 = vshrl.u32 %v3829, 7
    %v3831 = vsub.s32 %v2751, %v3830
    %v3832 = vrot.slane %v1337, %v3831
    %v3833 = vsel %vm2756, %v3832, %v3828
    %v3834 = vlaneseq
    %v3835 = vshrl.u32 %v3834, 7
    %v3836 = vsub.s32 %v2758, %v3835
    %v3837 = vrot.slane %v1338, %v3836
    %v3838 = vsel %vm2763, %v3837, %v3833
    %v3839 = vlaneseq
    %v3840 = vshrl.u32 %v3839, 7
    %v3841 = vsub.s32 %v2765, %v3840
    %v3842 = vrot.slane %v1339, %v3841
    %v3843 = vsel %vm2770, %v3842, %v3838
    %v3844 = vlaneseq
    %v3845 = vshrl.u32 %v3844, 7
    %v3846 = vsub.s32 %v2772, %v3845
    %v3847 = vrot.slane %v1340, %v3846
    %v3848 = vsel %vm2777, %v3847, %v3843
    %v3849 = vlaneseq
    %v3850 = vshrl.u32 %v3849, 7
    %v3851 = vsub.s32 %v2779, %v3850
    %v3852 = vrot.slane %v1341, %v3851
    %v3853 = vsel %vm2784, %v3852, %v3848
    %v3854 = vlaneseq
    %v3855 = vshrl.u32 %v3854, 7
    %v3856 = vsub.s32 %v2786, %v3855
    %v3857 = vrot.slane %v1342, %v3856
    %v3858 = vsel %vm2791, %v3857, %v3853
    %v3859 = vlaneseq
    %v3860 = vshrl.u32 %v3859, 7
    %v3861 = vsub.s32 %v2793, %v3860
    %v3862 = vrot.slane %v1343, %v3861
    %v3863 = vsel %vm2798, %v3862, %v3858
    %v3864 = vlaneseq
    %v3865 = vshrl.u32 %v3864, 7
    %v3866 = vsub.s32 %v2800, %v3865
    %v3867 = vrot.slane %v1344, %v3866
    %v3868 = vsel %vm2805, %v3867, %v3863
    %v3977 = vlaneseq
    %v3978 = vshrl.u32 %v3977, 7
    %v3979 = vsub.s32 %v2746, %v3978
    %v3980 = vrot.slane %v1745, %v3979
    %v3981 = vlaneseq
    %v3982 = vshrl.u32 %v3981, 7
    %v3983 = vsub.s32 %v2751, %v3982
    %v3984 = vrot.slane %v1746, %v3983
    %v3985 = vsel %vm2756, %v3984, %v3980
    %v3986 = vlaneseq
    %v3987 = vshrl.u32 %v3986, 7
    %v3988 = vsub.s32 %v2758, %v3987
    %v3989 = vrot.slane %v1747, %v3988
    %v3990 = vsel %vm2763, %v3989, %v3985
    %v3991 = vlaneseq
    %v3992 = vshrl.u32 %v3991, 7
    %v3993 = vsub.s32 %v2765, %v3992
    %v3994 = vrot.slane %v1748, %v3993
    %v3995 = vsel %vm2770, %v3994, %v3990
    %v3996 = vlaneseq
    %v3997 = vshrl.u32 %v3996, 7
    %v3998 = vsub.s32 %v2772, %v3997
    %v3999 = vrot.slane %v1749, %v3998
    %v4000 = vsel %vm2777, %v3999, %v3995
    %v4001 = vlaneseq
    %v4002 = vshrl.u32 %v4001, 7
    %v4003 = vsub.s32 %v2779, %v4002
    %v4004 = vrot.slane %v1750, %v4003
    %v4005 = vsel %vm2784, %v4004, %v4000
    %v4006 = vlaneseq
    %v4007 = vshrl.u32 %v4006, 7
    %v4008 = vsub.s32 %v2786, %v4007
    %v4009 = vrot.slane %v1751, %v4008
    %v4010 = vsel %vm2791, %v4009, %v4005
    %v4011 = vlaneseq
    %v4012 = vshrl.u32 %v4011, 7
    %v4013 = vsub.s32 %v2793, %v4012
    %v4014 = vrot.slane %v1752, %v4013
    %v4015 = vsel %vm2798, %v4014, %v4010
    %v4016 = vlaneseq
    %v4017 = vshrl.u32 %v4016, 7
    %v4018 = vsub.s32 %v2800, %v4017
    %v4019 = vrot.slane %v1753, %v4018
    %v4020 = vsel %vm2805, %v4019, %v4015
    %v4021 = vlaneseq
    %v4022 = vshrl.u32 %v4021, 7
    %v4023 = vsub.s32 %v2807, %v4022
    %v4024 = vrot.slane %v1754, %v4023
    %v4025 = vsel %vm2812, %v4024, %v4020
    %v4026 = vlaneseq
    %v4027 = vshrl.u32 %v4026, 7
    %v4028 = vsub.s32 %v2814, %v4027
    %v4029 = vrot.slane %v1755, %v4028
    %v4030 = vsel %vm2819, %v4029, %v4025
    %v4031 = vlaneseq
    %v4032 = vshrl.u32 %v4031, 7
    %v4033 = vsub.s32 %v2821, %v4032
    %v4034 = vrot.slane %v1756, %v4033
    %v4035 = vsel %vm2826, %v4034, %v4030
    %v4036 = vlaneseq
    %v4037 = vshrl.u32 %v4036, 7
    %v4038 = vsub.s32 %v2828, %v4037
    %v4039 = vrot.slane %v1757, %v4038
    %v4040 = vsel %vm2833, %v4039, %v4035
    %v4041 = vlaneseq
    %v4042 = vshrl.u32 %v4041, 7
    %v4043 = vsub.s32 %v2835, %v4042
    %v4044 = vrot.slane %v1758, %v4043
    %v4045 = vsel %vm2840, %v4044, %v4040
    %v4046 = vlaneseq
    %v4047 = vshrl.u32 %v4046, 7
    %v4048 = vsub.s32 %v2842, %v4047
    %v4049 = vrot.slane %v1759, %v4048
    %v4050 = vsel %vm2847, %v4049, %v4045
    %v4051 = vlaneseq
    %v4052 = vshrl.u32 %v4051, 7
    %v4053 = vsub.s32 %v2849, %v4052
    %v4054 = vrot.slane %v1760, %v4053
    %v4055 = vsel %vm2854, %v4054, %v4050
    %v4056 = vlaneseq
    %v4057 = vshrl.u32 %v4056, 7
    %v4058 = vsub.s32 %v2746, %v4057
    %v4059 = vrot.slane %v1761, %v4058
    %v4060 = vlaneseq
    %v4061 = vshrl.u32 %v4060, 7
    %v4062 = vsub.s32 %v2751, %v4061
    %v4063 = vrot.slane %v1762, %v4062
    %v4064 = vsel %vm2756, %v4063, %v4059
    %v4065 = vlaneseq
    %v4066 = vshrl.u32 %v4065, 7
    %v4067 = vsub.s32 %v2758, %v4066
    %v4068 = vrot.slane %v1763, %v4067
    %v4069 = vsel %vm2763, %v4068, %v4064
    %v4070 = vlaneseq
    %v4071 = vshrl.u32 %v4070, 7
    %v4072 = vsub.s32 %v2765, %v4071
    %v4073 = vrot.slane %v1764, %v4072
    %v4074 = vsel %vm2770, %v4073, %v4069
    %v4075 = vlaneseq
    %v4076 = vshrl.u32 %v4075, 7
    %v4077 = vsub.s32 %v2772, %v4076
    %v4078 = vrot.slane %v1765, %v4077
    %v4079 = vsel %vm2777, %v4078, %v4074
    %v4080 = vlaneseq
    %v4081 = vshrl.u32 %v4080, 7
    %v4082 = vsub.s32 %v2779, %v4081
    %v4083 = vrot.slane %v1766, %v4082
    %v4084 = vsel %vm2784, %v4083, %v4079
    %v4085 = vlaneseq
    %v4086 = vshrl.u32 %v4085, 7
    %v4087 = vsub.s32 %v2786, %v4086
    %v4088 = vrot.slane %v1767, %v4087
    %v4089 = vsel %vm2791, %v4088, %v4084
    %v4090 = vlaneseq
    %v4091 = vshrl.u32 %v4090, 7
    %v4092 = vsub.s32 %v2793, %v4091
    %v4093 = vrot.slane %v1768, %v4092
    %v4094 = vsel %vm2798, %v4093, %v4089
    %v4095 = vlaneseq
    %v4096 = vshrl.u32 %v4095, 7
    %v4097 = vsub.s32 %v2800, %v4096
    %v4098 = vrot.slane %v1769, %v4097
    %v4099 = vsel %vm2805, %v4098, %v4094
    %v4100 = vlaneseq
    %v4101 = vshrl.u32 %v4100, 7
    %v4102 = vsub.s32 %v2746, %v4101
    %v4103 = vrot.slane %v1770, %v4102
    %v4104 = vlaneseq
    %v4105 = vshrl.u32 %v4104, 7
    %v4106 = vsub.s32 %v2751, %v4105
    %v4107 = vrot.slane %v1771, %v4106
    %v4108 = vsel %vm2756, %v4107, %v4103
    %v4109 = vlaneseq
    %v4110 = vshrl.u32 %v4109, 7
    %v4111 = vsub.s32 %v2758, %v4110
    %v4112 = vrot.slane %v1772, %v4111
    %v4113 = vsel %vm2763, %v4112, %v4108
    %v4114 = vlaneseq
    %v4115 = vshrl.u32 %v4114, 7
    %v4116 = vsub.s32 %v2765, %v4115
    %v4117 = vrot.slane %v1773, %v4116
    %v4118 = vsel %vm2770, %v4117, %v4113
    %v4119 = vlaneseq
    %v4120 = vshrl.u32 %v4119, 7
    %v4121 = vsub.s32 %v2772, %v4120
    %v4122 = vrot.slane %v1774, %v4121
    %v4123 = vsel %vm2777, %v4122, %v4118
    %v4124 = vlaneseq
    %v4125 = vshrl.u32 %v4124, 7
    %v4126 = vsub.s32 %v2779, %v4125
    %v4127 = vrot.slane %v1775, %v4126
    %v4128 = vsel %vm2784, %v4127, %v4123
    %v4129 = vlaneseq
    %v4130 = vshrl.u32 %v4129, 7
    %v4131 = vsub.s32 %v2786, %v4130
    %v4132 = vrot.slane %v1776, %v4131
    %v4133 = vsel %vm2791, %v4132, %v4128
    %v4134 = vlaneseq
    %v4135 = vshrl.u32 %v4134, 7
    %v4136 = vsub.s32 %v2793, %v4135
    %v4137 = vrot.slane %v1777, %v4136
    %v4138 = vsel %vm2798, %v4137, %v4133
    %v4139 = vlaneseq
    %v4140 = vshrl.u32 %v4139, 7
    %v4141 = vsub.s32 %v2800, %v4140
    %v4142 = vrot.slane %v1778, %v4141
    %v4143 = vsel %vm2805, %v4142, %v4138
    %v4144 = vlaneseq
    %v4145 = vshrl.u32 %v4144, 7
    %v4146 = vsub.s32 %v2807, %v4145
    %v4147 = vrot.slane %v1779, %v4146
    %v4148 = vsel %vm2812, %v4147, %v4143
    %v4149 = vlaneseq
    %v4150 = vshrl.u32 %v4149, 7
    %v4151 = vsub.s32 %v2814, %v4150
    %v4152 = vrot.slane %v1780, %v4151
    %v4153 = vsel %vm2819, %v4152, %v4148
    %v4154 = vlaneseq
    %v4155 = vshrl.u32 %v4154, 7
    %v4156 = vsub.s32 %v2821, %v4155
    %v4157 = vrot.slane %v1781, %v4156
    %v4158 = vsel %vm2826, %v4157, %v4153
    %v4159 = vlaneseq
    %v4160 = vshrl.u32 %v4159, 7
    %v4161 = vsub.s32 %v2828, %v4160
    %v4162 = vrot.slane %v1782, %v4161
    %v4163 = vsel %vm2833, %v4162, %v4158
    %v4164 = vlaneseq
    %v4165 = vshrl.u32 %v4164, 7
    %v4166 = vsub.s32 %v2835, %v4165
    %v4167 = vrot.slane %v1783, %v4166
    %v4168 = vsel %vm2840, %v4167, %v4163
    %v4169 = vlaneseq
    %v4170 = vshrl.u32 %v4169, 7
    %v4171 = vsub.s32 %v2842, %v4170
    %v4172 = vrot.slane %v1784, %v4171
    %v4173 = vsel %vm2847, %v4172, %v4168
    %v4174 = vlaneseq
    %v4175 = vshrl.u32 %v4174, 7
    %v4176 = vsub.s32 %v2849, %v4175
    %v4177 = vrot.slane %v1785, %v4176
    %v4178 = vsel %vm2854, %v4177, %v4173
    %v4179 = vlaneseq
    %v4180 = vshrl.u32 %v4179, 7
    %v4181 = vsub.s32 %v2746, %v4180
    %v4182 = vrot.slane %v1786, %v4181
    %v4183 = vlaneseq
    %v4184 = vshrl.u32 %v4183, 7
    %v4185 = vsub.s32 %v2751, %v4184
    %v4186 = vrot.slane %v1787, %v4185
    %v4187 = vsel %vm2756, %v4186, %v4182
    %v4188 = vlaneseq
    %v4189 = vshrl.u32 %v4188, 7
    %v4190 = vsub.s32 %v2758, %v4189
    %v4191 = vrot.slane %v1788, %v4190
    %v4192 = vsel %vm2763, %v4191, %v4187
    %v4193 = vlaneseq
    %v4194 = vshrl.u32 %v4193, 7
    %v4195 = vsub.s32 %v2765, %v4194
    %v4196 = vrot.slane %v1789, %v4195
    %v4197 = vsel %vm2770, %v4196, %v4192
    %v4198 = vlaneseq
    %v4199 = vshrl.u32 %v4198, 7
    %v4200 = vsub.s32 %v2772, %v4199
    %v4201 = vrot.slane %v1790, %v4200
    %v4202 = vsel %vm2777, %v4201, %v4197
    %v4203 = vlaneseq
    %v4204 = vshrl.u32 %v4203, 7
    %v4205 = vsub.s32 %v2779, %v4204
    %v4206 = vrot.slane %v1791, %v4205
    %v4207 = vsel %vm2784, %v4206, %v4202
    %v4208 = vlaneseq
    %v4209 = vshrl.u32 %v4208, 7
    %v4210 = vsub.s32 %v2786, %v4209
    %v4211 = vrot.slane %v1792, %v4210
    %v4212 = vsel %vm2791, %v4211, %v4207
    %v4213 = vlaneseq
    %v4214 = vshrl.u32 %v4213, 7
    %v4215 = vsub.s32 %v2793, %v4214
    %v4216 = vrot.slane %v1793, %v4215
    %v4217 = vsel %vm2798, %v4216, %v4212
    %v4218 = vlaneseq
    %v4219 = vshrl.u32 %v4218, 7
    %v4220 = vsub.s32 %v2800, %v4219
    %v4221 = vrot.slane %v1794, %v4220
    %v4222 = vsel %vm2805, %v4221, %v4217
    %v4223 = vlaneseq
    %v4224 = vshrl.u32 %v4223, 7
    %v4225 = vsub.s32 %v2746, %v4224
    %v4226 = vrot.slane %v1795, %v4225
    %v4227 = vlaneseq
    %v4228 = vshrl.u32 %v4227, 7
    %v4229 = vsub.s32 %v2751, %v4228
    %v4230 = vrot.slane %v1796, %v4229
    %v4231 = vsel %vm2756, %v4230, %v4226
    %v4232 = vlaneseq
    %v4233 = vshrl.u32 %v4232, 7
    %v4234 = vsub.s32 %v2758, %v4233
    %v4235 = vrot.slane %v1797, %v4234
    %v4236 = vsel %vm2763, %v4235, %v4231
    %v4237 = vlaneseq
    %v4238 = vshrl.u32 %v4237, 7
    %v4239 = vsub.s32 %v2765, %v4238
    %v4240 = vrot.slane %v1798, %v4239
    %v4241 = vsel %vm2770, %v4240, %v4236
    %v4242 = vlaneseq
    %v4243 = vshrl.u32 %v4242, 7
    %v4244 = vsub.s32 %v2772, %v4243
    %v4245 = vrot.slane %v1799, %v4244
    %v4246 = vsel %vm2777, %v4245, %v4241
    %v4247 = vlaneseq
    %v4248 = vshrl.u32 %v4247, 7
    %v4249 = vsub.s32 %v2779, %v4248
    %v4250 = vrot.slane %v1800, %v4249
    %v4251 = vsel %vm2784, %v4250, %v4246
    %v4252 = vlaneseq
    %v4253 = vshrl.u32 %v4252, 7
    %v4254 = vsub.s32 %v2786, %v4253
    %v4255 = vrot.slane %v1801, %v4254
    %v4256 = vsel %vm2791, %v4255, %v4251
    %v4257 = vlaneseq
    %v4258 = vshrl.u32 %v4257, 7
    %v4259 = vsub.s32 %v2793, %v4258
    %v4260 = vrot.slane %v1802, %v4259
    %v4261 = vsel %vm2798, %v4260, %v4256
    %v4262 = vlaneseq
    %v4263 = vshrl.u32 %v4262, 7
    %v4264 = vsub.s32 %v2800, %v4263
    %v4265 = vrot.slane %v1803, %v4264
    %v4266 = vsel %vm2805, %v4265, %v4261
    %v4267 = vlaneseq
    %v4268 = vshrl.u32 %v4267, 7
    %v4269 = vsub.s32 %v2807, %v4268
    %v4270 = vrot.slane %v1804, %v4269
    %v4271 = vsel %vm2812, %v4270, %v4266
    %v4272 = vlaneseq
    %v4273 = vshrl.u32 %v4272, 7
    %v4274 = vsub.s32 %v2814, %v4273
    %v4275 = vrot.slane %v1805, %v4274
    %v4276 = vsel %vm2819, %v4275, %v4271
    %v4277 = vlaneseq
    %v4278 = vshrl.u32 %v4277, 7
    %v4279 = vsub.s32 %v2821, %v4278
    %v4280 = vrot.slane %v1806, %v4279
    %v4281 = vsel %vm2826, %v4280, %v4276
    %v4282 = vlaneseq
    %v4283 = vshrl.u32 %v4282, 7
    %v4284 = vsub.s32 %v2828, %v4283
    %v4285 = vrot.slane %v1807, %v4284
    %v4286 = vsel %vm2833, %v4285, %v4281
    %v4287 = vlaneseq
    %v4288 = vshrl.u32 %v4287, 7
    %v4289 = vsub.s32 %v2835, %v4288
    %v4290 = vrot.slane %v1808, %v4289
    %v4291 = vsel %vm2840, %v4290, %v4286
    %v4292 = vlaneseq
    %v4293 = vshrl.u32 %v4292, 7
    %v4294 = vsub.s32 %v2842, %v4293
    %v4295 = vrot.slane %v1809, %v4294
    %v4296 = vsel %vm2847, %v4295, %v4291
    %v4297 = vlaneseq
    %v4298 = vshrl.u32 %v4297, 7
    %v4299 = vsub.s32 %v2849, %v4298
    %v4300 = vrot.slane %v1810, %v4299
    %v4301 = vsel %vm2854, %v4300, %v4296
    %v4302 = vlaneseq
    %v4303 = vshrl.u32 %v4302, 7
    %v4304 = vsub.s32 %v2746, %v4303
    %v4305 = vrot.slane %v1811, %v4304
    %v4306 = vlaneseq
    %v4307 = vshrl.u32 %v4306, 7
    %v4308 = vsub.s32 %v2751, %v4307
    %v4309 = vrot.slane %v1812, %v4308
    %v4310 = vsel %vm2756, %v4309, %v4305
    %v4311 = vlaneseq
    %v4312 = vshrl.u32 %v4311, 7
    %v4313 = vsub.s32 %v2758, %v4312
    %v4314 = vrot.slane %v1813, %v4313
    %v4315 = vsel %vm2763, %v4314, %v4310
    %v4316 = vlaneseq
    %v4317 = vshrl.u32 %v4316, 7
    %v4318 = vsub.s32 %v2765, %v4317
    %v4319 = vrot.slane %v1814, %v4318
    %v4320 = vsel %vm2770, %v4319, %v4315
    %v4321 = vlaneseq
    %v4322 = vshrl.u32 %v4321, 7
    %v4323 = vsub.s32 %v2772, %v4322
    %v4324 = vrot.slane %v1815, %v4323
    %v4325 = vsel %vm2777, %v4324, %v4320
    %v4326 = vlaneseq
    %v4327 = vshrl.u32 %v4326, 7
    %v4328 = vsub.s32 %v2779, %v4327
    %v4329 = vrot.slane %v1816, %v4328
    %v4330 = vsel %vm2784, %v4329, %v4325
    %v4331 = vlaneseq
    %v4332 = vshrl.u32 %v4331, 7
    %v4333 = vsub.s32 %v2786, %v4332
    %v4334 = vrot.slane %v1817, %v4333
    %v4335 = vsel %vm2791, %v4334, %v4330
    %v4336 = vlaneseq
    %v4337 = vshrl.u32 %v4336, 7
    %v4338 = vsub.s32 %v2793, %v4337
    %v4339 = vrot.slane %v1818, %v4338
    %v4340 = vsel %vm2798, %v4339, %v4335
    %v4341 = vlaneseq
    %v4342 = vshrl.u32 %v4341, 7
    %v4343 = vsub.s32 %v2800, %v4342
    %v4344 = vrot.slane %v1819, %v4343
    %v4345 = vsel %vm2805, %v4344, %v4340
    %v4346 = vlaneseq
    %v4347 = vshrl.u32 %v4346, 7
    %v4348 = vsub.s32 %v2746, %v4347
    %v4349 = vrot.slane %v1820, %v4348
    %v4350 = vlaneseq
    %v4351 = vshrl.u32 %v4350, 7
    %v4352 = vsub.s32 %v2751, %v4351
    %v4353 = vrot.slane %v1821, %v4352
    %v4354 = vsel %vm2756, %v4353, %v4349
    %v4355 = vlaneseq
    %v4356 = vshrl.u32 %v4355, 7
    %v4357 = vsub.s32 %v2758, %v4356
    %v4358 = vrot.slane %v1822, %v4357
    %v4359 = vsel %vm2763, %v4358, %v4354
    %v4360 = vlaneseq
    %v4361 = vshrl.u32 %v4360, 7
    %v4362 = vsub.s32 %v2765, %v4361
    %v4363 = vrot.slane %v1823, %v4362
    %v4364 = vsel %vm2770, %v4363, %v4359
    %v4365 = vlaneseq
    %v4366 = vshrl.u32 %v4365, 7
    %v4367 = vsub.s32 %v2772, %v4366
    %v4368 = vrot.slane %v1824, %v4367
    %v4369 = vsel %vm2777, %v4368, %v4364
    %v4370 = vlaneseq
    %v4371 = vshrl.u32 %v4370, 7
    %v4372 = vsub.s32 %v2779, %v4371
    %v4373 = vrot.slane %v1825, %v4372
    %v4374 = vsel %vm2784, %v4373, %v4369
    %v4375 = vlaneseq
    %v4376 = vshrl.u32 %v4375, 7
    %v4377 = vsub.s32 %v2786, %v4376
    %v4378 = vrot.slane %v1826, %v4377
    %v4379 = vsel %vm2791, %v4378, %v4374
    %v4380 = vlaneseq
    %v4381 = vshrl.u32 %v4380, 7
    %v4382 = vsub.s32 %v2793, %v4381
    %v4383 = vrot.slane %v1827, %v4382
    %v4384 = vsel %vm2798, %v4383, %v4379
    %v4385 = vlaneseq
    %v4386 = vshrl.u32 %v4385, 7
    %v4387 = vsub.s32 %v2800, %v4386
    %v4388 = vrot.slane %v1828, %v4387
    %v4389 = vsel %vm2805, %v4388, %v4384
    %v4390 = vlaneseq
    %v4391 = vshrl.u32 %v4390, 7
    %v4392 = vsub.s32 %v2807, %v4391
    %v4393 = vrot.slane %v1829, %v4392
    %v4394 = vsel %vm2812, %v4393, %v4389
    %v4395 = vlaneseq
    %v4396 = vshrl.u32 %v4395, 7
    %v4397 = vsub.s32 %v2814, %v4396
    %v4398 = vrot.slane %v1830, %v4397
    %v4399 = vsel %vm2819, %v4398, %v4394
    %v4400 = vlaneseq
    %v4401 = vshrl.u32 %v4400, 7
    %v4402 = vsub.s32 %v2821, %v4401
    %v4403 = vrot.slane %v1831, %v4402
    %v4404 = vsel %vm2826, %v4403, %v4399
    %v4405 = vlaneseq
    %v4406 = vshrl.u32 %v4405, 7
    %v4407 = vsub.s32 %v2828, %v4406
    %v4408 = vrot.slane %v1832, %v4407
    %v4409 = vsel %vm2833, %v4408, %v4404
    %v4410 = vlaneseq
    %v4411 = vshrl.u32 %v4410, 7
    %v4412 = vsub.s32 %v2835, %v4411
    %v4413 = vrot.slane %v1833, %v4412
    %v4414 = vsel %vm2840, %v4413, %v4409
    %v4415 = vlaneseq
    %v4416 = vshrl.u32 %v4415, 7
    %v4417 = vsub.s32 %v2842, %v4416
    %v4418 = vrot.slane %v1834, %v4417
    %v4419 = vsel %vm2847, %v4418, %v4414
    %v4420 = vlaneseq
    %v4421 = vshrl.u32 %v4420, 7
    %v4422 = vsub.s32 %v2849, %v4421
    %v4423 = vrot.slane %v1835, %v4422
    %v4424 = vsel %vm2854, %v4423, %v4419
    %v4425 = vlaneseq
    %v4426 = vshrl.u32 %v4425, 7
    %v4427 = vsub.s32 %v2746, %v4426
    %v4428 = vrot.slane %v1836, %v4427
    %v4429 = vlaneseq
    %v4430 = vshrl.u32 %v4429, 7
    %v4431 = vsub.s32 %v2751, %v4430
    %v4432 = vrot.slane %v1837, %v4431
    %v4433 = vsel %vm2756, %v4432, %v4428
    %v4434 = vlaneseq
    %v4435 = vshrl.u32 %v4434, 7
    %v4436 = vsub.s32 %v2758, %v4435
    %v4437 = vrot.slane %v1838, %v4436
    %v4438 = vsel %vm2763, %v4437, %v4433
    %v4439 = vlaneseq
    %v4440 = vshrl.u32 %v4439, 7
    %v4441 = vsub.s32 %v2765, %v4440
    %v4442 = vrot.slane %v1839, %v4441
    %v4443 = vsel %vm2770, %v4442, %v4438
    %v4444 = vlaneseq
    %v4445 = vshrl.u32 %v4444, 7
    %v4446 = vsub.s32 %v2772, %v4445
    %v4447 = vrot.slane %v1840, %v4446
    %v4448 = vsel %vm2777, %v4447, %v4443
    %v4449 = vlaneseq
    %v4450 = vshrl.u32 %v4449, 7
    %v4451 = vsub.s32 %v2779, %v4450
    %v4452 = vrot.slane %v1841, %v4451
    %v4453 = vsel %vm2784, %v4452, %v4448
    %v4454 = vlaneseq
    %v4455 = vshrl.u32 %v4454, 7
    %v4456 = vsub.s32 %v2786, %v4455
    %v4457 = vrot.slane %v1842, %v4456
    %v4458 = vsel %vm2791, %v4457, %v4453
    %v4459 = vlaneseq
    %v4460 = vshrl.u32 %v4459, 7
    %v4461 = vsub.s32 %v2793, %v4460
    %v4462 = vrot.slane %v1843, %v4461
    %v4463 = vsel %vm2798, %v4462, %v4458
    %v4464 = vlaneseq
    %v4465 = vshrl.u32 %v4464, 7
    %v4466 = vsub.s32 %v2800, %v4465
    %v4467 = vrot.slane %v1844, %v4466
    %v4468 = vsel %vm2805, %v4467, %v4463
    %v4577 = vlaneseq
    %v4578 = vshrl.u32 %v4577, 7
    %v4579 = vsub.s32 %v2746, %v4578
    %v4580 = vrot.slane %v2545, %v4579
    %v4581 = vlaneseq
    %v4582 = vshrl.u32 %v4581, 7
    %v4583 = vsub.s32 %v2751, %v4582
    %v4584 = vrot.slane %v2546, %v4583
    %v4585 = vsel %vm2756, %v4584, %v4580
    %v4586 = vlaneseq
    %v4587 = vshrl.u32 %v4586, 7
    %v4588 = vsub.s32 %v2758, %v4587
    %v4589 = vrot.slane %v2547, %v4588
    %v4590 = vsel %vm2763, %v4589, %v4585
    %v4591 = vlaneseq
    %v4592 = vshrl.u32 %v4591, 7
    %v4593 = vsub.s32 %v2765, %v4592
    %v4594 = vrot.slane %v2548, %v4593
    %v4595 = vsel %vm2770, %v4594, %v4590
    %v4596 = vlaneseq
    %v4597 = vshrl.u32 %v4596, 7
    %v4598 = vsub.s32 %v2772, %v4597
    %v4599 = vrot.slane %v2549, %v4598
    %v4600 = vsel %vm2777, %v4599, %v4595
    %v4601 = vlaneseq
    %v4602 = vshrl.u32 %v4601, 7
    %v4603 = vsub.s32 %v2779, %v4602
    %v4604 = vrot.slane %v2550, %v4603
    %v4605 = vsel %vm2784, %v4604, %v4600
    %v4606 = vlaneseq
    %v4607 = vshrl.u32 %v4606, 7
    %v4608 = vsub.s32 %v2786, %v4607
    %v4609 = vrot.slane %v2551, %v4608
    %v4610 = vsel %vm2791, %v4609, %v4605
    %v4611 = vlaneseq
    %v4612 = vshrl.u32 %v4611, 7
    %v4613 = vsub.s32 %v2793, %v4612
    %v4614 = vrot.slane %v2552, %v4613
    %v4615 = vsel %vm2798, %v4614, %v4610
    %v4616 = vlaneseq
    %v4617 = vshrl.u32 %v4616, 7
    %v4618 = vsub.s32 %v2800, %v4617
    %v4619 = vrot.slane %v2553, %v4618
    %v4620 = vsel %vm2805, %v4619, %v4615
    %v4621 = vlaneseq
    %v4622 = vshrl.u32 %v4621, 7
    %v4623 = vsub.s32 %v2807, %v4622
    %v4624 = vrot.slane %v2554, %v4623
    %v4625 = vsel %vm2812, %v4624, %v4620
    %v4626 = vlaneseq
    %v4627 = vshrl.u32 %v4626, 7
    %v4628 = vsub.s32 %v2814, %v4627
    %v4629 = vrot.slane %v2555, %v4628
    %v4630 = vsel %vm2819, %v4629, %v4625
    %v4631 = vlaneseq
    %v4632 = vshrl.u32 %v4631, 7
    %v4633 = vsub.s32 %v2821, %v4632
    %v4634 = vrot.slane %v2556, %v4633
    %v4635 = vsel %vm2826, %v4634, %v4630
    %v4636 = vlaneseq
    %v4637 = vshrl.u32 %v4636, 7
    %v4638 = vsub.s32 %v2828, %v4637
    %v4639 = vrot.slane %v2557, %v4638
    %v4640 = vsel %vm2833, %v4639, %v4635
    %v4641 = vlaneseq
    %v4642 = vshrl.u32 %v4641, 7
    %v4643 = vsub.s32 %v2835, %v4642
    %v4644 = vrot.slane %v2558, %v4643
    %v4645 = vsel %vm2840, %v4644, %v4640
    %v4646 = vlaneseq
    %v4647 = vshrl.u32 %v4646, 7
    %v4648 = vsub.s32 %v2842, %v4647
    %v4649 = vrot.slane %v2559, %v4648
    %v4650 = vsel %vm2847, %v4649, %v4645
    %v4651 = vlaneseq
    %v4652 = vshrl.u32 %v4651, 7
    %v4653 = vsub.s32 %v2849, %v4652
    %v4654 = vrot.slane %v2560, %v4653
    %v4655 = vsel %vm2854, %v4654, %v4650
    %v4656 = vlaneseq
    %v4657 = vshrl.u32 %v4656, 7
    %v4658 = vsub.s32 %v2746, %v4657
    %v4659 = vrot.slane %v2561, %v4658
    %v4660 = vlaneseq
    %v4661 = vshrl.u32 %v4660, 7
    %v4662 = vsub.s32 %v2751, %v4661
    %v4663 = vrot.slane %v2562, %v4662
    %v4664 = vsel %vm2756, %v4663, %v4659
    %v4665 = vlaneseq
    %v4666 = vshrl.u32 %v4665, 7
    %v4667 = vsub.s32 %v2758, %v4666
    %v4668 = vrot.slane %v2563, %v4667
    %v4669 = vsel %vm2763, %v4668, %v4664
    %v4670 = vlaneseq
    %v4671 = vshrl.u32 %v4670, 7
    %v4672 = vsub.s32 %v2765, %v4671
    %v4673 = vrot.slane %v2564, %v4672
    %v4674 = vsel %vm2770, %v4673, %v4669
    %v4675 = vlaneseq
    %v4676 = vshrl.u32 %v4675, 7
    %v4677 = vsub.s32 %v2772, %v4676
    %v4678 = vrot.slane %v2565, %v4677
    %v4679 = vsel %vm2777, %v4678, %v4674
    %v4680 = vlaneseq
    %v4681 = vshrl.u32 %v4680, 7
    %v4682 = vsub.s32 %v2779, %v4681
    %v4683 = vrot.slane %v2566, %v4682
    %v4684 = vsel %vm2784, %v4683, %v4679
    %v4685 = vlaneseq
    %v4686 = vshrl.u32 %v4685, 7
    %v4687 = vsub.s32 %v2786, %v4686
    %v4688 = vrot.slane %v2567, %v4687
    %v4689 = vsel %vm2791, %v4688, %v4684
    %v4690 = vlaneseq
    %v4691 = vshrl.u32 %v4690, 7
    %v4692 = vsub.s32 %v2793, %v4691
    %v4693 = vrot.slane %v2568, %v4692
    %v4694 = vsel %vm2798, %v4693, %v4689
    %v4695 = vlaneseq
    %v4696 = vshrl.u32 %v4695, 7
    %v4697 = vsub.s32 %v2800, %v4696
    %v4698 = vrot.slane %v2569, %v4697
    %v4699 = vsel %vm2805, %v4698, %v4694
    %v4700 = vlaneseq
    %v4701 = vshrl.u32 %v4700, 7
    %v4702 = vsub.s32 %v2746, %v4701
    %v4703 = vrot.slane %v2570, %v4702
    %v4704 = vlaneseq
    %v4705 = vshrl.u32 %v4704, 7
    %v4706 = vsub.s32 %v2751, %v4705
    %v4707 = vrot.slane %v2571, %v4706
    %v4708 = vsel %vm2756, %v4707, %v4703
    %v4709 = vlaneseq
    %v4710 = vshrl.u32 %v4709, 7
    %v4711 = vsub.s32 %v2758, %v4710
    %v4712 = vrot.slane %v2572, %v4711
    %v4713 = vsel %vm2763, %v4712, %v4708
    %v4714 = vlaneseq
    %v4715 = vshrl.u32 %v4714, 7
    %v4716 = vsub.s32 %v2765, %v4715
    %v4717 = vrot.slane %v2573, %v4716
    %v4718 = vsel %vm2770, %v4717, %v4713
    %v4719 = vlaneseq
    %v4720 = vshrl.u32 %v4719, 7
    %v4721 = vsub.s32 %v2772, %v4720
    %v4722 = vrot.slane %v2574, %v4721
    %v4723 = vsel %vm2777, %v4722, %v4718
    %v4724 = vlaneseq
    %v4725 = vshrl.u32 %v4724, 7
    %v4726 = vsub.s32 %v2779, %v4725
    %v4727 = vrot.slane %v2575, %v4726
    %v4728 = vsel %vm2784, %v4727, %v4723
    %v4729 = vlaneseq
    %v4730 = vshrl.u32 %v4729, 7
    %v4731 = vsub.s32 %v2786, %v4730
    %v4732 = vrot.slane %v2576, %v4731
    %v4733 = vsel %vm2791, %v4732, %v4728
    %v4734 = vlaneseq
    %v4735 = vshrl.u32 %v4734, 7
    %v4736 = vsub.s32 %v2793, %v4735
    %v4737 = vrot.slane %v2577, %v4736
    %v4738 = vsel %vm2798, %v4737, %v4733
    %v4739 = vlaneseq
    %v4740 = vshrl.u32 %v4739, 7
    %v4741 = vsub.s32 %v2800, %v4740
    %v4742 = vrot.slane %v2578, %v4741
    %v4743 = vsel %vm2805, %v4742, %v4738
    %v4744 = vlaneseq
    %v4745 = vshrl.u32 %v4744, 7
    %v4746 = vsub.s32 %v2807, %v4745
    %v4747 = vrot.slane %v2579, %v4746
    %v4748 = vsel %vm2812, %v4747, %v4743
    %v4749 = vlaneseq
    %v4750 = vshrl.u32 %v4749, 7
    %v4751 = vsub.s32 %v2814, %v4750
    %v4752 = vrot.slane %v2580, %v4751
    %v4753 = vsel %vm2819, %v4752, %v4748
    %v4754 = vlaneseq
    %v4755 = vshrl.u32 %v4754, 7
    %v4756 = vsub.s32 %v2821, %v4755
    %v4757 = vrot.slane %v2581, %v4756
    %v4758 = vsel %vm2826, %v4757, %v4753
    %v4759 = vlaneseq
    %v4760 = vshrl.u32 %v4759, 7
    %v4761 = vsub.s32 %v2828, %v4760
    %v4762 = vrot.slane %v2582, %v4761
    %v4763 = vsel %vm2833, %v4762, %v4758
    %v4764 = vlaneseq
    %v4765 = vshrl.u32 %v4764, 7
    %v4766 = vsub.s32 %v2835, %v4765
    %v4767 = vrot.slane %v2583, %v4766
    %v4768 = vsel %vm2840, %v4767, %v4763
    %v4769 = vlaneseq
    %v4770 = vshrl.u32 %v4769, 7
    %v4771 = vsub.s32 %v2842, %v4770
    %v4772 = vrot.slane %v2584, %v4771
    %v4773 = vsel %vm2847, %v4772, %v4768
    %v4774 = vlaneseq
    %v4775 = vshrl.u32 %v4774, 7
    %v4776 = vsub.s32 %v2849, %v4775
    %v4777 = vrot.slane %v2585, %v4776
    %v4778 = vsel %vm2854, %v4777, %v4773
    %v4779 = vlaneseq
    %v4780 = vshrl.u32 %v4779, 7
    %v4781 = vsub.s32 %v2746, %v4780
    %v4782 = vrot.slane %v2586, %v4781
    %v4783 = vlaneseq
    %v4784 = vshrl.u32 %v4783, 7
    %v4785 = vsub.s32 %v2751, %v4784
    %v4786 = vrot.slane %v2587, %v4785
    %v4787 = vsel %vm2756, %v4786, %v4782
    %v4788 = vlaneseq
    %v4789 = vshrl.u32 %v4788, 7
    %v4790 = vsub.s32 %v2758, %v4789
    %v4791 = vrot.slane %v2588, %v4790
    %v4792 = vsel %vm2763, %v4791, %v4787
    %v4793 = vlaneseq
    %v4794 = vshrl.u32 %v4793, 7
    %v4795 = vsub.s32 %v2765, %v4794
    %v4796 = vrot.slane %v2589, %v4795
    %v4797 = vsel %vm2770, %v4796, %v4792
    %v4798 = vlaneseq
    %v4799 = vshrl.u32 %v4798, 7
    %v4800 = vsub.s32 %v2772, %v4799
    %v4801 = vrot.slane %v2590, %v4800
    %v4802 = vsel %vm2777, %v4801, %v4797
    %v4803 = vlaneseq
    %v4804 = vshrl.u32 %v4803, 7
    %v4805 = vsub.s32 %v2779, %v4804
    %v4806 = vrot.slane %v2591, %v4805
    %v4807 = vsel %vm2784, %v4806, %v4802
    %v4808 = vlaneseq
    %v4809 = vshrl.u32 %v4808, 7
    %v4810 = vsub.s32 %v2786, %v4809
    %v4811 = vrot.slane %v2592, %v4810
    %v4812 = vsel %vm2791, %v4811, %v4807
    %v4813 = vlaneseq
    %v4814 = vshrl.u32 %v4813, 7
    %v4815 = vsub.s32 %v2793, %v4814
    %v4816 = vrot.slane %v2593, %v4815
    %v4817 = vsel %vm2798, %v4816, %v4812
    %v4818 = vlaneseq
    %v4819 = vshrl.u32 %v4818, 7
    %v4820 = vsub.s32 %v2800, %v4819
    %v4821 = vrot.slane %v2594, %v4820
    %v4822 = vsel %vm2805, %v4821, %v4817
    %v4823 = vlaneseq
    %v4824 = vshrl.u32 %v4823, 7
    %v4825 = vsub.s32 %v2746, %v4824
    %v4826 = vrot.slane %v2595, %v4825
    %v4827 = vlaneseq
    %v4828 = vshrl.u32 %v4827, 7
    %v4829 = vsub.s32 %v2751, %v4828
    %v4830 = vrot.slane %v2596, %v4829
    %v4831 = vsel %vm2756, %v4830, %v4826
    %v4832 = vlaneseq
    %v4833 = vshrl.u32 %v4832, 7
    %v4834 = vsub.s32 %v2758, %v4833
    %v4835 = vrot.slane %v2597, %v4834
    %v4836 = vsel %vm2763, %v4835, %v4831
    %v4837 = vlaneseq
    %v4838 = vshrl.u32 %v4837, 7
    %v4839 = vsub.s32 %v2765, %v4838
    %v4840 = vrot.slane %v2598, %v4839
    %v4841 = vsel %vm2770, %v4840, %v4836
    %v4842 = vlaneseq
    %v4843 = vshrl.u32 %v4842, 7
    %v4844 = vsub.s32 %v2772, %v4843
    %v4845 = vrot.slane %v2599, %v4844
    %v4846 = vsel %vm2777, %v4845, %v4841
    %v4847 = vlaneseq
    %v4848 = vshrl.u32 %v4847, 7
    %v4849 = vsub.s32 %v2779, %v4848
    %v4850 = vrot.slane %v2600, %v4849
    %v4851 = vsel %vm2784, %v4850, %v4846
    %v4852 = vlaneseq
    %v4853 = vshrl.u32 %v4852, 7
    %v4854 = vsub.s32 %v2786, %v4853
    %v4855 = vrot.slane %v2601, %v4854
    %v4856 = vsel %vm2791, %v4855, %v4851
    %v4857 = vlaneseq
    %v4858 = vshrl.u32 %v4857, 7
    %v4859 = vsub.s32 %v2793, %v4858
    %v4860 = vrot.slane %v2602, %v4859
    %v4861 = vsel %vm2798, %v4860, %v4856
    %v4862 = vlaneseq
    %v4863 = vshrl.u32 %v4862, 7
    %v4864 = vsub.s32 %v2800, %v4863
    %v4865 = vrot.slane %v2603, %v4864
    %v4866 = vsel %vm2805, %v4865, %v4861
    %v4867 = vlaneseq
    %v4868 = vshrl.u32 %v4867, 7
    %v4869 = vsub.s32 %v2807, %v4868
    %v4870 = vrot.slane %v2604, %v4869
    %v4871 = vsel %vm2812, %v4870, %v4866
    %v4872 = vlaneseq
    %v4873 = vshrl.u32 %v4872, 7
    %v4874 = vsub.s32 %v2814, %v4873
    %v4875 = vrot.slane %v2605, %v4874
    %v4876 = vsel %vm2819, %v4875, %v4871
    %v4877 = vlaneseq
    %v4878 = vshrl.u32 %v4877, 7
    %v4879 = vsub.s32 %v2821, %v4878
    %v4880 = vrot.slane %v2606, %v4879
    %v4881 = vsel %vm2826, %v4880, %v4876
    %v4882 = vlaneseq
    %v4883 = vshrl.u32 %v4882, 7
    %v4884 = vsub.s32 %v2828, %v4883
    %v4885 = vrot.slane %v2607, %v4884
    %v4886 = vsel %vm2833, %v4885, %v4881
    %v4887 = vlaneseq
    %v4888 = vshrl.u32 %v4887, 7
    %v4889 = vsub.s32 %v2835, %v4888
    %v4890 = vrot.slane %v2608, %v4889
    %v4891 = vsel %vm2840, %v4890, %v4886
    %v4892 = vlaneseq
    %v4893 = vshrl.u32 %v4892, 7
    %v4894 = vsub.s32 %v2842, %v4893
    %v4895 = vrot.slane %v2609, %v4894
    %v4896 = vsel %vm2847, %v4895, %v4891
    %v4897 = vlaneseq
    %v4898 = vshrl.u32 %v4897, 7
    %v4899 = vsub.s32 %v2849, %v4898
    %v4900 = vrot.slane %v2610, %v4899
    %v4901 = vsel %vm2854, %v4900, %v4896
    %v4902 = vlaneseq
    %v4903 = vshrl.u32 %v4902, 7
    %v4904 = vsub.s32 %v2746, %v4903
    %v4905 = vrot.slane %v2611, %v4904
    %v4906 = vlaneseq
    %v4907 = vshrl.u32 %v4906, 7
    %v4908 = vsub.s32 %v2751, %v4907
    %v4909 = vrot.slane %v2612, %v4908
    %v4910 = vsel %vm2756, %v4909, %v4905
    %v4911 = vlaneseq
    %v4912 = vshrl.u32 %v4911, 7
    %v4913 = vsub.s32 %v2758, %v4912
    %v4914 = vrot.slane %v2613, %v4913
    %v4915 = vsel %vm2763, %v4914, %v4910
    %v4916 = vlaneseq
    %v4917 = vshrl.u32 %v4916, 7
    %v4918 = vsub.s32 %v2765, %v4917
    %v4919 = vrot.slane %v2614, %v4918
    %v4920 = vsel %vm2770, %v4919, %v4915
    %v4921 = vlaneseq
    %v4922 = vshrl.u32 %v4921, 7
    %v4923 = vsub.s32 %v2772, %v4922
    %v4924 = vrot.slane %v2615, %v4923
    %v4925 = vsel %vm2777, %v4924, %v4920
    %v4926 = vlaneseq
    %v4927 = vshrl.u32 %v4926, 7
    %v4928 = vsub.s32 %v2779, %v4927
    %v4929 = vrot.slane %v2616, %v4928
    %v4930 = vsel %vm2784, %v4929, %v4925
    %v4931 = vlaneseq
    %v4932 = vshrl.u32 %v4931, 7
    %v4933 = vsub.s32 %v2786, %v4932
    %v4934 = vrot.slane %v2617, %v4933
    %v4935 = vsel %vm2791, %v4934, %v4930
    %v4936 = vlaneseq
    %v4937 = vshrl.u32 %v4936, 7
    %v4938 = vsub.s32 %v2793, %v4937
    %v4939 = vrot.slane %v2618, %v4938
    %v4940 = vsel %vm2798, %v4939, %v4935
    %v4941 = vlaneseq
    %v4942 = vshrl.u32 %v4941, 7
    %v4943 = vsub.s32 %v2800, %v4942
    %v4944 = vrot.slane %v2619, %v4943
    %v4945 = vsel %vm2805, %v4944, %v4940
    %v4946 = vlaneseq
    %v4947 = vshrl.u32 %v4946, 7
    %v4948 = vsub.s32 %v2746, %v4947
    %v4949 = vrot.slane %v2620, %v4948
    %v4950 = vlaneseq
    %v4951 = vshrl.u32 %v4950, 7
    %v4952 = vsub.s32 %v2751, %v4951
    %v4953 = vrot.slane %v2621, %v4952
    %v4954 = vsel %vm2756, %v4953, %v4949
    %v4955 = vlaneseq
    %v4956 = vshrl.u32 %v4955, 7
    %v4957 = vsub.s32 %v2758, %v4956
    %v4958 = vrot.slane %v2622, %v4957
    %v4959 = vsel %vm2763, %v4958, %v4954
    %v4960 = vlaneseq
    %v4961 = vshrl.u32 %v4960, 7
    %v4962 = vsub.s32 %v2765, %v4961
    %v4963 = vrot.slane %v2623, %v4962
    %v4964 = vsel %vm2770, %v4963, %v4959
    %v4965 = vlaneseq
    %v4966 = vshrl.u32 %v4965, 7
    %v4967 = vsub.s32 %v2772, %v4966
    %v4968 = vrot.slane %v2624, %v4967
    %v4969 = vsel %vm2777, %v4968, %v4964
    %v4970 = vlaneseq
    %v4971 = vshrl.u32 %v4970, 7
    %v4972 = vsub.s32 %v2779, %v4971
    %v4973 = vrot.slane %v2625, %v4972
    %v4974 = vsel %vm2784, %v4973, %v4969
    %v4975 = vlaneseq
    %v4976 = vshrl.u32 %v4975, 7
    %v4977 = vsub.s32 %v2786, %v4976
    %v4978 = vrot.slane %v2626, %v4977
    %v4979 = vsel %vm2791, %v4978, %v4974
    %v4980 = vlaneseq
    %v4981 = vshrl.u32 %v4980, 7
    %v4982 = vsub.s32 %v2793, %v4981
    %v4983 = vrot.slane %v2627, %v4982
    %v4984 = vsel %vm2798, %v4983, %v4979
    %v4985 = vlaneseq
    %v4986 = vshrl.u32 %v4985, 7
    %v4987 = vsub.s32 %v2800, %v4986
    %v4988 = vrot.slane %v2628, %v4987
    %v4989 = vsel %vm2805, %v4988, %v4984
    %v4990 = vlaneseq
    %v4991 = vshrl.u32 %v4990, 7
    %v4992 = vsub.s32 %v2807, %v4991
    %v4993 = vrot.slane %v2629, %v4992
    %v4994 = vsel %vm2812, %v4993, %v4989
    %v4995 = vlaneseq
    %v4996 = vshrl.u32 %v4995, 7
    %v4997 = vsub.s32 %v2814, %v4996
    %v4998 = vrot.slane %v2630, %v4997
    %v4999 = vsel %vm2819, %v4998, %v4994
    %v5000 = vlaneseq
    %v5001 = vshrl.u32 %v5000, 7
    %v5002 = vsub.s32 %v2821, %v5001
    %v5003 = vrot.slane %v2631, %v5002
    %v5004 = vsel %vm2826, %v5003, %v4999
    %v5005 = vlaneseq
    %v5006 = vshrl.u32 %v5005, 7
    %v5007 = vsub.s32 %v2828, %v5006
    %v5008 = vrot.slane %v2632, %v5007
    %v5009 = vsel %vm2833, %v5008, %v5004
    %v5010 = vlaneseq
    %v5011 = vshrl.u32 %v5010, 7
    %v5012 = vsub.s32 %v2835, %v5011
    %v5013 = vrot.slane %v2633, %v5012
    %v5014 = vsel %vm2840, %v5013, %v5009
    %v5015 = vlaneseq
    %v5016 = vshrl.u32 %v5015, 7
    %v5017 = vsub.s32 %v2842, %v5016
    %v5018 = vrot.slane %v2634, %v5017
    %v5019 = vsel %vm2847, %v5018, %v5014
    %v5020 = vlaneseq
    %v5021 = vshrl.u32 %v5020, 7
    %v5022 = vsub.s32 %v2849, %v5021
    %v5023 = vrot.slane %v2635, %v5022
    %v5024 = vsel %vm2854, %v5023, %v5019
    %v5025 = vlaneseq
    %v5026 = vshrl.u32 %v5025, 7
    %v5027 = vsub.s32 %v2746, %v5026
    %v5028 = vrot.slane %v2636, %v5027
    %v5029 = vlaneseq
    %v5030 = vshrl.u32 %v5029, 7
    %v5031 = vsub.s32 %v2751, %v5030
    %v5032 = vrot.slane %v2637, %v5031
    %v5033 = vsel %vm2756, %v5032, %v5028
    %v5034 = vlaneseq
    %v5035 = vshrl.u32 %v5034, 7
    %v5036 = vsub.s32 %v2758, %v5035
    %v5037 = vrot.slane %v2638, %v5036
    %v5038 = vsel %vm2763, %v5037, %v5033
    %v5039 = vlaneseq
    %v5040 = vshrl.u32 %v5039, 7
    %v5041 = vsub.s32 %v2765, %v5040
    %v5042 = vrot.slane %v2639, %v5041
    %v5043 = vsel %vm2770, %v5042, %v5038
    %v5044 = vlaneseq
    %v5045 = vshrl.u32 %v5044, 7
    %v5046 = vsub.s32 %v2772, %v5045
    %v5047 = vrot.slane %v2640, %v5046
    %v5048 = vsel %vm2777, %v5047, %v5043
    %v5049 = vlaneseq
    %v5050 = vshrl.u32 %v5049, 7
    %v5051 = vsub.s32 %v2779, %v5050
    %v5052 = vrot.slane %v2641, %v5051
    %v5053 = vsel %vm2784, %v5052, %v5048
    %v5054 = vlaneseq
    %v5055 = vshrl.u32 %v5054, 7
    %v5056 = vsub.s32 %v2786, %v5055
    %v5057 = vrot.slane %v2642, %v5056
    %v5058 = vsel %vm2791, %v5057, %v5053
    %v5059 = vlaneseq
    %v5060 = vshrl.u32 %v5059, 7
    %v5061 = vsub.s32 %v2793, %v5060
    %v5062 = vrot.slane %v2643, %v5061
    %v5063 = vsel %vm2798, %v5062, %v5058
    %v5064 = vlaneseq
    %v5065 = vshrl.u32 %v5064, 7
    %v5066 = vsub.s32 %v2800, %v5065
    %v5067 = vrot.slane %v2644, %v5066
    %v5068 = vsel %vm2805, %v5067, %v5063
    %vm5077 = vcmask 1040384
    %v5078 = vsel %vm5077, %v2855, %v3455
    %v5079 = vsel %vm5077, %v2899, %v3499
    %v5080 = vsel %vm5077, %v2978, %v3578
    %v5081 = vsel %vm5077, %v3022, %v3622
    %v5082 = vsel %vm5077, %v3101, %v3701
    %v5083 = vsel %vm5077, %v3145, %v3745
    %v5084 = vsel %vm5077, %v3224, %v3824
    %v5085 = vsel %vm5077, %v3268, %v3868
    %vm5086 = vcmask 1041408
    %v5087 = vsel %vm5086, %v5078, %v4055
    %v5088 = vsel %vm5086, %v5079, %v4099
    %v5089 = vsel %vm5086, %v5080, %v4178
    %v5090 = vsel %vm5086, %v5081, %v4222
    %v5091 = vsel %vm5086, %v5082, %v4301
    %v5092 = vsel %vm5086, %v5083, %v4345
    %v5093 = vsel %vm5086, %v5084, %v4424
    %v5094 = vsel %vm5086, %v5085, %v4468
    %vm5095 = vcmask 1042432
    %v5096 = vsel %vm5095, %v5087, %v4655
    %v5097 = vsel %vm5095, %v5088, %v4699
    %v5098 = vsel %vm5095, %v5089, %v4778
    %v5099 = vsel %vm5095, %v5090, %v4822
    %v5100 = vsel %vm5095, %v5091, %v4901
    %v5101 = vsel %vm5095, %v5092, %v4945
    %v5102 = vsel %vm5095, %v5093, %v5024
    %v5103 = vsel %vm5095, %v5094, %v5068
    %v5112 = vcombine.low %v5096, %v5097
    %v5113 = vcombine.low %v5098, %v5099
    %v5114 = vcombine.low %v5100, %v5101
    %v5115 = vcombine.low %v5102, %v5103
    %v5116 = vld [vmem:[#allocation5] sm:$0xff]
    %v5117 = vld [vmem:[#allocation5 + $0x8] sm:$0xff]
    %v5118 = vld [vmem:[#allocation5 + $0x10] sm:$0xff]
    %v5119 = vld [vmem:[#allocation5 + $0x18] sm:$0xff]
    %v5120 = vld [vmem:[#allocation5 + $0x20] sm:$0xff]
    %v5121 = vld [vmem:[#allocation5 + $0x28] sm:$0xff]
    %v5122 = vld [vmem:[#allocation5 + $0x30] sm:$0xff]
    %v5123 = vld [vmem:[#allocation5 + $0x38] sm:$0xff]
    %v5124 = vld [vmem:[#allocation5 + $0x40] sm:$0xff]
    %v5125 = vld [vmem:[#allocation5 + $0x48] sm:$0xff]
    %v5126 = vld [vmem:[#allocation5 + $0x50] sm:$0xff]
    %v5127 = vld [vmem:[#allocation5 + $0x58] sm:$0xff]
    %v5128 = vld [vmem:[#allocation5 + $0x60] sm:$0xff]
    %v5129 = vld [vmem:[#allocation5 + $0x68] sm:$0xff]
    %v5130 = vld [vmem:[#allocation5 + $0x70] sm:$0xff]
    %v5131 = vld [vmem:[#allocation5 + $0x78] sm:$0xff]
    %v5132 = vld [vmem:[#allocation5 + $0x80] sm:$0xff]
    %v5133 = vld [vmem:[#allocation5 + $0x88] sm:$0xff]
    %v5134 = vld [vmem:[#allocation5 + $0x90] sm:$0xff]
    %v5135 = vld [vmem:[#allocation5 + $0x98] sm:$0xff]
    %v5136 = vld [vmem:[#allocation5 + $0xa0] sm:$0xff]
    %v5137 = vld [vmem:[#allocation5 + $0xa8] sm:$0xff]
    %v5138 = vld [vmem:[#allocation5 + $0xb0] sm:$0xff]
    %v5139 = vld [vmem:[#allocation5 + $0xb8] sm:$0xff]
    %v5140 = vld [vmem:[#allocation5 + $0xc0] sm:$0xff]
    %v5141 = vld [vmem:[#allocation5 + $0xc8] sm:$0xff]
    %v5142 = vld [vmem:[#allocation5 + $0xd0] sm:$0xff]
    %v5143 = vld [vmem:[#allocation5 + $0xd8] sm:$0xff]
    %v5144 = vld [vmem:[#allocation5 + $0xe0] sm:$0xff]
    %v5145 = vld [vmem:[#allocation5 + $0xe8] sm:$0xff]
    %v5146 = vld [vmem:[#allocation5 + $0xf0] sm:$0xff]
    %v5147 = vld [vmem:[#allocation5 + $0xf8] sm:$0xff]
    %v5148 = vld [vmem:[#allocation5 + $0x100] sm:$0xff]
    %v5149 = vld [vmem:[#allocation5 + $0x108] sm:$0xff]
    %v5150 = vld [vmem:[#allocation5 + $0x110] sm:$0xff]
    %v5151 = vld [vmem:[#allocation5 + $0x118] sm:$0xff]
    %v5152 = vld [vmem:[#allocation5 + $0x120] sm:$0xff]
    %v5153 = vld [vmem:[#allocation5 + $0x128] sm:$0xff]
    %v5154 = vld [vmem:[#allocation5 + $0x130] sm:$0xff]
    %v5155 = vld [vmem:[#allocation5 + $0x138] sm:$0xff]
    %v5156 = vld [vmem:[#allocation5 + $0x140] sm:$0xff]
    %v5157 = vld [vmem:[#allocation5 + $0x148] sm:$0xff]
    %v5158 = vld [vmem:[#allocation5 + $0x150] sm:$0xff]
    %v5159 = vld [vmem:[#allocation5 + $0x158] sm:$0xff]
    %v5160 = vld [vmem:[#allocation5 + $0x160] sm:$0xff]
    %v5161 = vld [vmem:[#allocation5 + $0x168] sm:$0xff]
    %v5162 = vld [vmem:[#allocation5 + $0x170] sm:$0xff]
    %v5163 = vld [vmem:[#allocation5 + $0x178] sm:$0xff]
    %v5164 = vld [vmem:[#allocation5 + $0x180] sm:$0xff]
    %v5165 = vld [vmem:[#allocation5 + $0x188] sm:$0xff]
    %v5166 = vld [vmem:[#allocation5 + $0x190] sm:$0xff]
    %v5167 = vld [vmem:[#allocation5 + $0x198] sm:$0xff]
    %v5168 = vld [vmem:[#allocation5 + $0x1a0] sm:$0xff]
    %v5169 = vld [vmem:[#allocation5 + $0x1a8] sm:$0xff]
    %v5170 = vld [vmem:[#allocation5 + $0x1b0] sm:$0xff]
    %v5171 = vld [vmem:[#allocation5 + $0x1b8] sm:$0xff]
    %v5172 = vld [vmem:[#allocation5 + $0x1c0] sm:$0xff]
    %v5173 = vld [vmem:[#allocation5 + $0x1c8] sm:$0xff]
    %v5174 = vld [vmem:[#allocation5 + $0x1d0] sm:$0xff]
    %v5175 = vld [vmem:[#allocation5 + $0x1d8] sm:$0xff]
    %v5176 = vld [vmem:[#allocation5 + $0x1e0] sm:$0xff]
    %v5177 = vld [vmem:[#allocation5 + $0x1e8] sm:$0xff]
    %v5178 = vld [vmem:[#allocation5 + $0x1f0] sm:$0xff]
    %v5179 = vld [vmem:[#allocation5 + $0x1f8] sm:$0xff]
    %v5180 = vld [vmem:[#allocation5 + $0x200] sm:$0xff]
    %v5181 = vld [vmem:[#allocation5 + $0x208] sm:$0xff]
    %v5182 = vld [vmem:[#allocation5 + $0x210] sm:$0xff]
    %v5183 = vld [vmem:[#allocation5 + $0x218] sm:$0xff]
    %v5184 = vld [vmem:[#allocation5 + $0x220] sm:$0xff]
    %v5185 = vld [vmem:[#allocation5 + $0x228] sm:$0xff]
    %v5186 = vld [vmem:[#allocation5 + $0x230] sm:$0xff]
    %v5187 = vld [vmem:[#allocation5 + $0x238] sm:$0xff]
    %v5188 = vld [vmem:[#allocation5 + $0x240] sm:$0xff]
    %v5189 = vld [vmem:[#allocation5 + $0x248] sm:$0xff]
    %v5190 = vld [vmem:[#allocation5 + $0x250] sm:$0xff]
    %v5191 = vld [vmem:[#allocation5 + $0x258] sm:$0xff]
    %v5192 = vld [vmem:[#allocation5 + $0x260] sm:$0xff]
    %v5193 = vld [vmem:[#allocation5 + $0x268] sm:$0xff]
    %v5194 = vld [vmem:[#allocation5 + $0x270] sm:$0xff]
    %v5195 = vld [vmem:[#allocation5 + $0x278] sm:$0xff]
    %v5196 = vld [vmem:[#allocation5 + $0x280] sm:$0xff]
    %v5197 = vld [vmem:[#allocation5 + $0x288] sm:$0xff]
    %v5198 = vld [vmem:[#allocation5 + $0x290] sm:$0xff]
    %v5199 = vld [vmem:[#allocation5 + $0x298] sm:$0xff]
    %v5200 = vld [vmem:[#allocation5 + $0x2a0] sm:$0xff]
    %v5201 = vld [vmem:[#allocation5 + $0x2a8] sm:$0xff]
    %v5202 = vld [vmem:[#allocation5 + $0x2b0] sm:$0xff]
    %v5203 = vld [vmem:[#allocation5 + $0x2b8] sm:$0xff]
    %v5204 = vld [vmem:[#allocation5 + $0x2c0] sm:$0xff]
    %v5205 = vld [vmem:[#allocation5 + $0x2c8] sm:$0xff]
    %v5206 = vld [vmem:[#allocation5 + $0x2d0] sm:$0xff]
    %v5207 = vld [vmem:[#allocation5 + $0x2d8] sm:$0xff]
    %v5208 = vld [vmem:[#allocation5 + $0x2e0] sm:$0xff]
    %v5209 = vld [vmem:[#allocation5 + $0x2e8] sm:$0xff]
    %v5210 = vld [vmem:[#allocation5 + $0x2f0] sm:$0xff]
    %v5211 = vld [vmem:[#allocation5 + $0x2f8] sm:$0xff]
    %v5212 = vld [vmem:[#allocation5 + $0x300] sm:$0xff]
    %v5213 = vld [vmem:[#allocation5 + $0x308] sm:$0xff]
    %v5214 = vld [vmem:[#allocation5 + $0x310] sm:$0xff]
    %v5215 = vld [vmem:[#allocation5 + $0x318] sm:$0xff]
    %v5216 = vld [vmem:[%s2] sm:$0xf]
    %v5218 = vlaneseq
    %v5219 = vshrl.u32 %v5218, 7
    %v5220 = vsub.s32 0, %v5219
    %v5221 = vrot.slane %v5216, %v5220
    %v5222 = vlaneseq
    %v5223 = vshrl.u32 %v5222, 7
    %v5224 = vsub.s32 1, %v5223
    %v5225 = vrot.slane %v5216, %v5224
    %v5226 = vlaneseq
    %v5227 = vshrl.u32 %v5226, 7
    %v5228 = vsub.s32 2, %v5227
    %v5229 = vrot.slane %v5216, %v5228
    %v5230 = vlaneseq
    %v5231 = vshrl.u32 %v5230, 7
    %v5232 = vsub.s32 3, %v5231
    %v5233 = vrot.slane %v5216, %v5232
    %v5238 = vcombine.low %v5112, %v5113
    %v5239 = vcombine.high %v5112, %v5113
    %v5240 = vcombine.low %v5114, %v5115
    %v5241 = vcombine.high %v5114, %v5115
    %vm5244 = vcmask 588800
    %v5245 = vsel %vm5244, %v5239, 0
    %v5247 = vsel %vm5244, %v5241, 0
    %5249 = vmatprep.subr.mxu0 %v5117
    %5250 = vmatpush1.msra.mxu0 %v5116
    %5251 = vmatprep.subr.mxu0 %v5121
    %5252 = vmatpush1.msra.mxu0 %v5120
    %5253 = vmatprep.subr.mxu0 %v5125
    %5254 = vmatpush1.msra.mxu0 %v5124
    %5255 = vmatprep.subr.mxu0 %v5129
    %5256 = vmatpush1.msra.mxu0 %v5128
    %5257 = vmatprep.subr.mxu0 %v5133
    %5258 = vmatpush1.msra.mxu0 %v5132
    %5259 = vmatprep.subr.mxu0 %v5137
    %5260 = vmatpush1.msra.mxu0 %v5136
    %5261 = vmatprep.subr.mxu0 %v5141
    %5262 = vmatpush1.msra.mxu0 %v5140
    %5263 = vmatprep.subr.mxu0 %v5145
    %5264 = vmatpush1.msra.mxu0 %v5144
    %5265 = vmatprep.subr.mxu0 %v5149
    %5266 = vmatpush1.msra.mxu0 %v5148
    %5267 = vmatprep.subr.mxu0 %v5153
    %5268 = vmatpush1.msra.mxu0 %v5152
    %5269 = vmatprep.subr.mxu0 %v5157
    %5270 = vmatpush1.msra.mxu0 %v5156
    %5271 = vmatprep.subr.mxu0 %v5161
    %5272 = vmatpush1.msra.mxu0 %v5160
    %5273 = vmatprep.subr.mxu0 %v5165
    %5274 = vmatpush1.msra.mxu0 %v5164
    %5275 = vmatprep.subr.mxu0 %v5169
    %5276 = vmatpush1.msra.mxu0 %v5168
    %5277 = vmatprep.subr.mxu0 %v5173
    %5278 = vmatpush1.msra.mxu0 %v5172
    %5279 = vmatprep.subr.mxu0 %v5177
    %5280 = vmatpush1.msra.mxu0 %v5176
    %5281 = vmatprep.subr.mxu0 %v5181
    %5282 = vmatpush1.msra.mxu0 %v5180
    %5283 = vmatprep.subr.mxu0 %v5185
    %5284 = vmatpush1.msra.mxu0 %v5184
    %5285 = vmatprep.subr.mxu0 %v5189
    %5286 = vmatpush1.msra.mxu0 %v5188
    %5287 = vmatprep.subr.mxu0 %v5193
    %5288 = vmatpush1.msra.mxu0 %v5192
    %5289 = vmatprep.subr.mxu0 %v5197
    %5290 = vmatpush1.msra.mxu0 %v5196
    %5291 = vmatprep.subr.mxu0 %v5201
    %5292 = vmatpush1.msra.mxu0 %v5200
    %5293 = vmatprep.subr.mxu0 %v5205
    %5294 = vmatpush1.msra.mxu0 %v5204
    %5295 = vmatprep.subr.mxu0 %v5209
    %5296 = vmatpush1.msra.mxu0 %v5208
    %5297 = vmatprep.subr.mxu0 %v5213
    %5298 = vmatpush1.msra.mxu0 %v5212
    %5299 = vmatprep.subr.mxu0 0.0
    %5300 = vmatpush1.msra.mxu0 0.0
    %5301 = vmatprep.subr.mxu0 0.0
    %5302 = vmatpush1.msra.mxu0 0.0
    %5303 = vmatprep.subr.mxu0 0.0
    %5304 = vmatpush1.msra.mxu0 0.0
    %5305 = vmatprep.subr.mxu0 0.0
    %5306 = vmatpush1.msra.mxu0 0.0
    %5307 = vmatprep.subr.mxu0 0.0
    %5308 = vmatpush1.msra.mxu0 0.0
    %5309 = vmatprep.subr.mxu0 0.0
    %5310 = vmatpush1.msra.mxu0 0.0
    %5311 = vmatprep.subr.mxu0 0.0
    %5312 = vmatpush1.msra.mxu0 0.0
    %5313 = vmatprep.mubr.f32.mxu0 %v5245
    %5314 = vmatmul.mubr.f32.gmra.mrb[0].mxu0 %v5238
    %v5315 = vpop.f32.mrb[0].mxu0
    %v5316 = vadd.f32 %v5221, %v5315
    %v5317 = vpop.f32.mrb[0].mxu0
    %v5318 = vadd.f32 %v5225, %v5317
    %5319 = vmatprep.mubr.f32.mxu0 %v5247
    %5320 = vmatmul.mubr.f32.gmra.mrb[0].mxu0 %v5240
    %v5321 = vpop.f32.mrb[0].mxu0
    %v5322 = vadd.f32 %v5221, %v5321
    %v5323 = vpop.f32.mrb[0].mxu0
    %v5324 = vadd.f32 %v5225, %v5323
    %5325 = vdwg.mxu0
    %5326 = vmatprep.subr.mxu0 %v5119
    %5327 = vmatpush1.msra.mxu0 %v5118
    %5328 = vmatprep.subr.mxu0 %v5123
    %5329 = vmatpush1.msra.mxu0 %v5122
    %5330 = vmatprep.subr.mxu0 %v5127
    %5331 = vmatpush1.msra.mxu0 %v5126
    %5332 = vmatprep.subr.mxu0 %v5131
    %5333 = vmatpush1.msra.mxu0 %v5130
    %5334 = vmatprep.subr.mxu0 %v5135
    %5335 = vmatpush1.msra.mxu0 %v5134
    %5336 = vmatprep.subr.mxu0 %v5139
    %5337 = vmatpush1.msra.mxu0 %v5138
    %5338 = vmatprep.subr.mxu0 %v5143
    %5339 = vmatpush1.msra.mxu0 %v5142
    %5340 = vmatprep.subr.mxu0 %v5147
    %5341 = vmatpush1.msra.mxu0 %v5146
    %5342 = vmatprep.subr.mxu0 %v5151
    %5343 = vmatpush1.msra.mxu0 %v5150
    %5344 = vmatprep.subr.mxu0 %v5155
    %5345 = vmatpush1.msra.mxu0 %v5154
    %5346 = vmatprep.subr.mxu0 %v5159
    %5347 = vmatpush1.msra.mxu0 %v5158
    %5348 = vmatprep.subr.mxu0 %v5163
    %5349 = vmatpush1.msra.mxu0 %v5162
    %5350 = vmatprep.subr.mxu0 %v5167
    %5351 = vmatpush1.msra.mxu0 %v5166
    %5352 = vmatprep.subr.mxu0 %v5171
    %5353 = vmatpush1.msra.mxu0 %v5170
    %5354 = vmatprep.subr.mxu0 %v5175
    %5355 = vmatpush1.msra.mxu0 %v5174
    %5356 = vmatprep.subr.mxu0 %v5179
    %5357 = vmatpush1.msra.mxu0 %v5178
    %5358 = vmatprep.subr.mxu0 %v5183
    %5359 = vmatpush1.msra.mxu0 %v5182
    %5360 = vmatprep.subr.mxu0 %v5187
    %5361 = vmatpush1.msra.mxu0 %v5186
    %5362 = vmatprep.subr.mxu0 %v5191
    %5363 = vmatpush1.msra.mxu0 %v5190
    %5364 = vmatprep.subr.mxu0 %v5195
    %5365 = vmatpush1.msra.mxu0 %v5194
    %5366 = vmatprep.subr.mxu0 %v5199
    %5367 = vmatpush1.msra.mxu0 %v5198
    %5368 = vmatprep.subr.mxu0 %v5203
    %5369 = vmatpush1.msra.mxu0 %v5202
    %5370 = vmatprep.subr.mxu0 %v5207
    %5371 = vmatpush1.msra.mxu0 %v5206
    %5372 = vmatprep.subr.mxu0 %v5211
    %5373 = vmatpush1.msra.mxu0 %v5210
    %5374 = vmatprep.subr.mxu0 %v5215
    %5375 = vmatpush1.msra.mxu0 %v5214
    %5376 = vmatprep.subr.mxu0 0.0
    %5377 = vmatpush1.msra.mxu0 0.0
    %5378 = vmatprep.subr.mxu0 0.0
    %5379 = vmatpush1.msra.mxu0 0.0
    %5380 = vmatprep.subr.mxu0 0.0
    %5381 = vmatpush1.msra.mxu0 0.0
    %5382 = vmatprep.subr.mxu0 0.0
    %5383 = vmatpush1.msra.mxu0 0.0
    %5384 = vmatprep.subr.mxu0 0.0
    %5385 = vmatpush1.msra.mxu0 0.0
    %5386 = vmatprep.subr.mxu0 0.0
    %5387 = vmatpush1.msra.mxu0 0.0
    %5388 = vmatprep.subr.mxu0 0.0
    %5389 = vmatpush1.msra.mxu0 0.0
    %5390 = vmatprep.mubr.f32.mxu0 %v5245
    %5391 = vmatmul.mubr.f32.gmra.mrb[0].mxu0 %v5238
    %v5392 = vpop.f32.mrb[0].mxu0
    %v5393 = vadd.f32 %v5229, %v5392
    %v5394 = vpop.f32.mrb[0].mxu0
    %v5395 = vadd.f32 %v5233, %v5394
    %5396 = vmatprep.mubr.f32.mxu0 %v5247
    %5397 = vmatmul.mubr.f32.gmra.mrb[0].mxu0 %v5240
    %v5398 = vpop.f32.mrb[0].mxu0
    %v5399 = vadd.f32 %v5229, %v5398
    %v5400 = vpop.f32.mrb[0].mxu0
    %v5401 = vadd.f32 %v5233, %v5400
    %5402 = vdwg.mxu0
    %5403 = vst [vmem:[#allocation7] sm:$0xff] %v5316
    %5404 = vst [vmem:[#allocation7 + $0x8] sm:$0xff] %v5318
    %5405 = vst [vmem:[#allocation7 + $0x10] sm:$0xff] %v5393
    %5406 = vst [vmem:[#allocation7 + $0x18] sm:$0xff] %v5395
    %5407 = vst [vmem:[#allocation7 + $0x20] sm:$0xff] %v5322
    %5408 = vst [vmem:[#allocation7 + $0x28] sm:$0xff] %v5324
    %5409 = vst [vmem:[#allocation7 + $0x30] sm:$0xff] %v5399
    %5410 = vst [vmem:[#allocation7 + $0x38] sm:$0xff] %v5401
    // Predicated region
    $region22: #{tpu_custom_call.1} parent=1 // pred_check
      _
    $region23: #{tpu_custom_call.1} parent=1 // pred_check_branch
      %5412 = sbr.rel (0) target = $region25
    $region24: #{tpu_custom_call.1} parent=1 // pred_region
      %s5414 = ssub.s32 1024, 1024
      %5415 = vsyncadd [#allocation4], %s5414
      %s5416 = sshll.u32 [#allocation7], 4
      %s5417 = int_to_ptr.vmem [resolvable:$true] %s5416
      %5422 = dma.vmem_to_hbm [thread:$0]  %s5417, 1024, %s3, [#allocation4], 512, 512, 32
    $region25: #{tpu_custom_call.1} parent=1 // pred_fallthru
      _
    // Predicated region
    $region26: #{tpu_custom_call.1} parent=1 // pred_check
      _
    $region27: #{tpu_custom_call.1} parent=1 // pred_check_branch
      %5424 = sbr.rel (0) target = $region29
    $region28: #{tpu_custom_call.1} parent=1 // pred_region
      %5425 = dma.done [#allocation4], 1024
    $region29: #{tpu_custom_call.1} parent=1 // pred_fallthru
      _
    %5426 = vsyncpa [#allocation3], 1
    %5427 = vsyncpa [#allocation6], 1
    %5428 = vsyncpa [#allocation4], 1

</llo_original>
